<compile_context>
chip_gen: v6e
topology: v6e:2x2x1
jax: 0.10.0
libtpu: 0.0.40
codegen_flags: <defaults>
</compile_context>

<pallas_src>
import functools
import math

import numpy as np
import jax
import jax.numpy as jnp
from jax import lax
from jax.experimental import pallas as pl
from jax.experimental.pallas import tpu as pltpu

LN_EPS = 1e-5
ROW_TILE = 256  # multiple of 8; sized well under v7x's 32 MiB scoped VMEM for these widths


def _row_tiling(M, tm=ROW_TILE):
    """Pick a row block: full array if small, else a tm-row tile (multiple of 8)."""
    if M <= tm:
        return M, 1
    return tm, pl.cdiv(M, tm)


_PARALLEL1 = pltpu.CompilerParams(dimension_semantics=("parallel",))


# ----------------------------------------------------------------------------
# Pallas kernels
# ----------------------------------------------------------------------------
def _linear_kernel(x_ref, w_ref, b_ref, o_ref, *, activation):
    """out = x @ w + b (optional ReLU).  Operands stay in native dtype; f32 accumulate."""
    acc = jnp.dot(x_ref[...], w_ref[...], preferred_element_type=jnp.float32)
    acc = acc + b_ref[...].astype(jnp.float32)
    if activation == "relu":
        acc = jnp.maximum(acc, 0.0)
    o_ref[...] = acc.astype(o_ref.dtype)


def linear(x2d, w, b, activation="none"):
    M, K = x2d.shape
    Kw, N = w.shape
    assert K == Kw, (K, Kw)
    bm, gm = _row_tiling(M)
    return pl.pallas_call(
        functools.partial(_linear_kernel, activation=activation),
        out_shape=jax.ShapeDtypeStruct((M, N), x2d.dtype),
        grid=(gm,),
        in_specs=[
            pl.BlockSpec((bm, K), lambda i: (i, 0)),
            pl.BlockSpec((K, N), lambda i: (0, 0)),
            pl.BlockSpec((1, N), lambda i: (0, 0)),
        ],
        out_specs=pl.BlockSpec((bm, N), lambda i: (i, 0)),
        compiler_params=_PARALLEL1,
    )(x2d, w, b.reshape(1, N))


def _linear_res_ln_kernel(x_ref, w_ref, b_ref, r_ref, g_ref, bb_ref, o_ref, *, eps):
    """out = LayerNorm(x @ w + b + residual) -- fused out-proj epilogue."""
    acc = jnp.dot(x_ref[...], w_ref[...], preferred_element_type=jnp.float32)
    acc = acc + b_ref[...].astype(jnp.float32) + r_ref[...].astype(jnp.float32)
    mean = jnp.mean(acc, axis=-1, keepdims=True)
    xc = acc - mean
    var = jnp.mean(xc * xc, axis=-1, keepdims=True)
    y = xc * lax.rsqrt(var + eps)
    o_ref[...] = (y * g_ref[...].astype(jnp.float32)
                  + bb_ref[...].astype(jnp.float32)).astype(o_ref.dtype)


def linear_residual_layernorm(x2d, w, b, res2d, gamma, beta, eps=LN_EPS):
    M, K = x2d.shape
    N = w.shape[1]
    bm, gm = _row_tiling(M)
    return pl.pallas_call(
        functools.partial(_linear_res_ln_kernel, eps=eps),
        out_shape=jax.ShapeDtypeStruct((M, N), x2d.dtype),
        grid=(gm,),
        in_specs=[
            pl.BlockSpec((bm, K), lambda i: (i, 0)),
            pl.BlockSpec((K, N), lambda i: (0, 0)),
            pl.BlockSpec((1, N), lambda i: (0, 0)),
            pl.BlockSpec((bm, N), lambda i: (i, 0)),
            pl.BlockSpec((1, N), lambda i: (0, 0)),
            pl.BlockSpec((1, N), lambda i: (0, 0)),
        ],
        out_specs=pl.BlockSpec((bm, N), lambda i: (i, 0)),
        compiler_params=_PARALLEL1,
    )(x2d, w, b.reshape(1, N), res2d, gamma.reshape(1, N), beta.reshape(1, N))


def _ffn_res_ln_kernel(x_ref, w1_ref, b1_ref, w2_ref, b2_ref, g_ref, bb_ref, o_ref, *, eps):
    """out = LayerNorm(relu(x@w1+b1) @ w2 + b2 + x) -- whole FFN block fused."""
    x = x_ref[...]
    h = jnp.dot(x, w1_ref[...], preferred_element_type=jnp.float32)
    h = jnp.maximum(h + b1_ref[...].astype(jnp.float32), 0.0)
    acc = jnp.dot(h.astype(x.dtype), w2_ref[...], preferred_element_type=jnp.float32)
    acc = acc + b2_ref[...].astype(jnp.float32) + x.astype(jnp.float32)
    mean = jnp.mean(acc, axis=-1, keepdims=True)
    xc = acc - mean
    var = jnp.mean(xc * xc, axis=-1, keepdims=True)
    y = xc * lax.rsqrt(var + eps)
    o_ref[...] = (y * g_ref[...].astype(jnp.float32)
                  + bb_ref[...].astype(jnp.float32)).astype(o_ref.dtype)


def ffn_residual_layernorm(x2d, w1, b1, w2, b2, gamma, beta, eps=LN_EPS):
    M, D = x2d.shape
    Fh = w1.shape[1]
    bm, gm = _row_tiling(M)
    return pl.pallas_call(
        functools.partial(_ffn_res_ln_kernel, eps=eps),
        out_shape=jax.ShapeDtypeStruct((M, D), x2d.dtype),
        grid=(gm,),
        in_specs=[
            pl.BlockSpec((bm, D), lambda i: (i, 0)),
            pl.BlockSpec((D, Fh), lambda i: (0, 0)),
            pl.BlockSpec((1, Fh), lambda i: (0, 0)),
            pl.BlockSpec((Fh, D), lambda i: (0, 0)),
            pl.BlockSpec((1, D), lambda i: (0, 0)),
            pl.BlockSpec((1, D), lambda i: (0, 0)),
            pl.BlockSpec((1, D), lambda i: (0, 0)),
        ],
        out_specs=pl.BlockSpec((bm, D), lambda i: (i, 0)),
        compiler_params=_PARALLEL1,
    )(x2d, w1, b1.reshape(1, Fh), w2, b2.reshape(1, D),
      gamma.reshape(1, D), beta.reshape(1, D))


def _attn_kernel(q_ref, k_ref, v_ref, o_ref, *, scale):
    """Softmax attention for one batch-head; refs are 2-D [T, dh]."""
    q = q_ref[...]
    k = k_ref[...]
    v = v_ref[...]
    # Contract last axes of q and k (no materialized k transpose).
    s = lax.dot_general(q, k, (((1,), (1,)), ((), ())),
                        preferred_element_type=jnp.float32) * scale
    m = jnp.max(s, axis=-1, keepdims=True)
    p = jnp.exp(s - m)
    denom = jnp.sum(p, axis=-1, keepdims=True)
    p = p * pl.reciprocal(denom, approx=True)
    o_ref[...] = jnp.dot(p.astype(v.dtype), v,
                         preferred_element_type=jnp.float32).astype(o_ref.dtype)


def attention(q, k, v):
    BH, Tq, dh = q.shape
    Tk = k.shape[1]
    scale = 1.0 / math.sqrt(dh)
    return pl.pallas_call(
        functools.partial(_attn_kernel, scale=scale),
        out_shape=jax.ShapeDtypeStruct((BH, Tq, dh), q.dtype),
        grid=(BH,),
        in_specs=[
            pl.BlockSpec((pl.Squeezed(), Tq, dh), lambda i: (i, 0, 0)),
            pl.BlockSpec((pl.Squeezed(), Tk, dh), lambda i: (i, 0, 0)),
            pl.BlockSpec((pl.Squeezed(), Tk, dh), lambda i: (i, 0, 0)),
        ],
        out_specs=pl.BlockSpec((pl.Squeezed(), Tq, dh), lambda i: (i, 0, 0)),
        compiler_params=_PARALLEL1,
    )(q, k, v)


def _mlp3_groupln_kernel(x_ref, w1_ref, b1_ref, w2_ref, b2_ref, w3_ref, b3_ref,
                         seg_ref, segt_ref, g_ref, bb_ref, o_ref, *, eps, inv_c):
    """3-layer MLP (relu, relu, none) fused with the final per-token LayerNorm.

    The per-token (group of C lanes) mean/var are computed with tiny indicator
    matmuls (lane-dense, no in-kernel reshape of the 256-wide slab).
    """
    dt = x_ref.dtype
    h = jnp.dot(x_ref[...], w1_ref[...], preferred_element_type=jnp.float32)
    h = jnp.maximum(h + b1_ref[...].astype(jnp.float32), 0.0)
    h = jnp.dot(h.astype(dt), w2_ref[...], preferred_element_type=jnp.float32)
    h = jnp.maximum(h + b2_ref[...].astype(jnp.float32), 0.0)
    y = jnp.dot(h.astype(dt), w3_ref[...], preferred_element_type=jnp.float32)
    y = y + b3_ref[...].astype(jnp.float32)

    seg = seg_ref[...]      # [NC, n_tok]  one-hot group membership
    segt = segt_ref[...]    # [n_tok, NC]
    mean = jnp.dot(y, seg, preferred_element_type=jnp.float32) * inv_c
    mean_full = jnp.dot(mean, segt, preferred_element_type=jnp.float32)
    xc = y - mean_full
    var = jnp.dot(xc * xc, seg, preferred_element_type=jnp.float32) * inv_c
    var_full = jnp.dot(var, segt, preferred_element_type=jnp.float32)
    out = xc * lax.rsqrt(var_full + eps)
    o_ref[...] = (out * g_ref[...].astype(jnp.float32)
                  + bb_ref[...].astype(jnp.float32)).astype(o_ref.dtype)


def mlp3_group_layernorm(x2d, mlp_params, gamma, beta, num_tokens, eps=LN_EPS):
    assert len(mlp_params) == 3, "fused kernel expects the 3-layer MLP of AudioProjection"
    (w1, b1), (w2, b2), (w3, b3) = mlp_params
    M, K = x2d.shape
    F1, F2, NC = w1.shape[1], w2.shape[1], w3.shape[1]
    C = NC // num_tokens

    seg_np = np.kron(np.eye(num_tokens, dtype=np.float32), np.ones((C, 1), np.float32))
    seg = jnp.asarray(seg_np)                                   # [NC, n_tok]
    segt = jnp.asarray(np.ascontiguousarray(seg_np.T))          # [n_tok, NC]
    g_tiled = jnp.tile(gamma, num_tokens).reshape(1, NC)
    b_tiled = jnp.tile(beta, num_tokens).reshape(1, NC)

    bm, gm = _row_tiling(M)
    return pl.pallas_call(
        functools.partial(_mlp3_groupln_kernel, eps=eps, inv_c=1.0 / C),
        out_shape=jax.ShapeDtypeStruct((M, NC), x2d.dtype),
        grid=(gm,),
        in_specs=[
            pl.BlockSpec((bm, K), lambda i: (i, 0)),
            pl.BlockSpec((K, F1), lambda i: (0, 0)),
            pl.BlockSpec((1, F1), lambda i: (0, 0)),
            pl.BlockSpec((F1, F2), lambda i: (0, 0)),
            pl.BlockSpec((1, F2), lambda i: (0, 0)),
            pl.BlockSpec((F2, NC), lambda i: (0, 0)),
            pl.BlockSpec((1, NC), lambda i: (0, 0)),
            pl.BlockSpec((NC, num_tokens), lambda i: (0, 0)),
            pl.BlockSpec((num_tokens, NC), lambda i: (0, 0)),
            pl.BlockSpec((1, NC), lambda i: (0, 0)),
            pl.BlockSpec((1, NC), lambda i: (0, 0)),
        ],
        out_specs=pl.BlockSpec((bm, NC), lambda i: (i, 0)),
        compiler_params=_PARALLEL1,
    )(x2d, w1, b1.reshape(1, F1), w2, b2.reshape(1, F2), w3, b3.reshape(1, NC),
      seg, segt, g_tiled, b_tiled)


# ----------------------------------------------------------------------------
# Glue (static index plumbing, kept in plain JAX)
# ----------------------------------------------------------------------------
def interpolate_time(x, out_len):
    """F.interpolate(mode='linear', align_corners=False) over time: static gather + lerp."""
    _, T_in, _ = x.shape
    scale = T_in / out_len
    i = np.arange(out_len, dtype=np.float64)
    src = np.maximum(scale * (i + 0.5) - 0.5, 0.0)
    idx0 = np.minimum(np.floor(src).astype(np.int64), T_in - 1)
    idx1 = np.minimum(idx0 + 1, T_in - 1)
    lam = jnp.asarray((src - idx0).astype(np.float32))[None, :, None]
    x0 = x[:, idx0, :].astype(jnp.float32)
    x1 = x[:, idx1, :].astype(jnp.float32)
    return (x0 + lam * (x1 - x0)).astype(x.dtype)


def _split_heads(t, B, T, n_heads, dh):
    return t.reshape(B, T, n_heads, dh).transpose(0, 2, 1, 3).reshape(B * n_heads, T, dh)


def _merge_heads(t, B, T, n_heads, dh):
    return t.reshape(B, n_heads, T, dh).transpose(0, 2, 1, 3).reshape(B * T, n_heads * dh)


# ----------------------------------------------------------------------------
# Model pieces (compositions of the fused kernels)
# ----------------------------------------------------------------------------
def self_attn_block(x, p, n_heads, norm_w, norm_b):
    """x = LayerNorm(x + self_attn(x)) with fused QKV and fused out-proj+res+LN."""
    B, T, D = x.shape
    dh = D // n_heads
    x2 = x.reshape(B * T, D)
    qkv = linear(x2, p["wqkv"], p["bqkv"])                    # [B*T, 3D] lane-dense
    q, k, v = jnp.split(qkv, 3, axis=-1)
    o = attention(_split_heads(q, B, T, n_heads, dh),
                  _split_heads(k, B, T, n_heads, dh),
                  _split_heads(v, B, T, n_heads, dh))
    o = _merge_heads(o, B, T, n_heads, dh)
    y = linear_residual_layernorm(o, p["wo"], p["bo"], x2, norm_w, norm_b)
    return y.reshape(B, T, D)


def cross_attn_block(x, mem, p, n_heads, norm_w, norm_b):
    """x = LayerNorm(x + cross_attn(x, mem)) with fused KV and fused out-proj+res+LN."""
    B, Tq, D = x.shape
    Tk = mem.shape[1]
    dh = D // n_heads
    x2 = x.reshape(B * Tq, D)
    m2 = mem.reshape(B * Tk, D)
    q = linear(x2, p["wq"], p["bq"])                           # [B*Tq, D]
    kv = linear(m2, p["wkv"], p["bkv"])                        # [B*Tk, 2D] lane-dense
    k, v = jnp.split(kv, 2, axis=-1)
    o = attention(_split_heads(q, B, Tq, n_heads, dh),
                  _split_heads(k, B, Tk, n_heads, dh),
                  _split_heads(v, B, Tk, n_heads, dh))
    o = _merge_heads(o, B, Tq, n_heads, dh)
    y = linear_residual_layernorm(o, p["wo"], p["bo"], x2, norm_w, norm_b)
    return y.reshape(B, Tq, D)


def decoder_layer(x, mem, p, n_heads):
    """nn.TransformerDecoderLayer (post-norm, relu, dropout=0)."""
    x = self_attn_block(x, p["self_attn"], n_heads, p["norm1_w"], p["norm1_b"])
    x = cross_attn_block(x, mem, p["cross_attn"], n_heads, p["norm2_w"], p["norm2_b"])
    B, T, D = x.shape
    y = ffn_residual_layernorm(x.reshape(B * T, D), p["ff_w1"], p["ff_b1"],
                               p["ff_w2"], p["ff_b2"], p["norm3_w"], p["norm3_b"])
    return y.reshape(B, T, D)


def audio_projection_forward(params, audio_feature, latent_frame, *,
                             left, right, num_tokens, n_heads):
    B, T_in, D = audio_feature.shape
    audio_frames = left + right + 1
    video_frame = (latent_frame - 1) * 4 + 1

    ori = audio_feature
    x = interpolate_time(ori, video_frame)                     # [B, Tv, D]

    for lp in params["decoder_layers"]:
        x = decoder_layer(x, ori, lp, n_heads)

    # replicate pad along time + unfold + 'B T C W -> B T (W C)'   (glue)
    padded = jnp.concatenate(
        [jnp.repeat(x[:, :1], left, axis=1), x, jnp.repeat(x[:, -1:], right, axis=1)],
        axis=1)                                                # [B, Tv+L+R, D]
    win_idx = np.arange(video_frame)[:, None] + np.arange(audio_frames)[None, :]
    windows = padded[:, win_idx]                               # [B, Tv, W, D]
    feat = windows.reshape(B, video_frame, audio_frames * D)   # (W C) order

    # fused MLP (3 linears + relus) + final per-token LayerNorm
    y = mlp3_group_layernorm(feat.reshape(B * video_frame, audio_frames * D),
                             params["mlp"], params["norm_w"], params["norm_b"],
                             num_tokens)
    C_out = y.shape[-1] // num_tokens
    return y.reshape(B, video_frame, num_tokens, C_out)


# ----------------------------------------------------------------------------
# Deterministic synthetic parameter init (bf16 weights, f32 accumulation in kernels)
# ----------------------------------------------------------------------------
def init_params(key, D, num_tokens, mlp_dims, n_layers, dim_ff, audio_frames,
                dtype=jnp.bfloat16):
    keys = iter(jax.random.split(key, 1024))

    def dense(in_dim, out_dim):
        w = (jax.random.normal(next(keys), (in_dim, out_dim), jnp.float32) * 0.02).astype(dtype)
        b = jnp.zeros((out_dim,), dtype)
        return w, b

    def self_attn_p():
        wqkv, bqkv = dense(D, 3 * D)
        wo, bo = dense(D, D)
        return dict(wqkv=wqkv, bqkv=bqkv, wo=wo, bo=bo)

    def cross_attn_p():
        wq, bq = dense(D, D)
        wkv, bkv = dense(D, 2 * D)
        wo, bo = dense(D, D)
        return dict(wq=wq, bq=bq, wkv=wkv, bkv=bkv, wo=wo, bo=bo)

    layers = []
    for _ in range(n_layers):
        ff_w1, ff_b1 = dense(D, dim_ff)
        ff_w2, ff_b2 = dense(dim_ff, D)
        layers.append(dict(
            self_attn=self_attn_p(), cross_attn=cross_attn_p(),
            ff_w1=ff_w1, ff_b1=ff_b1, ff_w2=ff_w2, ff_b2=ff_b2,
            norm1_w=jnp.ones((D,), dtype), norm1_b=jnp.zeros((D,), dtype),
            norm2_w=jnp.ones((D,), dtype), norm2_b=jnp.zeros((D,), dtype),
            norm3_w=jnp.ones((D,), dtype), norm3_b=jnp.zeros((D,), dtype),
        ))

    mlp = []
    in_dim = D * audio_frames
    for out_dim in mlp_dims:
        mlp.append(dense(in_dim, out_dim))
        in_dim = out_dim

    C_out = mlp_dims[-1] // num_tokens
    return dict(decoder_layers=layers, mlp=mlp,
                norm_w=jnp.ones((C_out,), dtype),
                norm_b=jnp.zeros((C_out,), dtype))


# ----------------------------------------------------------------------------
if __name__ == "__main__":
    # Small config consistent with AudioProjection:
    #   audio_feature_dim=64, n_neighbors=(2,2), num_tokens=4,
    #   mlp_dims=(128, 128, 4*64), transformer_layers=2, nhead = 64//64 = 1
    D = 64
    n_neighbors = (2, 2)
    audio_frames = sum(n_neighbors) + 1
    num_tokens = 4
    mlp_dims = (128, 128, num_tokens * D)
    transformer_layers = 2
    n_heads = max(D // 64, 1)
    dim_ff = 4 * D

    B, T_in = 2, 8
    latent_frame = 3  # -> video_frame = 9

    key = jax.random.PRNGKey(0)
    k_feat, k_params = jax.random.split(key)
    audio_feature = jax.random.normal(k_feat, (B, T_in, D), jnp.float32).astype(jnp.bfloat16)
    params = init_params(k_params, D, num_tokens, mlp_dims,
                         transformer_layers, dim_ff, audio_frames)

    fwd = jax.jit(functools.partial(
        audio_projection_forward, latent_frame=latent_frame,
        left=n_neighbors[0], right=n_neighbors[1],
        num_tokens=num_tokens, n_heads=n_heads))
    out = jax.block_until_ready(fwd(params, audio_feature))

    expected = (B, (latent_frame - 1) * 4 + 1, num_tokens, mlp_dims[-1] // num_tokens)
    assert out.shape == expected, (out.shape, expected)
    assert bool(jnp.all(jnp.isfinite(out.astype(jnp.float32))))
    print("KERNEL_OK")
</pallas_src>

<mosaic_0001>
module attributes {stable_mosaic.version = 11 : i64} {
  func.func @_linear_kernel(%arg0: i32, %arg1: memref<18x64xbf16, #tpu.memory_space<vmem>>, %arg2: memref<64x192xbf16, #tpu.memory_space<vmem>>, %arg3: memref<1x192xbf16, #tpu.memory_space<vmem>>, %arg4: memref<18x192xbf16, #tpu.memory_space<vmem>>) attributes {dimension_semantics = [#tpu.dimension_semantics<parallel>], iteration_bounds = array<i64: 1>, scalar_prefetch = 0 : i64, scratch_operands = 0 : i64, tpu.core_type = #tpu.core_type<tc>, window_params = [{transform_indices = @transform_0, window_bounds = array<i64: 18, 64>}, {pipeline_mode = #tpu.pipeline_mode<synchronous>, transform_indices = @transform_1, window_bounds = array<i64: 64, 192>}, {pipeline_mode = #tpu.pipeline_mode<synchronous>, transform_indices = @transform_2, window_bounds = array<i64: 1, 192>}, {transform_indices = @transform_3, window_bounds = array<i64: 18, 192>}]} {
    %c0 = arith.constant 0 : index
    %c0_0 = arith.constant 0 : index
    %0 = vector.load %arg1[%c0, %c0_0] : memref<18x64xbf16, #tpu.memory_space<vmem>>, vector<18x64xbf16>
    %c0_1 = arith.constant 0 : index
    %c0_2 = arith.constant 0 : index
    %1 = vector.load %arg2[%c0_1, %c0_2] : memref<64x192xbf16, #tpu.memory_space<vmem>>, vector<64x192xbf16>
    %cst = arith.constant dense<0.000000e+00> : vector<18x192xf32>
    %2 = tpu.matmul %0, %1, %cst {dimension_numbers = #tpu.dot_dimension_numbers<[1], [0], [0], [1], [0, 0, 1, 1], [], []>} : vector<18x64xbf16>, vector<64x192xbf16>, vector<18x192xf32> -> vector<18x192xf32>
    %c0_3 = arith.constant 0 : index
    %c0_4 = arith.constant 0 : index
    %3 = vector.load %arg3[%c0_3, %c0_4] : memref<1x192xbf16, #tpu.memory_space<vmem>>, vector<1x192xbf16>
    %4 = arith.extf %3 : vector<1x192xbf16> to vector<1x192xf32>
    %5 = vector.broadcast %4 : vector<1x192xf32> to vector<18x192xf32>
    %6 = arith.addf %2, %5 : vector<18x192xf32>
    %7 = arith.truncf %6 : vector<18x192xf32> to vector<18x192xbf16>
    %c0_5 = arith.constant 0 : index
    %c0_6 = arith.constant 0 : index
    %8 = vector.load %arg4[%c0_5, %c0_6] : memref<18x192xbf16, #tpu.memory_space<vmem>>, vector<18x192xbf16>
    tpu.vector_store %arg4[%c0_5, %c0_6], %7 {strides = array<i32>} : memref<18x192xbf16, #tpu.memory_space<vmem>>, vector<18x192xbf16>,
    return
  }
  func.func @transform_0(%arg0: i32) -> (i32, i32) {
    %c0_i32 = arith.constant 0 : i32
    %c0_i32_0 = arith.constant 0 : i32
    return %arg0, %c0_i32 : i32, i32
  }
  func.func @transform_1(%arg0: i32) -> (i32, i32) {
    %c0_i32 = arith.constant 0 : i32
    %c0_i32_0 = arith.constant 0 : i32
    %c0_i32_1 = arith.constant 0 : i32
    return %c0_i32, %c0_i32_0 : i32, i32
  }
  func.func @transform_2(%arg0: i32) -> (i32, i32) {
    %c0_i32 = arith.constant 0 : i32
    %c0_i32_0 = arith.constant 0 : i32
    %c0_i32_1 = arith.constant 0 : i32
    return %c0_i32, %c0_i32_0 : i32, i32
  }
  func.func @transform_3(%arg0: i32) -> (i32, i32) {
    %c0_i32 = arith.constant 0 : i32
    %c0_i32_0 = arith.constant 0 : i32
    return %arg0, %c0_i32 : i32, i32
  }
}

module attributes {stable_mosaic.version = 11 : i64} {
  func.func @_attn_kernel(%arg0: i32, %arg1: memref<1x9x64xbf16, #tpu.memory_space<vmem>>, %arg2: memref<1x9x64xbf16, #tpu.memory_space<vmem>>, %arg3: memref<1x9x64xbf16, #tpu.memory_space<vmem>>, %arg4: memref<1x9x64xbf16, #tpu.memory_space<vmem>>) attributes {dimension_semantics = [#tpu.dimension_semantics<parallel>], iteration_bounds = array<i64: 2>, scalar_prefetch = 0 : i64, scratch_operands = 0 : i64, tpu.core_type = #tpu.core_type<tc>, window_params = [{transform_indices = @transform_0, window_bounds = array<i64: 1, 9, 64>}, {transform_indices = @transform_1, window_bounds = array<i64: 1, 9, 64>}, {transform_indices = @transform_2, window_bounds = array<i64: 1, 9, 64>}, {transform_indices = @transform_3, window_bounds = array<i64: 1, 9, 64>}]} {
    %c0 = arith.constant 0 : index
    %c0_0 = arith.constant 0 : index
    %c0_1 = arith.constant 0 : index
    %0 = vector.load %arg1[%c0, %c0_0, %c0_1] : memref<1x9x64xbf16, #tpu.memory_space<vmem>>, vector<1x9x64xbf16>
    %1 = vector.shape_cast %0 : vector<1x9x64xbf16> to vector<9x64xbf16>
    %c0_2 = arith.constant 0 : index
    %c0_3 = arith.constant 0 : index
    %c0_4 = arith.constant 0 : index
    %2 = vector.load %arg2[%c0_2, %c0_3, %c0_4] : memref<1x9x64xbf16, #tpu.memory_space<vmem>>, vector<1x9x64xbf16>
    %3 = vector.shape_cast %2 : vector<1x9x64xbf16> to vector<9x64xbf16>
    %c0_5 = arith.constant 0 : index
    %c0_6 = arith.constant 0 : index
    %c0_7 = arith.constant 0 : index
    %4 = vector.load %arg3[%c0_5, %c0_6, %c0_7] : memref<1x9x64xbf16, #tpu.memory_space<vmem>>, vector<1x9x64xbf16>
    %5 = vector.shape_cast %4 : vector<1x9x64xbf16> to vector<9x64xbf16>
    %cst = arith.constant dense<0.000000e+00> : vector<9x9xf32>
    %6 = tpu.matmul %1, %3, %cst {dimension_numbers = #tpu.dot_dimension_numbers<[1], [1], [0], [0], [0, 0, 1, 0], [], []>} : vector<9x64xbf16>, vector<9x64xbf16>, vector<9x9xf32> -> vector<9x9xf32>
    %cst_8 = arith.constant 1.250000e-01 : f32
    %7 = vector.broadcast %cst_8 : f32 to vector<9x9xf32>
    %8 = arith.mulf %6, %7 : vector<9x9xf32>
    %cst_9 = arith.constant dense<0xFF800000> : vector<9xf32>
    %9 = vector.multi_reduction <maximumf>, %8, %cst_9 [1] : vector<9x9xf32> to vector<9xf32>
    %10 = vector.shape_cast %9 : vector<9xf32> to vector<9x1xf32>
    %11 = vector.broadcast %10 : vector<9x1xf32> to vector<9x9xf32>
    %12 = arith.subf %8, %11 : vector<9x9xf32>
    %13 = math.exp %12 : vector<9x9xf32>
    %cst_10 = arith.constant dense<0.000000e+00> : vector<9xf32>
    %14 = vector.multi_reduction <add>, %13, %cst_10 [1] : vector<9x9xf32> to vector<9xf32>
    %15 = vector.shape_cast %14 : vector<9xf32> to vector<9x1xf32>
    %16 = tpu.reciprocal %15 {approx = true} : vector<9x1xf32> -> vector<9x1xf32>
    %17 = vector.broadcast %16 : vector<9x1xf32> to vector<9x9xf32>
    %18 = arith.mulf %13, %17 : vector<9x9xf32>
    %19 = arith.truncf %18 : vector<9x9xf32> to vector<9x9xbf16>
    %cst_11 = arith.constant dense<0.000000e+00> : vector<9x64xf32>
    %20 = tpu.matmul %19, %5, %cst_11 {dimension_numbers = #tpu.dot_dimension_numbers<[1], [0], [0], [1], [0, 0, 1, 1], [], []>} : vector<9x9xbf16>, vector<9x64xbf16>, vector<9x64xf32> -> vector<9x64xf32>
    %21 = arith.truncf %20 : vector<9x64xf32> to vector<9x64xbf16>
    %c0_12 = arith.constant 0 : index
    %c0_13 = arith.constant 0 : index
    %c0_14 = arith.constant 0 : index
    %22 = vector.load %arg4[%c0_12, %c0_13, %c0_14] : memref<1x9x64xbf16, #tpu.memory_space<vmem>>, vector<1x9x64xbf16>
    %23 = vector.shape_cast %22 : vector<1x9x64xbf16> to vector<9x64xbf16>
    %24 = vector.shape_cast %21 : vector<9x64xbf16> to vector<1x9x64xbf16>
    tpu.vector_store %arg4[%c0_12, %c0_13, %c0_14], %24 {strides = array<i32>} : memref<1x9x64xbf16, #tpu.memory_space<vmem>>, vector<1x9x64xbf16>,
    return
  }
  func.func @transform_0(%arg0: i32) -> (i32, i32, i32) {
    %c0_i32 = arith.constant 0 : i32
    %c0_i32_0 = arith.constant 0 : i32
    %c0_i32_1 = arith.constant 0 : i32
    return %arg0, %c0_i32, %c0_i32_0 : i32, i32, i32
  }
  func.func @transform_1(%arg0: i32) -> (i32, i32, i32) {
    %c0_i32 = arith.constant 0 : i32
    %c0_i32_0 = arith.constant 0 : i32
    %c0_i32_1 = arith.constant 0 : i32
    return %arg0, %c0_i32, %c0_i32_0 : i32, i32, i32
  }
  func.func @transform_2(%arg0: i32) -> (i32, i32, i32) {
    %c0_i32 = arith.constant 0 : i32
    %c0_i32_0 = arith.constant 0 : i32
    %c0_i32_1 = arith.constant 0 : i32
    return %arg0, %c0_i32, %c0_i32_0 : i32, i32, i32
  }
  func.func @transform_3(%arg0: i32) -> (i32, i32, i32) {
    %c0_i32 = arith.constant 0 : i32
    %c0_i32_0 = arith.constant 0 : i32
    %c0_i32_1 = arith.constant 0 : i32
    return %arg0, %c0_i32, %c0_i32_0 : i32, i32, i32
  }
}

module attributes {stable_mosaic.version = 11 : i64} {
  func.func @_linear_kernel(%arg0: i32, %arg1: memref<18x64xbf16, #tpu.memory_space<vmem>>, %arg2: memref<64x64xbf16, #tpu.memory_space<vmem>>, %arg3: memref<1x64xbf16, #tpu.memory_space<vmem>>, %arg4: memref<18x64xbf16, #tpu.memory_space<vmem>>) attributes {dimension_semantics = [#tpu.dimension_semantics<parallel>], iteration_bounds = array<i64: 1>, scalar_prefetch = 0 : i64, scratch_operands = 0 : i64, tpu.core_type = #tpu.core_type<tc>, window_params = [{transform_indices = @transform_0, window_bounds = array<i64: 18, 64>}, {pipeline_mode = #tpu.pipeline_mode<synchronous>, transform_indices = @transform_1, window_bounds = array<i64: 64, 64>}, {pipeline_mode = #tpu.pipeline_mode<synchronous>, transform_indices = @transform_2, window_bounds = array<i64: 1, 64>}, {transform_indices = @transform_3, window_bounds = array<i64: 18, 64>}]} {
    %c0 = arith.constant 0 : index
    %c0_0 = arith.constant 0 : index
    %0 = vector.load %arg1[%c0, %c0_0] : memref<18x64xbf16, #tpu.memory_space<vmem>>, vector<18x64xbf16>
    %c0_1 = arith.constant 0 : index
    %c0_2 = arith.constant 0 : index
    %1 = vector.load %arg2[%c0_1, %c0_2] : memref<64x64xbf16, #tpu.memory_space<vmem>>, vector<64x64xbf16>
    %cst = arith.constant dense<0.000000e+00> : vector<18x64xf32>
    %2 = tpu.matmul %0, %1, %cst {dimension_numbers = #tpu.dot_dimension_numbers<[1], [0], [0], [1], [0, 0, 1, 1], [], []>} : vector<18x64xbf16>, vector<64x64xbf16>, vector<18x64xf32> -> vector<18x64xf32>
    %c0_3 = arith.constant 0 : index
    %c0_4 = arith.constant 0 : index
    %3 = vector.load %arg3[%c0_3, %c0_4] : memref<1x64xbf16, #tpu.memory_space<vmem>>, vector<1x64xbf16>
    %4 = arith.extf %3 : vector<1x64xbf16> to vector<1x64xf32>
    %5 = vector.broadcast %4 : vector<1x64xf32> to vector<18x64xf32>
    %6 = arith.addf %2, %5 : vector<18x64xf32>
    %7 = arith.truncf %6 : vector<18x64xf32> to vector<18x64xbf16>
    %c0_5 = arith.constant 0 : index
    %c0_6 = arith.constant 0 : index
    %8 = vector.load %arg4[%c0_5, %c0_6] : memref<18x64xbf16, #tpu.memory_space<vmem>>, vector<18x64xbf16>
    tpu.vector_store %arg4[%c0_5, %c0_6], %7 {strides = array<i32>} : memref<18x64xbf16, #tpu.memory_space<vmem>>, vector<18x64xbf16>,
    return
  }
  func.func @transform_0(%arg0: i32) -> (i32, i32) {
    %c0_i32 = arith.constant 0 : i32
    %c0_i32_0 = arith.constant 0 : i32
    return %arg0, %c0_i32 : i32, i32
  }
  func.func @transform_1(%arg0: i32) -> (i32, i32) {
    %c0_i32 = arith.constant 0 : i32
    %c0_i32_0 = arith.constant 0 : i32
    %c0_i32_1 = arith.constant 0 : i32
    return %c0_i32, %c0_i32_0 : i32, i32
  }
  func.func @transform_2(%arg0: i32) -> (i32, i32) {
    %c0_i32 = arith.constant 0 : i32
    %c0_i32_0 = arith.constant 0 : i32
    %c0_i32_1 = arith.constant 0 : i32
    return %c0_i32, %c0_i32_0 : i32, i32
  }
  func.func @transform_3(%arg0: i32) -> (i32, i32) {
    %c0_i32 = arith.constant 0 : i32
    %c0_i32_0 = arith.constant 0 : i32
    return %arg0, %c0_i32 : i32, i32
  }
}

module attributes {stable_mosaic.version = 11 : i64} {
  func.func @_linear_res_ln_kernel(%arg0: i32, %arg1: memref<18x64xbf16, #tpu.memory_space<vmem>>, %arg2: memref<64x64xbf16, #tpu.memory_space<vmem>>, %arg3: memref<1x64xbf16, #tpu.memory_space<vmem>>, %arg4: memref<18x64xbf16, #tpu.memory_space<vmem>>, %arg5: memref<1x64xbf16, #tpu.memory_space<vmem>>, %arg6: memref<1x64xbf16, #tpu.memory_space<vmem>>, %arg7: memref<18x64xbf16, #tpu.memory_space<vmem>>) attributes {dimension_semantics = [#tpu.dimension_semantics<parallel>], iteration_bounds = array<i64: 1>, scalar_prefetch = 0 : i64, scratch_operands = 0 : i64, tpu.core_type = #tpu.core_type<tc>, window_params = [{transform_indices = @transform_0, window_bounds = array<i64: 18, 64>}, {pipeline_mode = #tpu.pipeline_mode<synchronous>, transform_indices = @transform_1, window_bounds = array<i64: 64, 64>}, {pipeline_mode = #tpu.pipeline_mode<synchronous>, transform_indices = @transform_2, window_bounds = array<i64: 1, 64>}, {transform_indices = @transform_3, window_bounds = array<i64: 18, 64>}, {pipeline_mode = #tpu.pipeline_mode<synchronous>, transform_indices = @transform_4, window_bounds = array<i64: 1, 64>}, {pipeline_mode = #tpu.pipeline_mode<synchronous>, transform_indices = @transform_5, window_bounds = array<i64: 1, 64>}, {transform_indices = @transform_6, window_bounds = array<i64: 18, 64>}]} {
    %c0 = arith.constant 0 : index
    %c0_0 = arith.constant 0 : index
    %0 = vector.load %arg1[%c0, %c0_0] : memref<18x64xbf16, #tpu.memory_space<vmem>>, vector<18x64xbf16>
    %c0_1 = arith.constant 0 : index
    %c0_2 = arith.constant 0 : index
    %1 = vector.load %arg2[%c0_1, %c0_2] : memref<64x64xbf16, #tpu.memory_space<vmem>>, vector<64x64xbf16>
    %cst = arith.constant dense<0.000000e+00> : vector<18x64xf32>
    %2 = tpu.matmul %0, %1, %cst {dimension_numbers = #tpu.dot_dimension_numbers<[1], [0], [0], [1], [0, 0, 1, 1], [], []>} : vector<18x64xbf16>, vector<64x64xbf16>, vector<18x64xf32> -> vector<18x64xf32>
    %c0_3 = arith.constant 0 : index
    %c0_4 = arith.constant 0 : index
    %3 = vector.load %arg3[%c0_3, %c0_4] : memref<1x64xbf16, #tpu.memory_space<vmem>>, vector<1x64xbf16>
    %4 = arith.extf %3 : vector<1x64xbf16> to vector<1x64xf32>
    %5 = vector.broadcast %4 : vector<1x64xf32> to vector<18x64xf32>
    %6 = arith.addf %2, %5 : vector<18x64xf32>
    %c0_5 = arith.constant 0 : index
    %c0_6 = arith.constant 0 : index
    %7 = vector.load %arg4[%c0_5, %c0_6] : memref<18x64xbf16, #tpu.memory_space<vmem>>, vector<18x64xbf16>
    %8 = arith.extf %7 : vector<18x64xbf16> to vector<18x64xf32>
    %9 = arith.addf %6, %8 : vector<18x64xf32>
    %cst_7 = arith.constant dense<0.000000e+00> : vector<18xf32>
    %10 = vector.multi_reduction <add>, %9, %cst_7 [1] : vector<18x64xf32> to vector<18xf32>
    %11 = vector.shape_cast %10 : vector<18xf32> to vector<18x1xf32>
    %cst_8 = arith.constant 6.400000e+01 : f32
    %12 = vector.broadcast %cst_8 : f32 to vector<18x1xf32>
    %13 = arith.divf %11, %12 : vector<18x1xf32>
    %14 = vector.broadcast %13 : vector<18x1xf32> to vector<18x64xf32>
    %15 = arith.subf %9, %14 : vector<18x64xf32>
    %16 = arith.mulf %15, %15 : vector<18x64xf32>
    %cst_9 = arith.constant dense<0.000000e+00> : vector<18xf32>
    %17 = vector.multi_reduction <add>, %16, %cst_9 [1] : vector<18x64xf32> to vector<18xf32>
    %18 = vector.shape_cast %17 : vector<18xf32> to vector<18x1xf32>
    %cst_10 = arith.constant 6.400000e+01 : f32
    %19 = vector.broadcast %cst_10 : f32 to vector<18x1xf32>
    %20 = arith.divf %18, %19 : vector<18x1xf32>
    %cst_11 = arith.constant 9.99999974E-6 : f32
    %21 = vector.broadcast %cst_11 : f32 to vector<18x1xf32>
    %22 = arith.addf %20, %21 : vector<18x1xf32>
    %23 = math.rsqrt %22 : vector<18x1xf32>
    %24 = vector.broadcast %23 : vector<18x1xf32> to vector<18x64xf32>
    %25 = arith.mulf %15, %24 : vector<18x64xf32>
    %c0_12 = arith.constant 0 : index
    %c0_13 = arith.constant 0 : index
    %26 = vector.load %arg5[%c0_12, %c0_13] : memref<1x64xbf16, #tpu.memory_space<vmem>>, vector<1x64xbf16>
    %27 = arith.extf %26 : vector<1x64xbf16> to vector<1x64xf32>
    %28 = vector.broadcast %27 : vector<1x64xf32> to vector<18x64xf32>
    %29 = arith.mulf %25, %28 : vector<18x64xf32>
    %c0_14 = arith.constant 0 : index
    %c0_15 = arith.constant 0 : index
    %30 = vector.load %arg6[%c0_14, %c0_15] : memref<1x64xbf16, #tpu.memory_space<vmem>>, vector<1x64xbf16>
    %31 = arith.extf %30 : vector<1x64xbf16> to vector<1x64xf32>
    %32 = vector.broadcast %31 : vector<1x64xf32> to vector<18x64xf32>
    %33 = arith.addf %29, %32 : vector<18x64xf32>
    %34 = arith.truncf %33 : vector<18x64xf32> to vector<18x64xbf16>
    %c0_16 = arith.constant 0 : index
    %c0_17 = arith.constant 0 : index
    %35 = vector.load %arg7[%c0_16, %c0_17] : memref<18x64xbf16, #tpu.memory_space<vmem>>, vector<18x64xbf16>
    tpu.vector_store %arg7[%c0_16, %c0_17], %34 {strides = array<i32>} : memref<18x64xbf16, #tpu.memory_space<vmem>>, vector<18x64xbf16>,
    return
  }
  func.func @transform_0(%arg0: i32) -> (i32, i32) {
    %c0_i32 = arith.constant 0 : i32
    %c0_i32_0 = arith.constant 0 : i32
    return %arg0, %c0_i32 : i32, i32
  }
  func.func @transform_1(%arg0: i32) -> (i32, i32) {
    %c0_i32 = arith.constant 0 : i32
    %c0_i32_0 = arith.constant 0 : i32
    %c0_i32_1 = arith.constant 0 : i32
    return %c0_i32, %c0_i32_0 : i32, i32
  }
  func.func @transform_2(%arg0: i32) -> (i32, i32) {
    %c0_i32 = arith.constant 0 : i32
    %c0_i32_0 = arith.constant 0 : i32
    %c0_i32_1 = arith.constant 0 : i32
    return %c0_i32, %c0_i32_0 : i32, i32
  }
  func.func @transform_3(%arg0: i32) -> (i32, i32) {
    %c0_i32 = arith.constant 0 : i32
    %c0_i32_0 = arith.constant 0 : i32
    return %arg0, %c0_i32 : i32, i32
  }
  func.func @transform_4(%arg0: i32) -> (i32, i32) {
    %c0_i32 = arith.constant 0 : i32
    %c0_i32_0 = arith.constant 0 : i32
    %c0_i32_1 = arith.constant 0 : i32
    return %c0_i32, %c0_i32_0 : i32, i32
  }
  func.func @transform_5(%arg0: i32) -> (i32, i32) {
    %c0_i32 = arith.constant 0 : i32
    %c0_i32_0 = arith.constant 0 : i32
    %c0_i32_1 = arith.constant 0 : i32
    return %c0_i32, %c0_i32_0 : i32, i32
  }
  func.func @transform_6(%arg0: i32) -> (i32, i32) {
    %c0_i32 = arith.constant 0 : i32
    %c0_i32_0 = arith.constant 0 : i32
    return %arg0, %c0_i32 : i32, i32
  }
}

module attributes {stable_mosaic.version = 11 : i64} {
  func.func @_attn_kernel(%arg0: i32, %arg1: memref<1x9x64xbf16, #tpu.memory_space<vmem>>, %arg2: memref<1x8x64xbf16, #tpu.memory_space<vmem>>, %arg3: memref<1x8x64xbf16, #tpu.memory_space<vmem>>, %arg4: memref<1x9x64xbf16, #tpu.memory_space<vmem>>) attributes {dimension_semantics = [#tpu.dimension_semantics<parallel>], iteration_bounds = array<i64: 2>, scalar_prefetch = 0 : i64, scratch_operands = 0 : i64, tpu.core_type = #tpu.core_type<tc>, window_params = [{transform_indices = @transform_0, window_bounds = array<i64: 1, 9, 64>}, {transform_indices = @transform_1, window_bounds = array<i64: 1, 8, 64>}, {transform_indices = @transform_2, window_bounds = array<i64: 1, 8, 64>}, {transform_indices = @transform_3, window_bounds = array<i64: 1, 9, 64>}]} {
    %c0 = arith.constant 0 : index
    %c0_0 = arith.constant 0 : index
    %c0_1 = arith.constant 0 : index
    %0 = vector.load %arg1[%c0, %c0_0, %c0_1] : memref<1x9x64xbf16, #tpu.memory_space<vmem>>, vector<1x9x64xbf16>
    %1 = vector.shape_cast %0 : vector<1x9x64xbf16> to vector<9x64xbf16>
    %c0_2 = arith.constant 0 : index
    %c0_3 = arith.constant 0 : index
    %c0_4 = arith.constant 0 : index
    %2 = vector.load %arg2[%c0_2, %c0_3, %c0_4] : memref<1x8x64xbf16, #tpu.memory_space<vmem>>, vector<1x8x64xbf16>
    %3 = vector.shape_cast %2 : vector<1x8x64xbf16> to vector<8x64xbf16>
    %c0_5 = arith.constant 0 : index
    %c0_6 = arith.constant 0 : index
    %c0_7 = arith.constant 0 : index
    %4 = vector.load %arg3[%c0_5, %c0_6, %c0_7] : memref<1x8x64xbf16, #tpu.memory_space<vmem>>, vector<1x8x64xbf16>
    %5 = vector.shape_cast %4 : vector<1x8x64xbf16> to vector<8x64xbf16>
    %cst = arith.constant dense<0.000000e+00> : vector<9x8xf32>
    %6 = tpu.matmul %1, %3, %cst {dimension_numbers = #tpu.dot_dimension_numbers<[1], [1], [0], [0], [0, 0, 1, 0], [], []>} : vector<9x64xbf16>, vector<8x64xbf16>, vector<9x8xf32> -> vector<9x8xf32>
    %cst_8 = arith.constant 1.250000e-01 : f32
    %7 = vector.broadcast %cst_8 : f32 to vector<9x8xf32>
    %8 = arith.mulf %6, %7 : vector<9x8xf32>
    %cst_9 = arith.constant dense<0xFF800000> : vector<9xf32>
    %9 = vector.multi_reduction <maximumf>, %8, %cst_9 [1] : vector<9x8xf32> to vector<9xf32>
    %10 = vector.shape_cast %9 : vector<9xf32> to vector<9x1xf32>
    %11 = vector.broadcast %10 : vector<9x1xf32> to vector<9x8xf32>
    %12 = arith.subf %8, %11 : vector<9x8xf32>
    %13 = math.exp %12 : vector<9x8xf32>
    %cst_10 = arith.constant dense<0.000000e+00> : vector<9xf32>
    %14 = vector.multi_reduction <add>, %13, %cst_10 [1] : vector<9x8xf32> to vector<9xf32>
    %15 = vector.shape_cast %14 : vector<9xf32> to vector<9x1xf32>
    %16 = tpu.reciprocal %15 {approx = true} : vector<9x1xf32> -> vector<9x1xf32>
    %17 = vector.broadcast %16 : vector<9x1xf32> to vector<9x8xf32>
    %18 = arith.mulf %13, %17 : vector<9x8xf32>
    %19 = arith.truncf %18 : vector<9x8xf32> to vector<9x8xbf16>
    %cst_11 = arith.constant dense<0.000000e+00> : vector<9x64xf32>
    %20 = tpu.matmul %19, %5, %cst_11 {dimension_numbers = #tpu.dot_dimension_numbers<[1], [0], [0], [1], [0, 0, 1, 1], [], []>} : vector<9x8xbf16>, vector<8x64xbf16>, vector<9x64xf32> -> vector<9x64xf32>
    %21 = arith.truncf %20 : vector<9x64xf32> to vector<9x64xbf16>
    %c0_12 = arith.constant 0 : index
    %c0_13 = arith.constant 0 : index
    %c0_14 = arith.constant 0 : index
    %22 = vector.load %arg4[%c0_12, %c0_13, %c0_14] : memref<1x9x64xbf16, #tpu.memory_space<vmem>>, vector<1x9x64xbf16>
    %23 = vector.shape_cast %22 : vector<1x9x64xbf16> to vector<9x64xbf16>
    %24 = vector.shape_cast %21 : vector<9x64xbf16> to vector<1x9x64xbf16>
    tpu.vector_store %arg4[%c0_12, %c0_13, %c0_14], %24 {strides = array<i32>} : memref<1x9x64xbf16, #tpu.memory_space<vmem>>, vector<1x9x64xbf16>,
    return
  }
  func.func @transform_0(%arg0: i32) -> (i32, i32, i32) {
    %c0_i32 = arith.constant 0 : i32
    %c0_i32_0 = arith.constant 0 : i32
    %c0_i32_1 = arith.constant 0 : i32
    return %arg0, %c0_i32, %c0_i32_0 : i32, i32, i32
  }
  func.func @transform_1(%arg0: i32) -> (i32, i32, i32) {
    %c0_i32 = arith.constant 0 : i32
    %c0_i32_0 = arith.constant 0 : i32
    %c0_i32_1 = arith.constant 0 : i32
    return %arg0, %c0_i32, %c0_i32_0 : i32, i32, i32
  }
  func.func @transform_2(%arg0: i32) -> (i32, i32, i32) {
    %c0_i32 = arith.constant 0 : i32
    %c0_i32_0 = arith.constant 0 : i32
    %c0_i32_1 = arith.constant 0 : i32
    return %arg0, %c0_i32, %c0_i32_0 : i32, i32, i32
  }
  func.func @transform_3(%arg0: i32) -> (i32, i32, i32) {
    %c0_i32 = arith.constant 0 : i32
    %c0_i32_0 = arith.constant 0 : i32
    %c0_i32_1 = arith.constant 0 : i32
    return %arg0, %c0_i32, %c0_i32_0 : i32, i32, i32
  }
}

module attributes {stable_mosaic.version = 11 : i64} {
  func.func @_linear_kernel(%arg0: i32, %arg1: memref<16x64xbf16, #tpu.memory_space<vmem>>, %arg2: memref<64x128xbf16, #tpu.memory_space<vmem>>, %arg3: memref<1x128xbf16, #tpu.memory_space<vmem>>, %arg4: memref<16x128xbf16, #tpu.memory_space<vmem>>) attributes {dimension_semantics = [#tpu.dimension_semantics<parallel>], iteration_bounds = array<i64: 1>, scalar_prefetch = 0 : i64, scratch_operands = 0 : i64, tpu.core_type = #tpu.core_type<tc>, window_params = [{transform_indices = @transform_0, window_bounds = array<i64: 16, 64>}, {pipeline_mode = #tpu.pipeline_mode<synchronous>, transform_indices = @transform_1, window_bounds = array<i64: 64, 128>}, {pipeline_mode = #tpu.pipeline_mode<synchronous>, transform_indices = @transform_2, window_bounds = array<i64: 1, 128>}, {transform_indices = @transform_3, window_bounds = array<i64: 16, 128>}]} {
    %c0 = arith.constant 0 : index
    %c0_0 = arith.constant 0 : index
    %0 = vector.load %arg1[%c0, %c0_0] : memref<16x64xbf16, #tpu.memory_space<vmem>>, vector<16x64xbf16>
    %c0_1 = arith.constant 0 : index
    %c0_2 = arith.constant 0 : index
    %1 = vector.load %arg2[%c0_1, %c0_2] : memref<64x128xbf16, #tpu.memory_space<vmem>>, vector<64x128xbf16>
    %cst = arith.constant dense<0.000000e+00> : vector<16x128xf32>
    %2 = tpu.matmul %0, %1, %cst {dimension_numbers = #tpu.dot_dimension_numbers<[1], [0], [0], [1], [0, 0, 1, 1], [], []>} : vector<16x64xbf16>, vector<64x128xbf16>, vector<16x128xf32> -> vector<16x128xf32>
    %c0_3 = arith.constant 0 : index
    %c0_4 = arith.constant 0 : index
    %3 = vector.load %arg3[%c0_3, %c0_4] : memref<1x128xbf16, #tpu.memory_space<vmem>>, vector<1x128xbf16>
    %4 = arith.extf %3 : vector<1x128xbf16> to vector<1x128xf32>
    %5 = vector.broadcast %4 : vector<1x128xf32> to vector<16x128xf32>
    %6 = arith.addf %2, %5 : vector<16x128xf32>
    %7 = arith.truncf %6 : vector<16x128xf32> to vector<16x128xbf16>
    %c0_5 = arith.constant 0 : index
    %c0_6 = arith.constant 0 : index
    %8 = vector.load %arg4[%c0_5, %c0_6] : memref<16x128xbf16, #tpu.memory_space<vmem>>, vector<16x128xbf16>
    tpu.vector_store %arg4[%c0_5, %c0_6], %7 {strides = array<i32>} : memref<16x128xbf16, #tpu.memory_space<vmem>>, vector<16x128xbf16>,
    return
  }
  func.func @transform_0(%arg0: i32) -> (i32, i32) {
    %c0_i32 = arith.constant 0 : i32
    %c0_i32_0 = arith.constant 0 : i32
    return %arg0, %c0_i32 : i32, i32
  }
  func.func @transform_1(%arg0: i32) -> (i32, i32) {
    %c0_i32 = arith.constant 0 : i32
    %c0_i32_0 = arith.constant 0 : i32
    %c0_i32_1 = arith.constant 0 : i32
    return %c0_i32, %c0_i32_0 : i32, i32
  }
  func.func @transform_2(%arg0: i32) -> (i32, i32) {
    %c0_i32 = arith.constant 0 : i32
    %c0_i32_0 = arith.constant 0 : i32
    %c0_i32_1 = arith.constant 0 : i32
    return %c0_i32, %c0_i32_0 : i32, i32
  }
  func.func @transform_3(%arg0: i32) -> (i32, i32) {
    %c0_i32 = arith.constant 0 : i32
    %c0_i32_0 = arith.constant 0 : i32
    return %arg0, %c0_i32 : i32, i32
  }
}

module attributes {stable_mosaic.version = 11 : i64} {
  func.func @_ffn_res_ln_kernel(%arg0: i32, %arg1: memref<18x64xbf16, #tpu.memory_space<vmem>>, %arg2: memref<64x256xbf16, #tpu.memory_space<vmem>>, %arg3: memref<1x256xbf16, #tpu.memory_space<vmem>>, %arg4: memref<256x64xbf16, #tpu.memory_space<vmem>>, %arg5: memref<1x64xbf16, #tpu.memory_space<vmem>>, %arg6: memref<1x64xbf16, #tpu.memory_space<vmem>>, %arg7: memref<1x64xbf16, #tpu.memory_space<vmem>>, %arg8: memref<18x64xbf16, #tpu.memory_space<vmem>>) attributes {dimension_semantics = [#tpu.dimension_semantics<parallel>], iteration_bounds = array<i64: 1>, scalar_prefetch = 0 : i64, scratch_operands = 0 : i64, tpu.core_type = #tpu.core_type<tc>, window_params = [{transform_indices = @transform_0, window_bounds = array<i64: 18, 64>}, {pipeline_mode = #tpu.pipeline_mode<synchronous>, transform_indices = @transform_1, window_bounds = array<i64: 64, 256>}, {pipeline_mode = #tpu.pipeline_mode<synchronous>, transform_indices = @transform_2, window_bounds = array<i64: 1, 256>}, {pipeline_mode = #tpu.pipeline_mode<synchronous>, transform_indices = @transform_3, window_bounds = array<i64: 256, 64>}, {pipeline_mode = #tpu.pipeline_mode<synchronous>, transform_indices = @transform_4, window_bounds = array<i64: 1, 64>}, {pipeline_mode = #tpu.pipeline_mode<synchronous>, transform_indices = @transform_5, window_bounds = array<i64: 1, 64>}, {pipeline_mode = #tpu.pipeline_mode<synchronous>, transform_indices = @transform_6, window_bounds = array<i64: 1, 64>}, {transform_indices = @transform_7, window_bounds = array<i64: 18, 64>}]} {
    %c0 = arith.constant 0 : index
    %c0_0 = arith.constant 0 : index
    %0 = vector.load %arg1[%c0, %c0_0] : memref<18x64xbf16, #tpu.memory_space<vmem>>, vector<18x64xbf16>
    %c0_1 = arith.constant 0 : index
    %c0_2 = arith.constant 0 : index
    %1 = vector.load %arg2[%c0_1, %c0_2] : memref<64x256xbf16, #tpu.memory_space<vmem>>, vector<64x256xbf16>
    %cst = arith.constant dense<0.000000e+00> : vector<18x256xf32>
    %2 = tpu.matmul %0, %1, %cst {dimension_numbers = #tpu.dot_dimension_numbers<[1], [0], [0], [1], [0, 0, 1, 1], [], []>} : vector<18x64xbf16>, vector<64x256xbf16>, vector<18x256xf32> -> vector<18x256xf32>
    %c0_3 = arith.constant 0 : index
    %c0_4 = arith.constant 0 : index
    %3 = vector.load %arg3[%c0_3, %c0_4] : memref<1x256xbf16, #tpu.memory_space<vmem>>, vector<1x256xbf16>
    %4 = arith.extf %3 : vector<1x256xbf16> to vector<1x256xf32>
    %5 = vector.broadcast %4 : vector<1x256xf32> to vector<18x256xf32>
    %6 = arith.addf %2, %5 : vector<18x256xf32>
    %cst_5 = arith.constant 0.000000e+00 : f32
    %7 = vector.broadcast %cst_5 : f32 to vector<18x256xf32>
    %8 = arith.maximumf %6, %7 : vector<18x256xf32>
    %9 = arith.truncf %8 : vector<18x256xf32> to vector<18x256xbf16>
    %c0_6 = arith.constant 0 : index
    %c0_7 = arith.constant 0 : index
    %10 = vector.load %arg4[%c0_6, %c0_7] : memref<256x64xbf16, #tpu.memory_space<vmem>>, vector<256x64xbf16>
    %cst_8 = arith.constant dense<0.000000e+00> : vector<18x64xf32>
    %11 = tpu.matmul %9, %10, %cst_8 {dimension_numbers = #tpu.dot_dimension_numbers<[1], [0], [0], [1], [0, 0, 1, 1], [], []>} : vector<18x256xbf16>, vector<256x64xbf16>, vector<18x64xf32> -> vector<18x64xf32>
    %c0_9 = arith.constant 0 : index
    %c0_10 = arith.constant 0 : index
    %12 = vector.load %arg5[%c0_9, %c0_10] : memref<1x64xbf16, #tpu.memory_space<vmem>>, vector<1x64xbf16>
    %13 = arith.extf %12 : vector<1x64xbf16> to vector<1x64xf32>
    %14 = vector.broadcast %13 : vector<1x64xf32> to vector<18x64xf32>
    %15 = arith.addf %11, %14 : vector<18x64xf32>
    %16 = arith.extf %0 : vector<18x64xbf16> to vector<18x64xf32>
    %17 = arith.addf %15, %16 : vector<18x64xf32>
    %cst_11 = arith.constant dense<0.000000e+00> : vector<18xf32>
    %18 = vector.multi_reduction <add>, %17, %cst_11 [1] : vector<18x64xf32> to vector<18xf32>
    %19 = vector.shape_cast %18 : vector<18xf32> to vector<18x1xf32>
    %cst_12 = arith.constant 6.400000e+01 : f32
    %20 = vector.broadcast %cst_12 : f32 to vector<18x1xf32>
    %21 = arith.divf %19, %20 : vector<18x1xf32>
    %22 = vector.broadcast %21 : vector<18x1xf32> to vector<18x64xf32>
    %23 = arith.subf %17, %22 : vector<18x64xf32>
    %24 = arith.mulf %23, %23 : vector<18x64xf32>
    %cst_13 = arith.constant dense<0.000000e+00> : vector<18xf32>
    %25 = vector.multi_reduction <add>, %24, %cst_13 [1] : vector<18x64xf32> to vector<18xf32>
    %26 = vector.shape_cast %25 : vector<18xf32> to vector<18x1xf32>
    %cst_14 = arith.constant 6.400000e+01 : f32
    %27 = vector.broadcast %cst_14 : f32 to vector<18x1xf32>
    %28 = arith.divf %26, %27 : vector<18x1xf32>
    %cst_15 = arith.constant 9.99999974E-6 : f32
    %29 = vector.broadcast %cst_15 : f32 to vector<18x1xf32>
    %30 = arith.addf %28, %29 : vector<18x1xf32>
    %31 = math.rsqrt %30 : vector<18x1xf32>
    %32 = vector.broadcast %31 : vector<18x1xf32> to vector<18x64xf32>
    %33 = arith.mulf %23, %32 : vector<18x64xf32>
    %c0_16 = arith.constant 0 : index
    %c0_17 = arith.constant 0 : index
    %34 = vector.load %arg6[%c0_16, %c0_17] : memref<1x64xbf16, #tpu.memory_space<vmem>>, vector<1x64xbf16>
    %35 = arith.extf %34 : vector<1x64xbf16> to vector<1x64xf32>
    %36 = vector.broadcast %35 : vector<1x64xf32> to vector<18x64xf32>
    %37 = arith.mulf %33, %36 : vector<18x64xf32>
    %c0_18 = arith.constant 0 : index
    %c0_19 = arith.constant 0 : index
    %38 = vector.load %arg7[%c0_18, %c0_19] : memref<1x64xbf16, #tpu.memory_space<vmem>>, vector<1x64xbf16>
    %39 = arith.extf %38 : vector<1x64xbf16> to vector<1x64xf32>
    %40 = vector.broadcast %39 : vector<1x64xf32> to vector<18x64xf32>
    %41 = arith.addf %37, %40 : vector<18x64xf32>
    %42 = arith.truncf %41 : vector<18x64xf32> to vector<18x64xbf16>
    %c0_20 = arith.constant 0 : index
    %c0_21 = arith.constant 0 : index
    %43 = vector.load %arg8[%c0_20, %c0_21] : memref<18x64xbf16, #tpu.memory_space<vmem>>, vector<18x64xbf16>
    tpu.vector_store %arg8[%c0_20, %c0_21], %42 {strides = array<i32>} : memref<18x64xbf16, #tpu.memory_space<vmem>>, vector<18x64xbf16>,
    return
  }
  func.func @transform_0(%arg0: i32) -> (i32, i32) {
    %c0_i32 = arith.constant 0 : i32
    %c0_i32_0 = arith.constant 0 : i32
    return %arg0, %c0_i32 : i32, i32
  }
  func.func @transform_1(%arg0: i32) -> (i32, i32) {
    %c0_i32 = arith.constant 0 : i32
    %c0_i32_0 = arith.constant 0 : i32
    %c0_i32_1 = arith.constant 0 : i32
    return %c0_i32, %c0_i32_0 : i32, i32
  }
  func.func @transform_2(%arg0: i32) -> (i32, i32) {
    %c0_i32 = arith.constant 0 : i32
    %c0_i32_0 = arith.constant 0 : i32
    %c0_i32_1 = arith.constant 0 : i32
    return %c0_i32, %c0_i32_0 : i32, i32
  }
  func.func @transform_3(%arg0: i32) -> (i32, i32) {
    %c0_i32 = arith.constant 0 : i32
    %c0_i32_0 = arith.constant 0 : i32
    %c0_i32_1 = arith.constant 0 : i32
    return %c0_i32, %c0_i32_0 : i32, i32
  }
  func.func @transform_4(%arg0: i32) -> (i32, i32) {
    %c0_i32 = arith.constant 0 : i32
    %c0_i32_0 = arith.constant 0 : i32
    %c0_i32_1 = arith.constant 0 : i32
    return %c0_i32, %c0_i32_0 : i32, i32
  }
  func.func @transform_5(%arg0: i32) -> (i32, i32) {
    %c0_i32 = arith.constant 0 : i32
    %c0_i32_0 = arith.constant 0 : i32
    %c0_i32_1 = arith.constant 0 : i32
    return %c0_i32, %c0_i32_0 : i32, i32
  }
  func.func @transform_6(%arg0: i32) -> (i32, i32) {
    %c0_i32 = arith.constant 0 : i32
    %c0_i32_0 = arith.constant 0 : i32
    %c0_i32_1 = arith.constant 0 : i32
    return %c0_i32, %c0_i32_0 : i32, i32
  }
  func.func @transform_7(%arg0: i32) -> (i32, i32) {
    %c0_i32 = arith.constant 0 : i32
    %c0_i32_0 = arith.constant 0 : i32
    return %arg0, %c0_i32 : i32, i32
  }
}

module attributes {stable_mosaic.version = 11 : i64} {
  func.func @_mlp3_groupln_kernel(%arg0: i32, %arg1: memref<18x320xbf16, #tpu.memory_space<vmem>>, %arg2: memref<320x128xbf16, #tpu.memory_space<vmem>>, %arg3: memref<1x128xbf16, #tpu.memory_space<vmem>>, %arg4: memref<128x128xbf16, #tpu.memory_space<vmem>>, %arg5: memref<1x128xbf16, #tpu.memory_space<vmem>>, %arg6: memref<128x256xbf16, #tpu.memory_space<vmem>>, %arg7: memref<1x256xbf16, #tpu.memory_space<vmem>>, %arg8: memref<256x4xf32, #tpu.memory_space<vmem>>, %arg9: memref<4x256xf32, #tpu.memory_space<vmem>>, %arg10: memref<1x256xbf16, #tpu.memory_space<vmem>>, %arg11: memref<1x256xbf16, #tpu.memory_space<vmem>>, %arg12: memref<18x256xbf16, #tpu.memory_space<vmem>>) attributes {dimension_semantics = [#tpu.dimension_semantics<parallel>], iteration_bounds = array<i64: 1>, scalar_prefetch = 0 : i64, scratch_operands = 0 : i64, tpu.core_type = #tpu.core_type<tc>, window_params = [{transform_indices = @transform_0, window_bounds = array<i64: 18, 320>}, {pipeline_mode = #tpu.pipeline_mode<synchronous>, transform_indices = @transform_1, window_bounds = array<i64: 320, 128>}, {pipeline_mode = #tpu.pipeline_mode<synchronous>, transform_indices = @transform_2, window_bounds = array<i64: 1, 128>}, {pipeline_mode = #tpu.pipeline_mode<synchronous>, transform_indices = @transform_3, window_bounds = array<i64: 128, 128>}, {pipeline_mode = #tpu.pipeline_mode<synchronous>, transform_indices = @transform_4, window_bounds = array<i64: 1, 128>}, {pipeline_mode = #tpu.pipeline_mode<synchronous>, transform_indices = @transform_5, window_bounds = array<i64: 128, 256>}, {pipeline_mode = #tpu.pipeline_mode<synchronous>, transform_indices = @transform_6, window_bounds = array<i64: 1, 256>}, {pipeline_mode = #tpu.pipeline_mode<synchronous>, transform_indices = @transform_7, window_bounds = array<i64: 256, 4>}, {pipeline_mode = #tpu.pipeline_mode<synchronous>, transform_indices = @transform_8, window_bounds = array<i64: 4, 256>}, {pipeline_mode = #tpu.pipeline_mode<synchronous>, transform_indices = @transform_9, window_bounds = array<i64: 1, 256>}, {pipeline_mode = #tpu.pipeline_mode<synchronous>, transform_indices = @transform_10, window_bounds = array<i64: 1, 256>}, {transform_indices = @transform_11, window_bounds = array<i64: 18, 256>}]} {
    %c0 = arith.constant 0 : index
    %c0_0 = arith.constant 0 : index
    %0 = vector.load %arg1[%c0, %c0_0] : memref<18x320xbf16, #tpu.memory_space<vmem>>, vector<18x320xbf16>
    %c0_1 = arith.constant 0 : index
    %c0_2 = arith.constant 0 : index
    %1 = vector.load %arg2[%c0_1, %c0_2] : memref<320x128xbf16, #tpu.memory_space<vmem>>, vector<320x128xbf16>
    %cst = arith.constant dense<0.000000e+00> : vector<18x128xf32>
    %2 = tpu.matmul %0, %1, %cst {dimension_numbers = #tpu.dot_dimension_numbers<[1], [0], [0], [1], [0, 0, 1, 1], [], []>} : vector<18x320xbf16>, vector<320x128xbf16>, vector<18x128xf32> -> vector<18x128xf32>
    %c0_3 = arith.constant 0 : index
    %c0_4 = arith.constant 0 : index
    %3 = vector.load %arg3[%c0_3, %c0_4] : memref<1x128xbf16, #tpu.memory_space<vmem>>, vector<1x128xbf16>
    %4 = arith.extf %3 : vector<1x128xbf16> to vector<1x128xf32>
    %5 = vector.broadcast %4 : vector<1x128xf32> to vector<18x128xf32>
    %6 = arith.addf %2, %5 : vector<18x128xf32>
    %cst_5 = arith.constant 0.000000e+00 : f32
    %7 = vector.broadcast %cst_5 : f32 to vector<18x128xf32>
    %8 = arith.maximumf %6, %7 : vector<18x128xf32>
    %9 = arith.truncf %8 : vector<18x128xf32> to vector<18x128xbf16>
    %c0_6 = arith.constant 0 : index
    %c0_7 = arith.constant 0 : index
    %10 = vector.load %arg4[%c0_6, %c0_7] : memref<128x128xbf16, #tpu.memory_space<vmem>>, vector<128x128xbf16>
    %cst_8 = arith.constant dense<0.000000e+00> : vector<18x128xf32>
    %11 = tpu.matmul %9, %10, %cst_8 {dimension_numbers = #tpu.dot_dimension_numbers<[1], [0], [0], [1], [0, 0, 1, 1], [], []>} : vector<18x128xbf16>, vector<128x128xbf16>, vector<18x128xf32> -> vector<18x128xf32>
    %c0_9 = arith.constant 0 : index
    %c0_10 = arith.constant 0 : index
    %12 = vector.load %arg5[%c0_9, %c0_10] : memref<1x128xbf16, #tpu.memory_space<vmem>>, vector<1x128xbf16>
    %13 = arith.extf %12 : vector<1x128xbf16> to vector<1x128xf32>
    %14 = vector.broadcast %13 : vector<1x128xf32> to vector<18x128xf32>
    %15 = arith.addf %11, %14 : vector<18x128xf32>
    %cst_11 = arith.constant 0.000000e+00 : f32
    %16 = vector.broadcast %cst_11 : f32 to vector<18x128xf32>
    %17 = arith.maximumf %15, %16 : vector<18x128xf32>
    %18 = arith.truncf %17 : vector<18x128xf32> to vector<18x128xbf16>
    %c0_12 = arith.constant 0 : index
    %c0_13 = arith.constant 0 : index
    %19 = vector.load %arg6[%c0_12, %c0_13] : memref<128x256xbf16, #tpu.memory_space<vmem>>, vector<128x256xbf16>
    %cst_14 = arith.constant dense<0.000000e+00> : vector<18x256xf32>
    %20 = tpu.matmul %18, %19, %cst_14 {dimension_numbers = #tpu.dot_dimension_numbers<[1], [0], [0], [1], [0, 0, 1, 1], [], []>} : vector<18x128xbf16>, vector<128x256xbf16>, vector<18x256xf32> -> vector<18x256xf32>
    %c0_15 = arith.constant 0 : index
    %c0_16 = arith.constant 0 : index
    %21 = vector.load %arg7[%c0_15, %c0_16] : memref<1x256xbf16, #tpu.memory_space<vmem>>, vector<1x256xbf16>
    %22 = arith.extf %21 : vector<1x256xbf16> to vector<1x256xf32>
    %23 = vector.broadcast %22 : vector<1x256xf32> to vector<18x256xf32>
    %24 = arith.addf %20, %23 : vector<18x256xf32>
    %c0_17 = arith.constant 0 : index
    %c0_18 = arith.constant 0 : index
    %25 = vector.load %arg8[%c0_17, %c0_18] : memref<256x4xf32, #tpu.memory_space<vmem>>, vector<256x4xf32>
    %c0_19 = arith.constant 0 : index
    %c0_20 = arith.constant 0 : index
    %26 = vector.load %arg9[%c0_19, %c0_20] : memref<4x256xf32, #tpu.memory_space<vmem>>, vector<4x256xf32>
    %cst_21 = arith.constant dense<0.000000e+00> : vector<18x4xf32>
    %27 = tpu.matmul %24, %25, %cst_21 {dimension_numbers = #tpu.dot_dimension_numbers<[1], [0], [0], [1], [0, 0, 1, 1], [], []>} : vector<18x256xf32>, vector<256x4xf32>, vector<18x4xf32> -> vector<18x4xf32>
    %cst_22 = arith.constant 1.562500e-02 : f32
    %28 = vector.broadcast %cst_22 : f32 to vector<18x4xf32>
    %29 = arith.mulf %27, %28 : vector<18x4xf32>
    %cst_23 = arith.constant dense<0.000000e+00> : vector<18x256xf32>
    %30 = tpu.matmul %29, %26, %cst_23 {dimension_numbers = #tpu.dot_dimension_numbers<[1], [0], [0], [1], [0, 0, 1, 1], [], []>} : vector<18x4xf32>, vector<4x256xf32>, vector<18x256xf32> -> vector<18x256xf32>
    %31 = arith.subf %24, %30 : vector<18x256xf32>
    %32 = arith.mulf %31, %31 : vector<18x256xf32>
    %cst_24 = arith.constant dense<0.000000e+00> : vector<18x4xf32>
    %33 = tpu.matmul %32, %25, %cst_24 {dimension_numbers = #tpu.dot_dimension_numbers<[1], [0], [0], [1], [0, 0, 1, 1], [], []>} : vector<18x256xf32>, vector<256x4xf32>, vector<18x4xf32> -> vector<18x4xf32>
    %cst_25 = arith.constant 1.562500e-02 : f32
    %34 = vector.broadcast %cst_25 : f32 to vector<18x4xf32>
    %35 = arith.mulf %33, %34 : vector<18x4xf32>
    %cst_26 = arith.constant dense<0.000000e+00> : vector<18x256xf32>
    %36 = tpu.matmul %35, %26, %cst_26 {dimension_numbers = #tpu.dot_dimension_numbers<[1], [0], [0], [1], [0, 0, 1, 1], [], []>} : vector<18x4xf32>, vector<4x256xf32>, vector<18x256xf32> -> vector<18x256xf32>
    %cst_27 = arith.constant 9.99999974E-6 : f32
    %37 = vector.broadcast %cst_27 : f32 to vector<18x256xf32>
    %38 = arith.addf %36, %37 : vector<18x256xf32>
    %39 = math.rsqrt %38 : vector<18x256xf32>
    %40 = arith.mulf %31, %39 : vector<18x256xf32>
    %c0_28 = arith.constant 0 : index
    %c0_29 = arith.constant 0 : index
    %41 = vector.load %arg10[%c0_28, %c0_29] : memref<1x256xbf16, #tpu.memory_space<vmem>>, vector<1x256xbf16>
    %42 = arith.extf %41 : vector<1x256xbf16> to vector<1x256xf32>
    %43 = vector.broadcast %42 : vector<1x256xf32> to vector<18x256xf32>
    %44 = arith.mulf %40, %43 : vector<18x256xf32>
    %c0_30 = arith.constant 0 : index
    %c0_31 = arith.constant 0 : index
    %45 = vector.load %arg11[%c0_30, %c0_31] : memref<1x256xbf16, #tpu.memory_space<vmem>>, vector<1x256xbf16>
    %46 = arith.extf %45 : vector<1x256xbf16> to vector<1x256xf32>
    %47 = vector.broadcast %46 : vector<1x256xf32> to vector<18x256xf32>
    %48 = arith.addf %44, %47 : vector<18x256xf32>
    %49 = arith.truncf %48 : vector<18x256xf32> to vector<18x256xbf16>
    %c0_32 = arith.constant 0 : index
    %c0_33 = arith.constant 0 : index
    %50 = vector.load %arg12[%c0_32, %c0_33] : memref<18x256xbf16, #tpu.memory_space<vmem>>, vector<18x256xbf16>
    tpu.vector_store %arg12[%c0_32, %c0_33], %49 {strides = array<i32>} : memref<18x256xbf16, #tpu.memory_space<vmem>>, vector<18x256xbf16>,
    return
  }
  func.func @transform_0(%arg0: i32) -> (i32, i32) {
    %c0_i32 = arith.constant 0 : i32
    %c0_i32_0 = arith.constant 0 : i32
    return %arg0, %c0_i32 : i32, i32
  }
  func.func @transform_1(%arg0: i32) -> (i32, i32) {
    %c0_i32 = arith.constant 0 : i32
    %c0_i32_0 = arith.constant 0 : i32
    %c0_i32_1 = arith.constant 0 : i32
    return %c0_i32, %c0_i32_0 : i32, i32
  }
  func.func @transform_2(%arg0: i32) -> (i32, i32) {
    %c0_i32 = arith.constant 0 : i32
    %c0_i32_0 = arith.constant 0 : i32
    %c0_i32_1 = arith.constant 0 : i32
    return %c0_i32, %c0_i32_0 : i32, i32
  }
  func.func @transform_3(%arg0: i32) -> (i32, i32) {
    %c0_i32 = arith.constant 0 : i32
    %c0_i32_0 = arith.constant 0 : i32
    %c0_i32_1 = arith.constant 0 : i32
    return %c0_i32, %c0_i32_0 : i32, i32
  }
  func.func @transform_4(%arg0: i32) -> (i32, i32) {
    %c0_i32 = arith.constant 0 : i32
    %c0_i32_0 = arith.constant 0 : i32
    %c0_i32_1 = arith.constant 0 : i32
    return %c0_i32, %c0_i32_0 : i32, i32
  }
  func.func @transform_5(%arg0: i32) -> (i32, i32) {
    %c0_i32 = arith.constant 0 : i32
    %c0_i32_0 = arith.constant 0 : i32
    %c0_i32_1 = arith.constant 0 : i32
    return %c0_i32, %c0_i32_0 : i32, i32
  }
  func.func @transform_6(%arg0: i32) -> (i32, i32) {
    %c0_i32 = arith.constant 0 : i32
    %c0_i32_0 = arith.constant 0 : i32
    %c0_i32_1 = arith.constant 0 : i32
    return %c0_i32, %c0_i32_0 : i32, i32
  }
  func.func @transform_7(%arg0: i32) -> (i32, i32) {
    %c0_i32 = arith.constant 0 : i32
    %c0_i32_0 = arith.constant 0 : i32
    %c0_i32_1 = arith.constant 0 : i32
    return %c0_i32, %c0_i32_0 : i32, i32
  }
  func.func @transform_8(%arg0: i32) -> (i32, i32) {
    %c0_i32 = arith.constant 0 : i32
    %c0_i32_0 = arith.constant 0 : i32
    %c0_i32_1 = arith.constant 0 : i32
    return %c0_i32, %c0_i32_0 : i32, i32
  }
  func.func @transform_9(%arg0: i32) -> (i32, i32) {
    %c0_i32 = arith.constant 0 : i32
    %c0_i32_0 = arith.constant 0 : i32
    %c0_i32_1 = arith.constant 0 : i32
    return %c0_i32, %c0_i32_0 : i32, i32
  }
  func.func @transform_10(%arg0: i32) -> (i32, i32) {
    %c0_i32 = arith.constant 0 : i32
    %c0_i32_0 = arith.constant 0 : i32
    %c0_i32_1 = arith.constant 0 : i32
    return %c0_i32, %c0_i32_0 : i32, i32
  }
  func.func @transform_11(%arg0: i32) -> (i32, i32) {
    %c0_i32 = arith.constant 0 : i32
    %c0_i32_0 = arith.constant 0 : i32
    return %arg0, %c0_i32 : i32, i32
  }
}

</mosaic_0001>

<llo_original>
// kernel: audio_projection_forward.19
$region0: #{audio_projection_forward.19}
  #allocation0 [shape = 'u32[]', space=smem, size = 0x4, offset = 0x4, fixed_abs, tag = 'smem constant byte address 0x4 - core index']
  #allocation1 [shape = 'u32[144,128]{1,0:T(1,128)}', space=vmem, size = 0x12000, scoped, tag = 'internal scratch']
  %s0 = inlined_call_operand.vmem [shape: bf16[18,64], index: 0, kind: input, shape index: {}]
  %s1 = inlined_call_operand.vmem [shape: bf16[64,64], index: 1, kind: input, shape index: {}]
  %s2 = inlined_call_operand.vmem [shape: bf16[1,64], index: 2, kind: input, shape index: {}]
  %s3 = inlined_call_operand.vmem [shape: bf16[18,64], index: 3, kind: input, shape index: {}]
  %s4 = inlined_call_operand.vmem [shape: bf16[1,64], index: 4, kind: input, shape index: {}]
  %s5 = inlined_call_operand.vmem [shape: bf16[1,64], index: 5, kind: input, shape index: {}]
  %s6 = inlined_call_operand.vmem [shape: bf16[18,64], index: 6, kind: output, shape index: {}]
  %s7 = sld [smem:[#allocation0]]
  $region34: #{audio_projection_forward.19} parent=0
    _
  %s9 = ssub.s32 1, %s7
  %s10 = scalar_select 0, %s9, %s7
  // Predicated region
  $region2: #{audio_projection_forward.19} parent=0 // pred_check
    _
  $region3: #{audio_projection_forward.19} parent=0 // pred_check_branch
    %12 = sbr.rel (0) target = $region5
  $region4: #{audio_projection_forward.19} parent=0 // pred_region
    _
  $region5: #{audio_projection_forward.19} parent=0 // pred_fallthru
    _
  // Predicated region
  $region6: #{audio_projection_forward.19} parent=0 // pred_check
    _
  $region7: #{audio_projection_forward.19} parent=0 // pred_check_branch
    %14 = sbr.rel (0) target = $region9
  $region8: #{audio_projection_forward.19} parent=0 // pred_region
    _
  $region9: #{audio_projection_forward.19} parent=0 // pred_fallthru
    _
  // Predicated region
  $region10: #{audio_projection_forward.19} parent=0 // pred_check
    _
  $region11: #{audio_projection_forward.19} parent=0 // pred_check_branch
    %16 = sbr.rel (0) target = $region13
  $region12: #{audio_projection_forward.19} parent=0 // pred_region
    _
  $region13: #{audio_projection_forward.19} parent=0 // pred_fallthru
    _
  // Predicated region
  $region14: #{audio_projection_forward.19} parent=0 // pred_check
    _
  $region15: #{audio_projection_forward.19} parent=0 // pred_check_branch
    %18 = sbr.rel (0) target = $region17
  $region16: #{audio_projection_forward.19} parent=0 // pred_region
    _
  $region17: #{audio_projection_forward.19} parent=0 // pred_fallthru
    _
  // Predicated region
  $region18: #{audio_projection_forward.19} parent=0 // pred_check
    _
  $region19: #{audio_projection_forward.19} parent=0 // pred_check_branch
    %20 = sbr.rel (0) target = $region21
  $region20: #{audio_projection_forward.19} parent=0 // pred_region
    _
  $region21: #{audio_projection_forward.19} parent=0 // pred_fallthru
    _
  // Predicated region
  $region22: #{audio_projection_forward.19} parent=0 // pred_check
    _
  $region23: #{audio_projection_forward.19} parent=0 // pred_check_branch
    %22 = sbr.rel (0) target = $region25
  $region24: #{audio_projection_forward.19} parent=0 // pred_region
    _
  $region25: #{audio_projection_forward.19} parent=0 // pred_fallthru
    _
  %v24 = vld [vmem:[%s0] sm:$0xf]
  %v25 = vld [vmem:[%s0 + $0x4] sm:$0xf]
  %v26 = vld [vmem:[%s0 + $0x8] sm:$0x1]
  %v27 = vld [vmem:[%s1] sm:$0xf]
  %v28 = vld [vmem:[%s1 + $0x4] sm:$0xf]
  %v29 = vld [vmem:[%s1 + $0x8] sm:$0xf]
  %v30 = vld [vmem:[%s1 + $0xc] sm:$0xf]
  %v31 = vld [vmem:[%s1 + $0x10] sm:$0xf]
  %v32 = vld [vmem:[%s1 + $0x14] sm:$0xf]
  %v33 = vld [vmem:[%s1 + $0x18] sm:$0xf]
  %v34 = vld [vmem:[%s1 + $0x1c] sm:$0xf]
  %v35 = vld [vmem:[%s2] sm:$0x1]
  %v36 = vunpack.c.l.bf16 %v35
  %v37 = vlaneseq
  %v38 = vshrl.u32 %v37, 7
  %v39 = vsub.s32 0, %v38
  %v40 = vrot.slane %v36, %v39
  %v44 = vunpack.c.l.b16 %v24
  %v45 = vunpack.c.l.b16 %v25
  %v46 = vunpack.c.l.b16 %v26
  %v47 = vpack.c.b16 %v45, %v44
  %v48 = vpack.c.b16 %v46, %v46
  %v57 = vunpack.c.l.b16 %v27
  %v58 = vunpack.c.l.b16 %v28
  %v59 = vunpack.c.l.b16 %v29
  %v60 = vunpack.c.l.b16 %v30
  %v61 = vunpack.c.l.b16 %v31
  %v62 = vunpack.c.l.b16 %v32
  %v63 = vunpack.c.l.b16 %v33
  %v64 = vunpack.c.l.b16 %v34
  %v65 = vpack.c.b16 %v58, %v57
  %v66 = vpack.c.b16 %v60, %v59
  %v67 = vpack.c.b16 %v62, %v61
  %v68 = vpack.c.b16 %v64, %v63
  %vm73 = vcmask 523264
  %v75 = vsel %vm73, %v47, 0
  %v78 = vsel %vm73, %v48, 0
  %80 = vmatprep.subr.bf16.mxu0 0
  %81 = vmatpush1.bf16.msra.mxu0 0
  %82 = vmatprep.subr.bf16.mxu0 0
  %83 = vmatpush1.bf16.msra.mxu0 0
  %84 = vmatprep.subr.bf16.mxu0 0
  %85 = vmatpush1.bf16.msra.mxu0 0
  %86 = vmatprep.subr.bf16.mxu0 0
  %87 = vmatpush1.bf16.msra.mxu0 0
  %88 = vmatprep.subr.bf16.mxu0 0
  %89 = vmatpush1.bf16.msra.mxu0 %v68
  %90 = vmatprep.subr.bf16.mxu0 0
  %91 = vmatpush1.bf16.msra.mxu0 %v67
  %92 = vmatprep.subr.bf16.mxu0 0
  %93 = vmatpush1.bf16.msra.mxu0 %v66
  %94 = vmatprep.subr.bf16.mxu0 0
  %95 = vmatpush1.bf16.msra.mxu0 %v65
  %96 = vmatprep.subr.bf16.mxu0 0
  %97 = vmatpush2.bf16.msra.mxu0 0
  %98 = vmatprep.subr.bf16.mxu0 0
  %99 = vmatpush2.bf16.msra.mxu0 0
  %100 = vmatprep.subr.bf16.mxu0 0
  %101 = vmatpush2.bf16.msra.mxu0 0
  %102 = vmatprep.subr.bf16.mxu0 0
  %103 = vmatpush2.bf16.msra.mxu0 0
  %104 = vmatprep.subr.bf16.mxu0 0
  %105 = vmatpush2.bf16.msra.mxu0 0
  %106 = vmatprep.subr.bf16.mxu0 0
  %107 = vmatpush2.bf16.msra.mxu0 0
  %108 = vmatprep.subr.bf16.mxu0 0
  %109 = vmatpush2.bf16.msra.mxu0 0
  %110 = vmatprep.subr.bf16.mxu0 0
  %111 = vmatpush2.bf16.msra.mxu0 0
  %112 = vmatprep.mubr.bf16.mxu0 0
  %113 = vmatmul.mubr.bf16.gmra.mxu0 %v75
  %v114 = vpop.f32.mrf.mxu0
  %v115 = vadd.f32 %v40, %v114
  %v116 = vpop.f32.mrf.mxu0
  %v117 = vpop.f32.mrf.mxu0
  %v118 = vadd.f32 %v40, %v117
  %v119 = vpop.f32.mrf.mxu0
  %120 = vmatprep.mubr.bf16.mxu0 0
  %121 = vmatmul.mubr.bf16.gmra.mxu0 %v78
  %v122 = vpop.f32.mrf.mxu0
  %v123 = vadd.f32 %v40, %v122
  %v124 = vpop.f32.mrf.mxu0
  %v125 = vpop.f32.mrf.mxu0
  %v126 = vpop.f32.mrf.mxu0
  %127 = vdwg.mxu0
  %v128 = vld [vmem:[%s3] sm:$0xf]
  %v129 = vld [vmem:[%s3 + $0x4] sm:$0xf]
  %v130 = vld [vmem:[%s3 + $0x8] sm:$0x1]
  %v131 = vunpack.c.l.bf16 %v128
  %v132 = vunpack.c.l.bf16 %v129
  %v133 = vunpack.c.l.bf16 %v130
  %v134 = vadd.f32 %v115, %v131
  %v135 = vadd.f32 %v118, %v132
  %v136 = vadd.f32 %v123, %v133
  %v137 = vsel %vm73, %v134, 0.0
  %138 = vadd.xlane.f32.xlu0 %v137
  %v139 = vpop.xlane.xlu0 %138
  %v140 = vsel %vm73, %v135, 0.0
  %141 = vadd.xlane.f32.xlu0 %v140
  %v142 = vpop.xlane.xlu0 %141
  %vm143 = vcmask 517120
  %v144 = vsel %vm143, %v136, 0.0
  %145 = vadd.xlane.f32.xlu0 %v144
  %v146 = vpop.xlane.xlu0 %145
  %v147 = vrcp.pop 64.0
  %v148 = vmul.f32 %v139, %v147
  %v149 = vmul.f32 %v142, %v147
  %v150 = vmul.f32 %v146, %v147
  %v151 = vsub.f32 %v134, %v148
  %v152 = vsub.f32 %v135, %v149
  %v153 = vsub.f32 %v136, %v150
  %v154 = vmul.f32 %v151, %v151
  %v155 = vmul.f32 %v152, %v152
  %v156 = vmul.f32 %v153, %v153
  %v157 = vsel %vm73, %v154, 0.0
  %158 = vadd.xlane.f32.xlu0 %v157
  %v159 = vpop.xlane.xlu0 %158
  %v160 = vsel %vm73, %v155, 0.0
  %161 = vadd.xlane.f32.xlu0 %v160
  %v162 = vpop.xlane.xlu0 %161
  %v163 = vsel %vm143, %v156, 0.0
  %164 = vadd.xlane.f32.xlu0 %v163
  %v165 = vpop.xlane.xlu0 %164
  %v166 = vmul.f32 %v159, %v147
  %v167 = vmul.f32 %v162, %v147
  %v168 = vmul.f32 %v165, %v147
  %v169 = vadd.f32 %v166, 1e-05
  %v170 = vadd.f32 %v167, 1e-05
  %v171 = vadd.f32 %v168, 1e-05
  %v172 = vrsqrt.pop %v169
  %v173 = vrsqrt.pop %v170
  %v174 = vrsqrt.pop %v171
  %v175 = vmul.f32 %v151, %v172
  %v176 = vmul.f32 %v152, %v173
  %v177 = vmul.f32 %v153, %v174
  %v178 = vld [vmem:[%s4] sm:$0x1]
  %v179 = vunpack.c.l.bf16 %v178
  %v180 = vlaneseq
  %v181 = vshrl.u32 %v180, 7
  %v182 = vsub.s32 0, %v181
  %v183 = vrot.slane %v179, %v182
  %v184 = vmul.f32 %v175, %v183
  %v185 = vmul.f32 %v176, %v183
  %v186 = vmul.f32 %v177, %v183
  %v187 = vld [vmem:[%s5] sm:$0x1]
  %v188 = vunpack.c.l.bf16 %v187
  %v189 = vlaneseq
  %v190 = vshrl.u32 %v189, 7
  %v191 = vsub.s32 0, %v190
  %v192 = vrot.slane %v188, %v191
  %v193 = vadd.f32 %v184, %v192
  %v194 = vadd.f32 %v185, %v192
  %v195 = vadd.f32 %v186, %v192
  %v196 = vpack.c.bf16 %v194, %v193
  %v197 = vpack.c.bf16 %v195, %v195
  %v200 = vunpack.c.l.b16 %v196
  %v201 = vunpack.c.h.b16 %v196
  %v202 = vunpack.c.l.b16 %v197
  %v203 = vpack.c.b16 %v200, %v200
  %v204 = vpack.c.b16 %v201, %v201
  %v205 = vpack.c.b16 %v202, %v202
  %vm209 = vcmask 519168
  %210 = vst.msk [vmem:[%s6] sm:$0xf] %vm209, %v203
  %211 = vst.msk [vmem:[%s6 + $0x4] sm:$0xf] %vm209, %v204
  %vm212 = vcmask 516096
  %213 = vst.msk [vmem:[%s6 + $0x8] sm:$0x1] %vm212, %v205
  // Predicated region
  $region26: #{audio_projection_forward.19} parent=0 // pred_check
    _
  $region27: #{audio_projection_forward.19} parent=0 // pred_check_branch
    %215 = sbr.rel (0) target = $region29
  $region28: #{audio_projection_forward.19} parent=0 // pred_region
    _
  $region29: #{audio_projection_forward.19} parent=0 // pred_fallthru
    _
  // Predicated region
  $region30: #{audio_projection_forward.19} parent=0 // pred_check
    _
  $region31: #{audio_projection_forward.19} parent=0 // pred_check_branch
    %217 = sbr.rel (0) target = $region33
  $region32: #{audio_projection_forward.19} parent=0 // pred_region
    _
  $region33: #{audio_projection_forward.19} parent=0 // pred_fallthru
    _

// kernel: audio_projection_forward.18
$region0: #{audio_projection_forward.18}
  #allocation0 [shape = 'u32[]', space=smem, size = 0x4, offset = 0x4, fixed_abs, tag = 'smem constant byte address 0x4 - core index']
  #allocation1 [shape = 'u32[144,128]{1,0:T(1,128)}', space=vmem, size = 0x12000, scoped, tag = 'internal scratch']
  %s0 = inlined_call_operand.vmem [shape: bf16[2,9,64], index: 0, kind: input, shape index: {}]
  %s1 = inlined_call_operand.vmem [shape: bf16[2,9,64], index: 1, kind: input, shape index: {}]
  %s2 = inlined_call_operand.vmem [shape: bf16[2,9,64], index: 2, kind: input, shape index: {}]
  %s3 = inlined_call_operand.vmem [shape: bf16[2,9,64], index: 3, kind: output, shape index: {}]
  %s4 = sld [smem:[#allocation0]]
  $region45: #{audio_projection_forward.18} parent=0
    _
  %s6 = ssub.s32 1, %s4
  %s7 = scalar_select 0, %s6, %s4
  loop: start=0, step=1, limit=4
  $region2: #{audio_projection_forward.18} parent=0 // loop_pre_header
    _
  $region3: #{audio_projection_forward.18} parent=0 // loop_header
    %s9 = sphi 0, %s13
    %p10 = scmp.ge.s32.totalorder %s9, 4
    %s19 = sphi 0, %s21
    %s22 = sphi 0, %s19
    %s23 = sphi 0, %s22
    %s39 = sphi 0, %s23
    %s45 = sphi 0, %s47
    %s48 = sphi 0, %s45
    %s49 = sphi 0, %s48
    %s65 = sphi 0, %s49
    %s71 = sphi 0, %s73
    %s74 = sphi 0, %s71
    %s75 = sphi 0, %s74
    %s91 = sphi 0, %s75
    %s97 = sphi 0, %s99
    %s100 = sphi 0, %s97
    %s101 = sphi 0, %s100
    %s117 = sphi 0, %s101
  $region4: #{audio_projection_forward.18} parent=0 // loop_header_branch
    %12 = sbr.rel (%p10) target = $region8
  $region5: #{audio_projection_forward.18} parent=0 // loop_body
    %s14 = ssub.s32 %s9, 1
    %s15 = ssub.s32 %s9, 2
    %s16 = sadd.s32 %s9, 1
    %s17 = ssub.s32 %s9, %s16
    %p18 = scmp.eq.s32.totalorder %s17, 0
    %s20 = sadd.s32 %s19, 1
    %s21 = scalar_select %p18, %s19, %s20
    %p24 = pneg %p18
    %p25 = scmp.eq.s32.totalorder %s9, 1
    %p26 = por %p24, %p25
    %p27 = scmp.ne.s32.totalorder %s19, %s22
    %p28 = scmp.eq.s32.totalorder %s9, 0
    %p29 = por %p27, %p28
    %p30 = scmp.ne.s32.totalorder %s19, %s22
    %p31 = scmp.eq.s32.totalorder %s14, 1
    %p32 = por %p30, %p31
    %p33 = scmp.ne.s32.totalorder %s22, %s23
    %p34 = scmp.eq.s32.totalorder %s14, 0
    %p35 = por %p33, %p34
    %p36 = scmp.ne.s32.totalorder %s22, %s23
    %p37 = scmp.eq.s32.totalorder %s15, 1
    %p38 = por %p36, %p37
    %p40 = scmp.ne.s32.totalorder %s23, %s39
    %p41 = scmp.eq.s32.totalorder %s15, 0
    %p42 = por %p40, %p41
    %s43 = ssub.s32 %s9, %s16
    %p44 = scmp.eq.s32.totalorder %s43, 0
    %s46 = sadd.s32 %s45, 1
    %s47 = scalar_select %p44, %s45, %s46
    %p50 = pneg %p44
    %p51 = scmp.eq.s32.totalorder %s9, 1
    %p52 = por %p50, %p51
    %p53 = scmp.ne.s32.totalorder %s45, %s48
    %p54 = scmp.eq.s32.totalorder %s9, 0
    %p55 = por %p53, %p54
    %p56 = scmp.ne.s32.totalorder %s45, %s48
    %p57 = scmp.eq.s32.totalorder %s14, 1
    %p58 = por %p56, %p57
    %p59 = scmp.ne.s32.totalorder %s48, %s49
    %p60 = scmp.eq.s32.totalorder %s14, 0
    %p61 = por %p59, %p60
    %p62 = scmp.ne.s32.totalorder %s48, %s49
    %p63 = scmp.eq.s32.totalorder %s15, 1
    %p64 = por %p62, %p63
    %p66 = scmp.ne.s32.totalorder %s49, %s65
    %p67 = scmp.eq.s32.totalorder %s15, 0
    %p68 = por %p66, %p67
    %s69 = ssub.s32 %s9, %s16
    %p70 = scmp.eq.s32.totalorder %s69, 0
    %s72 = sadd.s32 %s71, 1
    %s73 = scalar_select %p70, %s71, %s72
    %p76 = pneg %p70
    %p77 = scmp.eq.s32.totalorder %s9, 1
    %p78 = por %p76, %p77
    %p79 = scmp.ne.s32.totalorder %s71, %s74
    %p80 = scmp.eq.s32.totalorder %s9, 0
    %p81 = por %p79, %p80
    %p82 = scmp.ne.s32.totalorder %s71, %s74
    %p83 = scmp.eq.s32.totalorder %s14, 1
    %p84 = por %p82, %p83
    %p85 = scmp.ne.s32.totalorder %s74, %s75
    %p86 = scmp.eq.s32.totalorder %s14, 0
    %p87 = por %p85, %p86
    %p88 = scmp.ne.s32.totalorder %s74, %s75
    %p89 = scmp.eq.s32.totalorder %s15, 1
    %p90 = por %p88, %p89
    %p92 = scmp.ne.s32.totalorder %s75, %s91
    %p93 = scmp.eq.s32.totalorder %s15, 0
    %p94 = por %p92, %p93
    %s95 = ssub.s32 %s9, %s16
    %p96 = scmp.eq.s32.totalorder %s95, 0
    %s98 = sadd.s32 %s97, 1
    %s99 = scalar_select %p96, %s97, %s98
    %p102 = pneg %p96
    %p103 = scmp.eq.s32.totalorder %s9, 1
    %p104 = por %p102, %p103
    %p105 = scmp.ne.s32.totalorder %s97, %s100
    %p106 = scmp.eq.s32.totalorder %s9, 0
    %p107 = por %p105, %p106
    %p108 = scmp.ne.s32.totalorder %s97, %s100
    %p109 = scmp.eq.s32.totalorder %s14, 1
    %p110 = por %p108, %p109
    %p111 = scmp.ne.s32.totalorder %s100, %s101
    %p112 = scmp.eq.s32.totalorder %s14, 0
    %p113 = por %p111, %p112
    %p114 = scmp.ne.s32.totalorder %s100, %s101
    %p115 = scmp.eq.s32.totalorder %s15, 1
    %p116 = por %p114, %p115
    %p118 = scmp.ne.s32.totalorder %s101, %s117
    %p119 = scmp.eq.s32.totalorder %s15, 0
    %p120 = por %p118, %p119
    %p121 = scmp.le.s32.totalorder 1, %s9
    %p122 = scmp.lt.s32.totalorder %s9, 3
    %p123 = pnand %p121, %p122
    %p124 = pneg %p123
    // Predicated region
    $region9: #{audio_projection_forward.18} parent=5 // pred_check
      _
    $region10: #{audio_projection_forward.18} parent=5 // pred_check_branch
      %126 = sbr.rel (%p123) target = $region12
    $region11: #{audio_projection_forward.18} parent=5 // pred_region
      %s127 = ssub.s32 %s9, 1
    $region12: #{audio_projection_forward.18} parent=5 // pred_fallthru
      _
    %p128 = scmp.lt.s32.totalorder %s9, 2
    // Predicated region
    $region13: #{audio_projection_forward.18} parent=5 // pred_check
      %p129 = pneg %p128
    $region14: #{audio_projection_forward.18} parent=5 // pred_check_branch
      %131 = sbr.rel (%p129) target = $region16
    $region15: #{audio_projection_forward.18} parent=5 // pred_region
      // Predicated region
      $region17: #{audio_projection_forward.18} parent=15 // pred_check
        %p132 = pneg %p29
      $region18: #{audio_projection_forward.18} parent=15 // pred_check_branch
        %134 = sbr.rel (%p132) target = $region20
      $region19: #{audio_projection_forward.18} parent=15 // pred_region
        %p135 = scmp.lt.s32.totalorder %s9, 1
        %s136 = scalar_select %p135, %s9, 1
        %s137 = smul.addr %s136, 2
        %s138 = smul.addr %s137, 4
        %s139 = scalar_lea.vmem %s0, %s138
      $region20: #{audio_projection_forward.18} parent=15 // pred_fallthru
        _
      // Predicated region
      $region21: #{audio_projection_forward.18} parent=15 // pred_check
        %p140 = pneg %p55
      $region22: #{audio_projection_forward.18} parent=15 // pred_check_branch
        %142 = sbr.rel (%p140) target = $region24
      $region23: #{audio_projection_forward.18} parent=15 // pred_region
        %p143 = scmp.lt.s32.totalorder %s9, 1
        %s144 = scalar_select %p143, %s9, 1
        %s145 = smul.addr %s144, 2
        %s146 = smul.addr %s145, 4
        %s147 = scalar_lea.vmem %s1, %s146
      $region24: #{audio_projection_forward.18} parent=15 // pred_fallthru
        _
      // Predicated region
      $region25: #{audio_projection_forward.18} parent=15 // pred_check
        %p148 = pneg %p81
      $region26: #{audio_projection_forward.18} parent=15 // pred_check_branch
        %150 = sbr.rel (%p148) target = $region28
      $region27: #{audio_projection_forward.18} parent=15 // pred_region
        %p151 = scmp.lt.s32.totalorder %s9, 1
        %s152 = scalar_select %p151, %s9, 1
        %s153 = smul.addr %s152, 2
        %s154 = smul.addr %s153, 4
        %s155 = scalar_lea.vmem %s2, %s154
      $region28: #{audio_projection_forward.18} parent=15 // pred_fallthru
        _
    $region16: #{audio_projection_forward.18} parent=5 // pred_fallthru
      _
    %p156 = scmp.le.s32.totalorder 1, %s9
    %p157 = scmp.lt.s32.totalorder %s9, 3
    %p158 = pnand %p156, %p157
    %p159 = pneg %p158
    // Predicated region
    $region29: #{audio_projection_forward.18} parent=5 // pred_check
      _
    $region30: #{audio_projection_forward.18} parent=5 // pred_check_branch
      %161 = sbr.rel (%p158) target = $region32
    $region31: #{audio_projection_forward.18} parent=5 // pred_region
      %s162 = ssub.s32 %s9, 1
      %p163 = scmp.lt.s32.totalorder %s14, 1
      %s164 = scalar_select %p163, %s14, 1
      %s165 = smul.addr %s164, 2
      %s166 = smul.addr %s165, 4
      %s167 = scalar_lea.vmem %s0, %s166
      %p168 = pneg %p35
      %p169 = pneg %p32
      %p170 = scmp.lt.s32.totalorder %s14, 1
      %s171 = scalar_select %p170, %s14, 1
      %s172 = smul.addr %s171, 2
      %s173 = smul.addr %s172, 4
      %s174 = scalar_lea.vmem %s1, %s173
      %p175 = pneg %p61
      %p176 = pneg %p58
      %p177 = scmp.lt.s32.totalorder %s14, 1
      %s178 = scalar_select %p177, %s14, 1
      %s179 = smul.addr %s178, 2
      %s180 = smul.addr %s179, 4
      %s181 = scalar_lea.vmem %s2, %s180
      %p182 = pneg %p87
      %p183 = pneg %p84
      %p184 = pneg %p113
      %p185 = pneg %p110
      %p186 = scmp.lt.s32.totalorder %s14, 1
      %s187 = scalar_select %p186, %s14, 1
      %s188 = smul.addr %s187, 2
      %s189 = smul.addr %s188, 4
      %s190 = scalar_lea.vmem %s3, %s189
      %p191 = scmp.lt.s32.totalorder %s14, 1
      %s192 = scalar_select %p191, %s14, 1
      %s193 = smul.addr %s192, 2
      %s194 = smul.addr %s193, 4
      %s195 = scalar_lea.vmem %s0, %s194
      %p196 = scmp.lt.s32.totalorder %s14, 1
      %s197 = scalar_select %p196, %s14, 1
      %s198 = smul.addr %s197, 2
      %s199 = smul.addr %s198, 4
      %s200 = scalar_lea.vmem %s1, %s199
      %p201 = scmp.lt.s32.totalorder %s14, 1
      %s202 = scalar_select %p201, %s14, 1
      %s203 = smul.addr %s202, 2
      %s204 = smul.addr %s203, 4
      %s205 = scalar_lea.vmem %s2, %s204
      %p206 = scmp.lt.s32.totalorder %s14, 1
      %s207 = scalar_select %p206, %s14, 1
      %s208 = smul.addr %s207, 2
      %s209 = smul.addr %s208, 4
      %s210 = scalar_lea.vmem %s3, %s209
      %v212 = vld [vmem:[%s195] sm:$0xf]
      %v213 = vld [vmem:[%s195 + $0x4] sm:$0x1]
      %v214 = vld [vmem:[%s200] sm:$0xf]
      %v215 = vld [vmem:[%s200 + $0x4] sm:$0x1]
      %v216 = vld [vmem:[%s205] sm:$0xf]
      %v217 = vld [vmem:[%s205 + $0x4] sm:$0x1]
      %v220 = vunpack.c.l.b16 %v212
      %v221 = vunpack.c.l.b16 %v213
      %v222 = vpack.c.b16 %v221, %v220
      %v225 = vunpack.c.l.b16 %v214
      %v226 = vunpack.c.l.b16 %v215
      %v227 = vpack.c.b16 %v226, %v225
      %vm228 = vcmask 523264
      %v230 = vsel %vm228, %v222, 0
      %v233 = vsel %vm228, %v227, 0
      %235 = vmatprep.subr.bf16.mxu0 0
      %236 = vmatpush1.bf16.xpose.msra.mxu0 0
      %237 = vmatprep.subr.bf16.mxu0 0
      %238 = vmatpush1.bf16.xpose.msra.mxu0 0
      %239 = vmatprep.subr.bf16.mxu0 0
      %240 = vmatpush1.bf16.xpose.msra.mxu0 0
      %241 = vmatprep.subr.bf16.mxu0 0
      %242 = vmatpush1.bf16.xpose.msra.mxu0 0
      %243 = vmatprep.subr.bf16.mxu0 0
      %244 = vmatpush1.bf16.xpose.msra.mxu0 0
      %245 = vmatprep.subr.bf16.mxu0 0
      %246 = vmatpush1.bf16.xpose.msra.mxu0 0
      %247 = vmatprep.subr.bf16.mxu0 0
      %248 = vmatpush1.bf16.xpose.msra.mxu0 0
      %249 = vmatprep.subr.bf16.mxu0 0
      %250 = vmatpush1.bf16.xpose.msra.mxu0 %v233
      %251 = vmatprep.subr.bf16.mxu0 0
      %252 = vmatpush2.bf16.xpose.msra.mxu0 0
      %253 = vmatprep.subr.bf16.mxu0 0
      %254 = vmatpush2.bf16.xpose.msra.mxu0 0
      %255 = vmatprep.subr.bf16.mxu0 0
      %256 = vmatpush2.bf16.xpose.msra.mxu0 0
      %257 = vmatprep.subr.bf16.mxu0 0
      %258 = vmatpush2.bf16.xpose.msra.mxu0 0
      %259 = vmatprep.subr.bf16.mxu0 0
      %260 = vmatpush2.bf16.xpose.msra.mxu0 0
      %261 = vmatprep.subr.bf16.mxu0 0
      %262 = vmatpush2.bf16.xpose.msra.mxu0 0
      %263 = vmatprep.subr.bf16.mxu0 0
      %264 = vmatpush2.bf16.xpose.msra.mxu0 0
      %265 = vmatprep.subr.bf16.mxu0 0
      %266 = vmatpush2.bf16.xpose.msra.mxu0 0
      %267 = vmatprep.mubr.bf16.mxu0 0
      %268 = vmatmul.mubr.bf16.gmra.mxu0 %v230
      %v269 = vpop.f32.mrf.mxu0
      %v270 = vadd.f32 0.0, %v269
      %v271 = vpop.f32.mrf.mxu0
      %v272 = vpop.f32.mrf.mxu0
      %v273 = vadd.f32 0.0, %v272
      %v274 = vpop.f32.mrf.mxu0
      %275 = vdwg.mxu0
      %v276 = vmul.f32 %v270, 0.125
      %v277 = vmul.f32 %v273, 0.125
      %vm278 = vcmask 72704
      %v279 = vsel %vm278, %v276, -inf
      %280 = vmax.xlane.f32.xlu0 %v279
      %v281 = vpop.xlane.xlu0 %280
      %vm282 = vcmask 65536
      %v283 = vsel %vm282, %v277, -inf
      %284 = vmax.xlane.f32.xlu0 %v283
      %v285 = vpop.xlane.xlu0 %284
      %v286 = vsub.f32 %v276, %v281
      %v287 = vsub.f32 %v277, %v285
      %v288 = vmul.f32 %v286, 1.442695
      %v289 = vpow.pop %v288
      %v290 = vmul.f32 %v287, 1.442695
      %v291 = vpow.pop %v290
      %v292 = vsel %vm278, %v289, 0.0
      %293 = vadd.xlane.f32.xlu0 %v292
      %v294 = vpop.xlane.xlu0 %293
      %v295 = vsel %vm282, %v291, 0.0
      %296 = vadd.xlane.f32.xlu0 %v295
      %v297 = vpop.xlane.xlu0 %296
      %v298 = vrcp.pop %v294
      %v299 = vrcp.pop %v297
      %v300 = vmul.f32 %v289, %v298
      %v301 = vmul.f32 %v291, %v299
      %v302 = vpack.c.bf16 %v301, %v300
      %v305 = vunpack.c.l.b16 %v216
      %v306 = vunpack.c.l.b16 %v217
      %v307 = vpack.c.b16 %v306, %v305
      %v309 = vsel %vm278, %v302, 0
      %vm311 = vcmask 1043456
      %vm312 = vcmask 1044480
      %v313 = vsel %vm311, 4294967295, 65535
      %v314 = vsel %vm312, %v313, 0
      %v316 = vand.u32 %v307, %v314
      %318 = vmatprep.subr.bf16.mxu0 0
      %319 = vmatpush1.bf16.msra.mxu0 0
      %320 = vmatprep.subr.bf16.mxu0 0
      %321 = vmatpush1.bf16.msra.mxu0 0
      %322 = vmatprep.subr.bf16.mxu0 0
      %323 = vmatpush1.bf16.msra.mxu0 0
      %324 = vmatprep.subr.bf16.mxu0 0
      %325 = vmatpush1.bf16.msra.mxu0 0
      %326 = vmatprep.subr.bf16.mxu0 0
      %327 = vmatpush1.bf16.msra.mxu0 0
      %328 = vmatprep.subr.bf16.mxu0 0
      %329 = vmatpush1.bf16.msra.mxu0 0
      %330 = vmatprep.subr.bf16.mxu0 0
      %331 = vmatpush1.bf16.msra.mxu0 0
      %332 = vmatprep.subr.bf16.mxu0 0
      %333 = vmatpush1.bf16.msra.mxu0 %v316
      %334 = vmatprep.subr.bf16.mxu0 0
      %335 = vmatpush2.bf16.msra.mxu0 0
      %336 = vmatprep.subr.bf16.mxu0 0
      %337 = vmatpush2.bf16.msra.mxu0 0
      %338 = vmatprep.subr.bf16.mxu0 0
      %339 = vmatpush2.bf16.msra.mxu0 0
      %340 = vmatprep.subr.bf16.mxu0 0
      %341 = vmatpush2.bf16.msra.mxu0 0
      %342 = vmatprep.subr.bf16.mxu0 0
      %343 = vmatpush2.bf16.msra.mxu0 0
      %344 = vmatprep.subr.bf16.mxu0 0
      %345 = vmatpush2.bf16.msra.mxu0 0
      %346 = vmatprep.subr.bf16.mxu0 0
      %347 = vmatpush2.bf16.msra.mxu0 0
      %348 = vmatprep.subr.bf16.mxu0 0
      %349 = vmatpush2.bf16.msra.mxu0 0
      %350 = vmatprep.mubr.bf16.mxu0 0
      %351 = vmatmul.mubr.bf16.gmra.mxu0 %v309
      %v352 = vpop.f32.mrf.mxu0
      %v353 = vadd.f32 0.0, %v352
      %v354 = vpop.f32.mrf.mxu0
      %v355 = vpop.f32.mrf.mxu0
      %v356 = vadd.f32 0.0, %v355
      %v357 = vpop.f32.mrf.mxu0
      %358 = vdwg.mxu0
      %v359 = vpack.c.bf16 %v356, %v353
      %v361 = vunpack.c.l.b16 %v359
      %v362 = vunpack.c.h.b16 %v359
      %v363 = vpack.c.b16 %v361, %v361
      %v364 = vpack.c.b16 %v362, %v362
      %vm367 = vcmask 519168
      %368 = vst.msk [vmem:[%s210] sm:$0xf] %vm367, %v363
      %vm369 = vcmask 516096
      %vm370 = vsmask.f32 256
      %vm371 = vmand %vm369, %vm370
      %v372 = vld [vmem:[%s210 + $0x4] sm:$0x1]
      %v373 = vsel %vm371, %v364, %v372
      %374 = vst [vmem:[%s210 + $0x4] sm:$0x1] %v373
      %p375 = scmp.lt.s32.totalorder %s14, 1
      %s376 = scalar_select %p375, %s14, 1
      %s377 = smul.addr %s376, 2
      %s378 = smul.addr %s377, 4
      %s379 = scalar_lea.vmem %s3, %s378
      // Predicated region
      $region33: #{audio_projection_forward.18} parent=31 // pred_check
        %p380 = pneg %p110
      $region34: #{audio_projection_forward.18} parent=31 // pred_check_branch
        %382 = sbr.rel (%p380) target = $region36
      $region35: #{audio_projection_forward.18} parent=31 // pred_region
        _
      $region36: #{audio_projection_forward.18} parent=31 // pred_fallthru
        _
    $region32: #{audio_projection_forward.18} parent=5 // pred_fallthru
      _
    %p383 = scmp.le.s32.totalorder 2, %s9
    // Predicated region
    $region37: #{audio_projection_forward.18} parent=5 // pred_check
      %p384 = pneg %p383
    $region38: #{audio_projection_forward.18} parent=5 // pred_check_branch
      %386 = sbr.rel (%p384) target = $region40
    $region39: #{audio_projection_forward.18} parent=5 // pred_region
      %s387 = ssub.s32 %s9, 2
      // Predicated region
      $region41: #{audio_projection_forward.18} parent=39 // pred_check
        %p388 = pneg %p116
      $region42: #{audio_projection_forward.18} parent=39 // pred_check_branch
        %390 = sbr.rel (%p388) target = $region44
      $region43: #{audio_projection_forward.18} parent=39 // pred_region
        %p391 = scmp.lt.s32.totalorder %s15, 1
        %s392 = scalar_select %p391, %s15, 1
        %s393 = smul.addr %s392, 2
        %s394 = smul.addr %s393, 4
        %s395 = scalar_lea.vmem %s3, %s394
      $region44: #{audio_projection_forward.18} parent=39 // pred_fallthru
        _
    $region40: #{audio_projection_forward.18} parent=5 // pred_fallthru
      _
  $region6: #{audio_projection_forward.18} parent=0 // loop_footer
    %s13 = sadd.s32 1, %s9
  $region7: #{audio_projection_forward.18} parent=0 // loop_footer_branch
    %8 = sbr.rel target = $region3
  $region8: #{audio_projection_forward.18} parent=0 // loop_exit
    _

// kernel: audio_projection_forward.17
$region0: #{audio_projection_forward.17}
  #allocation0 [shape = 'u32[]', space=smem, size = 0x4, offset = 0x4, fixed_abs, tag = 'smem constant byte address 0x4 - core index']
  #allocation1 [shape = 'u32[144,128]{1,0:T(1,128)}', space=vmem, size = 0x12000, scoped, tag = 'internal scratch']
  %s0 = inlined_call_operand.vmem [shape: bf16[18,64], index: 0, kind: input, shape index: {}]
  %s1 = inlined_call_operand.vmem [shape: bf16[64,192], index: 1, kind: input, shape index: {}]
  %s2 = inlined_call_operand.vmem [shape: bf16[1,192], index: 2, kind: input, shape index: {}]
  %s3 = inlined_call_operand.vmem [shape: bf16[18,192], index: 3, kind: output, shape index: {}]
  %s4 = sld [smem:[#allocation0]]
  $region22: #{audio_projection_forward.17} parent=0
    _
  %s6 = ssub.s32 1, %s4
  %s7 = scalar_select 0, %s6, %s4
  // Predicated region
  $region2: #{audio_projection_forward.17} parent=0 // pred_check
    _
  $region3: #{audio_projection_forward.17} parent=0 // pred_check_branch
    %9 = sbr.rel (0) target = $region5
  $region4: #{audio_projection_forward.17} parent=0 // pred_region
    _
  $region5: #{audio_projection_forward.17} parent=0 // pred_fallthru
    _
  // Predicated region
  $region6: #{audio_projection_forward.17} parent=0 // pred_check
    _
  $region7: #{audio_projection_forward.17} parent=0 // pred_check_branch
    %11 = sbr.rel (0) target = $region9
  $region8: #{audio_projection_forward.17} parent=0 // pred_region
    _
  $region9: #{audio_projection_forward.17} parent=0 // pred_fallthru
    _
  // Predicated region
  $region10: #{audio_projection_forward.17} parent=0 // pred_check
    _
  $region11: #{audio_projection_forward.17} parent=0 // pred_check_branch
    %13 = sbr.rel (0) target = $region13
  $region12: #{audio_projection_forward.17} parent=0 // pred_region
    _
  $region13: #{audio_projection_forward.17} parent=0 // pred_fallthru
    _
  %v15 = vld [vmem:[%s0] sm:$0xf]
  %v16 = vld [vmem:[%s0 + $0x4] sm:$0xf]
  %v17 = vld [vmem:[%s0 + $0x8] sm:$0x1]
  %v18 = vld [vmem:[%s1] sm:$0xff]
  %v19 = vld [vmem:[%s1 + $0x8] sm:$0xff]
  %v20 = vld [vmem:[%s1 + $0x10] sm:$0xff]
  %v21 = vld [vmem:[%s1 + $0x18] sm:$0xff]
  %v22 = vld [vmem:[%s1 + $0x20] sm:$0xff]
  %v23 = vld [vmem:[%s1 + $0x28] sm:$0xff]
  %v24 = vld [vmem:[%s1 + $0x30] sm:$0xff]
  %v25 = vld [vmem:[%s1 + $0x38] sm:$0xff]
  %v26 = vld [vmem:[%s2] sm:$0x3]
  %v27 = vunpack.c.l.bf16 %v26
  %v29 = vlaneseq
  %v30 = vshrl.u32 %v29, 7
  %v31 = vsub.s32 0, %v30
  %v32 = vrot.slane %v27, %v31
  %v33 = vlaneseq
  %v34 = vshrl.u32 %v33, 7
  %v35 = vsub.s32 2, %v34
  %v36 = vrot.slane %v27, %v35
  %v39 = vlaneseq
  %v40 = vshrl.u32 %v39, 7
  %v41 = vsub.s32 0, %v40
  %v42 = vrot.slane %v32, %v41
  %v43 = vlaneseq
  %v44 = vshrl.u32 %v43, 7
  %v45 = vsub.s32 0, %v44
  %v46 = vrot.slane %v36, %v45
  %v50 = vunpack.c.l.b16 %v15
  %v51 = vunpack.c.l.b16 %v16
  %v52 = vunpack.c.l.b16 %v17
  %v53 = vpack.c.b16 %v51, %v50
  %v54 = vpack.c.b16 %v52, %v52
  %v63 = vunpack.c.l.b16 %v18
  %v64 = vunpack.c.h.b16 %v18
  %v65 = vunpack.c.l.b16 %v19
  %v66 = vunpack.c.h.b16 %v19
  %v67 = vunpack.c.l.b16 %v20
  %v68 = vunpack.c.h.b16 %v20
  %v69 = vunpack.c.l.b16 %v21
  %v70 = vunpack.c.h.b16 %v21
  %v71 = vunpack.c.l.b16 %v22
  %v72 = vunpack.c.h.b16 %v22
  %v73 = vunpack.c.l.b16 %v23
  %v74 = vunpack.c.h.b16 %v23
  %v75 = vunpack.c.l.b16 %v24
  %v76 = vunpack.c.h.b16 %v24
  %v77 = vunpack.c.l.b16 %v25
  %v78 = vunpack.c.h.b16 %v25
  %v79 = vpack.c.b16 %v65, %v63
  %v80 = vpack.c.b16 %v66, %v64
  %v81 = vpack.c.b16 %v69, %v67
  %v82 = vpack.c.b16 %v70, %v68
  %v83 = vpack.c.b16 %v73, %v71
  %v84 = vpack.c.b16 %v74, %v72
  %v85 = vpack.c.b16 %v77, %v75
  %v86 = vpack.c.b16 %v78, %v76
  %vm95 = vcmask 523264
  %v97 = vsel %vm95, %v53, 0
  %v100 = vsel %vm95, %v54, 0
  %102 = vmatprep.subr.bf16.mxu0 0
  %103 = vmatpush1.bf16.msra.mxu0 0
  %104 = vmatprep.subr.bf16.mxu0 0
  %105 = vmatpush1.bf16.msra.mxu0 0
  %106 = vmatprep.subr.bf16.mxu0 0
  %107 = vmatpush1.bf16.msra.mxu0 0
  %108 = vmatprep.subr.bf16.mxu0 0
  %109 = vmatpush1.bf16.msra.mxu0 0
  %110 = vmatprep.subr.bf16.mxu0 %v86
  %111 = vmatpush1.bf16.msra.mxu0 %v85
  %112 = vmatprep.subr.bf16.mxu0 %v84
  %113 = vmatpush1.bf16.msra.mxu0 %v83
  %114 = vmatprep.subr.bf16.mxu0 %v82
  %115 = vmatpush1.bf16.msra.mxu0 %v81
  %116 = vmatprep.subr.bf16.mxu0 %v80
  %117 = vmatpush1.bf16.msra.mxu0 %v79
  %118 = vmatprep.subr.bf16.mxu0 0
  %119 = vmatpush2.bf16.msra.mxu0 0
  %120 = vmatprep.subr.bf16.mxu0 0
  %121 = vmatpush2.bf16.msra.mxu0 0
  %122 = vmatprep.subr.bf16.mxu0 0
  %123 = vmatpush2.bf16.msra.mxu0 0
  %124 = vmatprep.subr.bf16.mxu0 0
  %125 = vmatpush2.bf16.msra.mxu0 0
  %126 = vmatprep.subr.bf16.mxu0 0
  %127 = vmatpush2.bf16.msra.mxu0 0
  %128 = vmatprep.subr.bf16.mxu0 0
  %129 = vmatpush2.bf16.msra.mxu0 0
  %130 = vmatprep.subr.bf16.mxu0 0
  %131 = vmatpush2.bf16.msra.mxu0 0
  %132 = vmatprep.subr.bf16.mxu0 0
  %133 = vmatpush2.bf16.msra.mxu0 0
  %134 = vmatprep.mubr.bf16.mxu0 0
  %135 = vmatmul.mubr.bf16.gmra.mxu0 %v97
  %v136 = vpop.f32.mrf.mxu0
  %v137 = vadd.f32 %v42, %v136
  %v138 = vpop.f32.mrf.mxu0
  %v139 = vadd.f32 %v46, %v138
  %v140 = vpop.f32.mrf.mxu0
  %v141 = vadd.f32 %v42, %v140
  %v142 = vpop.f32.mrf.mxu0
  %v143 = vadd.f32 %v46, %v142
  %144 = vmatprep.mubr.bf16.mxu0 0
  %145 = vmatmul.mubr.bf16.gmra.mxu0 %v100
  %v146 = vpop.f32.mrf.mxu0
  %v147 = vadd.f32 %v42, %v146
  %v148 = vpop.f32.mrf.mxu0
  %v149 = vadd.f32 %v46, %v148
  %v150 = vpop.f32.mrf.mxu0
  %v151 = vpop.f32.mrf.mxu0
  %152 = vdwg.mxu0
  %v153 = vpack.c.bf16 %v141, %v137
  %v154 = vpack.c.bf16 %v143, %v139
  %v155 = vpack.c.bf16 %v147, %v147
  %v156 = vpack.c.bf16 %v149, %v149
  %v161 = vunpack.c.l.b16 %v153
  %v162 = vunpack.c.l.b16 %v154
  %v163 = vunpack.c.h.b16 %v153
  %v164 = vunpack.c.h.b16 %v154
  %v165 = vunpack.c.l.b16 %v155
  %v166 = vunpack.c.l.b16 %v156
  %v167 = vpack.c.b16 %v162, %v161
  %v168 = vpack.c.b16 %v164, %v163
  %v169 = vpack.c.b16 %v166, %v165
  %vm173 = vcmask 1043456
  %vm174 = vcmask 523268
  %vm175 = vmor %vm174, %vm173
  %176 = vst.msk [vmem:[%s3] sm:$0xff] %vm175, %v167
  %177 = vst.msk [vmem:[%s3 + $0x8] sm:$0xff] %vm175, %v168
  %vm178 = vcmask 1040384
  %vm179 = vcmask 520196
  %vm180 = vmor %vm179, %vm178
  %181 = vst.msk [vmem:[%s3 + $0x10] sm:$0x11] %vm180, %v169
  // Predicated region
  $region14: #{audio_projection_forward.17} parent=0 // pred_check
    _
  $region15: #{audio_projection_forward.17} parent=0 // pred_check_branch
    %183 = sbr.rel (0) target = $region17
  $region16: #{audio_projection_forward.17} parent=0 // pred_region
    _
  $region17: #{audio_projection_forward.17} parent=0 // pred_fallthru
    _
  // Predicated region
  $region18: #{audio_projection_forward.17} parent=0 // pred_check
    _
  $region19: #{audio_projection_forward.17} parent=0 // pred_check_branch
    %185 = sbr.rel (0) target = $region21
  $region20: #{audio_projection_forward.17} parent=0 // pred_region
    _
  $region21: #{audio_projection_forward.17} parent=0 // pred_fallthru
    _

// kernel: audio_projection_forward.20
$region0: #{audio_projection_forward.20}
  #allocation0 [shape = 'u32[]', space=smem, size = 0x4, offset = 0x4, fixed_abs, tag = 'smem constant byte address 0x4 - core index']
  #allocation1 [shape = 'u32[144,128]{1,0:T(1,128)}', space=vmem, size = 0x12000, scoped, tag = 'internal scratch']
  %s0 = inlined_call_operand.vmem [shape: bf16[18,64], index: 0, kind: input, shape index: {}]
  %s1 = inlined_call_operand.vmem [shape: bf16[64,64], index: 1, kind: input, shape index: {}]
  %s2 = inlined_call_operand.vmem [shape: bf16[1,64], index: 2, kind: input, shape index: {}]
  %s3 = inlined_call_operand.vmem [shape: bf16[18,64], index: 3, kind: output, shape index: {}]
  %s4 = sld [smem:[#allocation0]]
  $region22: #{audio_projection_forward.20} parent=0
    _
  %s6 = ssub.s32 1, %s4
  %s7 = scalar_select 0, %s6, %s4
  // Predicated region
  $region2: #{audio_projection_forward.20} parent=0 // pred_check
    _
  $region3: #{audio_projection_forward.20} parent=0 // pred_check_branch
    %9 = sbr.rel (0) target = $region5
  $region4: #{audio_projection_forward.20} parent=0 // pred_region
    _
  $region5: #{audio_projection_forward.20} parent=0 // pred_fallthru
    _
  // Predicated region
  $region6: #{audio_projection_forward.20} parent=0 // pred_check
    _
  $region7: #{audio_projection_forward.20} parent=0 // pred_check_branch
    %11 = sbr.rel (0) target = $region9
  $region8: #{audio_projection_forward.20} parent=0 // pred_region
    _
  $region9: #{audio_projection_forward.20} parent=0 // pred_fallthru
    _
  // Predicated region
  $region10: #{audio_projection_forward.20} parent=0 // pred_check
    _
  $region11: #{audio_projection_forward.20} parent=0 // pred_check_branch
    %13 = sbr.rel (0) target = $region13
  $region12: #{audio_projection_forward.20} parent=0 // pred_region
    _
  $region13: #{audio_projection_forward.20} parent=0 // pred_fallthru
    _
  %v15 = vld [vmem:[%s0] sm:$0xf]
  %v16 = vld [vmem:[%s0 + $0x4] sm:$0xf]
  %v17 = vld [vmem:[%s0 + $0x8] sm:$0x1]
  %v18 = vld [vmem:[%s1] sm:$0xf]
  %v19 = vld [vmem:[%s1 + $0x4] sm:$0xf]
  %v20 = vld [vmem:[%s1 + $0x8] sm:$0xf]
  %v21 = vld [vmem:[%s1 + $0xc] sm:$0xf]
  %v22 = vld [vmem:[%s1 + $0x10] sm:$0xf]
  %v23 = vld [vmem:[%s1 + $0x14] sm:$0xf]
  %v24 = vld [vmem:[%s1 + $0x18] sm:$0xf]
  %v25 = vld [vmem:[%s1 + $0x1c] sm:$0xf]
  %v26 = vld [vmem:[%s2] sm:$0x1]
  %v27 = vunpack.c.l.bf16 %v26
  %v28 = vlaneseq
  %v29 = vshrl.u32 %v28, 7
  %v30 = vsub.s32 0, %v29
  %v31 = vrot.slane %v27, %v30
  %v35 = vunpack.c.l.b16 %v15
  %v36 = vunpack.c.l.b16 %v16
  %v37 = vunpack.c.l.b16 %v17
  %v38 = vpack.c.b16 %v36, %v35
  %v39 = vpack.c.b16 %v37, %v37
  %v48 = vunpack.c.l.b16 %v18
  %v49 = vunpack.c.l.b16 %v19
  %v50 = vunpack.c.l.b16 %v20
  %v51 = vunpack.c.l.b16 %v21
  %v52 = vunpack.c.l.b16 %v22
  %v53 = vunpack.c.l.b16 %v23
  %v54 = vunpack.c.l.b16 %v24
  %v55 = vunpack.c.l.b16 %v25
  %v56 = vpack.c.b16 %v49, %v48
  %v57 = vpack.c.b16 %v51, %v50
  %v58 = vpack.c.b16 %v53, %v52
  %v59 = vpack.c.b16 %v55, %v54
  %vm64 = vcmask 523264
  %v66 = vsel %vm64, %v38, 0
  %v69 = vsel %vm64, %v39, 0
  %71 = vmatprep.subr.bf16.mxu0 0
  %72 = vmatpush1.bf16.msra.mxu0 0
  %73 = vmatprep.subr.bf16.mxu0 0
  %74 = vmatpush1.bf16.msra.mxu0 0
  %75 = vmatprep.subr.bf16.mxu0 0
  %76 = vmatpush1.bf16.msra.mxu0 0
  %77 = vmatprep.subr.bf16.mxu0 0
  %78 = vmatpush1.bf16.msra.mxu0 0
  %79 = vmatprep.subr.bf16.mxu0 0
  %80 = vmatpush1.bf16.msra.mxu0 %v59
  %81 = vmatprep.subr.bf16.mxu0 0
  %82 = vmatpush1.bf16.msra.mxu0 %v58
  %83 = vmatprep.subr.bf16.mxu0 0
  %84 = vmatpush1.bf16.msra.mxu0 %v57
  %85 = vmatprep.subr.bf16.mxu0 0
  %86 = vmatpush1.bf16.msra.mxu0 %v56
  %87 = vmatprep.subr.bf16.mxu0 0
  %88 = vmatpush2.bf16.msra.mxu0 0
  %89 = vmatprep.subr.bf16.mxu0 0
  %90 = vmatpush2.bf16.msra.mxu0 0
  %91 = vmatprep.subr.bf16.mxu0 0
  %92 = vmatpush2.bf16.msra.mxu0 0
  %93 = vmatprep.subr.bf16.mxu0 0
  %94 = vmatpush2.bf16.msra.mxu0 0
  %95 = vmatprep.subr.bf16.mxu0 0
  %96 = vmatpush2.bf16.msra.mxu0 0
  %97 = vmatprep.subr.bf16.mxu0 0
  %98 = vmatpush2.bf16.msra.mxu0 0
  %99 = vmatprep.subr.bf16.mxu0 0
  %100 = vmatpush2.bf16.msra.mxu0 0
  %101 = vmatprep.subr.bf16.mxu0 0
  %102 = vmatpush2.bf16.msra.mxu0 0
  %103 = vmatprep.mubr.bf16.mxu0 0
  %104 = vmatmul.mubr.bf16.gmra.mxu0 %v66
  %v105 = vpop.f32.mrf.mxu0
  %v106 = vadd.f32 %v31, %v105
  %v107 = vpop.f32.mrf.mxu0
  %v108 = vpop.f32.mrf.mxu0
  %v109 = vadd.f32 %v31, %v108
  %v110 = vpop.f32.mrf.mxu0
  %111 = vmatprep.mubr.bf16.mxu0 0
  %112 = vmatmul.mubr.bf16.gmra.mxu0 %v69
  %v113 = vpop.f32.mrf.mxu0
  %v114 = vadd.f32 %v31, %v113
  %v115 = vpop.f32.mrf.mxu0
  %v116 = vpop.f32.mrf.mxu0
  %v117 = vpop.f32.mrf.mxu0
  %118 = vdwg.mxu0
  %v119 = vpack.c.bf16 %v109, %v106
  %v120 = vpack.c.bf16 %v114, %v114
  %v123 = vunpack.c.l.b16 %v119
  %v124 = vunpack.c.h.b16 %v119
  %v125 = vunpack.c.l.b16 %v120
  %v126 = vpack.c.b16 %v123, %v123
  %v127 = vpack.c.b16 %v124, %v124
  %v128 = vpack.c.b16 %v125, %v125
  %vm132 = vcmask 519168
  %133 = vst.msk [vmem:[%s3] sm:$0xf] %vm132, %v126
  %134 = vst.msk [vmem:[%s3 + $0x4] sm:$0xf] %vm132, %v127
  %vm135 = vcmask 516096
  %136 = vst.msk [vmem:[%s3 + $0x8] sm:$0x1] %vm135, %v128
  // Predicated region
  $region14: #{audio_projection_forward.20} parent=0 // pred_check
    _
  $region15: #{audio_projection_forward.20} parent=0 // pred_check_branch
    %138 = sbr.rel (0) target = $region17
  $region16: #{audio_projection_forward.20} parent=0 // pred_region
    _
  $region17: #{audio_projection_forward.20} parent=0 // pred_fallthru
    _
  // Predicated region
  $region18: #{audio_projection_forward.20} parent=0 // pred_check
    _
  $region19: #{audio_projection_forward.20} parent=0 // pred_check_branch
    %140 = sbr.rel (0) target = $region21
  $region20: #{audio_projection_forward.20} parent=0 // pred_region
    _
  $region21: #{audio_projection_forward.20} parent=0 // pred_fallthru
    _

// kernel: audio_projection_forward.22
$region0: #{audio_projection_forward.22}
  #allocation0 [shape = 'u32[]', space=smem, size = 0x4, offset = 0x4, fixed_abs, tag = 'smem constant byte address 0x4 - core index']
  #allocation1 [shape = 'u32[144,128]{1,0:T(1,128)}', space=vmem, size = 0x12000, scoped, tag = 'internal scratch']
  %s0 = inlined_call_operand.vmem [shape: bf16[2,9,64], index: 0, kind: input, shape index: {}]
  %s1 = inlined_call_operand.vmem [shape: bf16[2,8,64], index: 1, kind: input, shape index: {}]
  %s2 = inlined_call_operand.vmem [shape: bf16[2,8,64], index: 2, kind: input, shape index: {}]
  %s3 = inlined_call_operand.vmem [shape: bf16[2,9,64], index: 3, kind: output, shape index: {}]
  %s4 = sld [smem:[#allocation0]]
  $region45: #{audio_projection_forward.22} parent=0
    _
  %s6 = ssub.s32 1, %s4
  %s7 = scalar_select 0, %s6, %s4
  loop: start=0, step=1, limit=4
  $region2: #{audio_projection_forward.22} parent=0 // loop_pre_header
    _
  $region3: #{audio_projection_forward.22} parent=0 // loop_header
    %s9 = sphi 0, %s13
    %p10 = scmp.ge.s32.totalorder %s9, 4
    %s19 = sphi 0, %s21
    %s22 = sphi 0, %s19
    %s23 = sphi 0, %s22
    %s39 = sphi 0, %s23
    %s45 = sphi 0, %s47
    %s48 = sphi 0, %s45
    %s49 = sphi 0, %s48
    %s65 = sphi 0, %s49
    %s71 = sphi 0, %s73
    %s74 = sphi 0, %s71
    %s75 = sphi 0, %s74
    %s91 = sphi 0, %s75
    %s97 = sphi 0, %s99
    %s100 = sphi 0, %s97
    %s101 = sphi 0, %s100
    %s117 = sphi 0, %s101
  $region4: #{audio_projection_forward.22} parent=0 // loop_header_branch
    %12 = sbr.rel (%p10) target = $region8
  $region5: #{audio_projection_forward.22} parent=0 // loop_body
    %s14 = ssub.s32 %s9, 1
    %s15 = ssub.s32 %s9, 2
    %s16 = sadd.s32 %s9, 1
    %s17 = ssub.s32 %s9, %s16
    %p18 = scmp.eq.s32.totalorder %s17, 0
    %s20 = sadd.s32 %s19, 1
    %s21 = scalar_select %p18, %s19, %s20
    %p24 = pneg %p18
    %p25 = scmp.eq.s32.totalorder %s9, 1
    %p26 = por %p24, %p25
    %p27 = scmp.ne.s32.totalorder %s19, %s22
    %p28 = scmp.eq.s32.totalorder %s9, 0
    %p29 = por %p27, %p28
    %p30 = scmp.ne.s32.totalorder %s19, %s22
    %p31 = scmp.eq.s32.totalorder %s14, 1
    %p32 = por %p30, %p31
    %p33 = scmp.ne.s32.totalorder %s22, %s23
    %p34 = scmp.eq.s32.totalorder %s14, 0
    %p35 = por %p33, %p34
    %p36 = scmp.ne.s32.totalorder %s22, %s23
    %p37 = scmp.eq.s32.totalorder %s15, 1
    %p38 = por %p36, %p37
    %p40 = scmp.ne.s32.totalorder %s23, %s39
    %p41 = scmp.eq.s32.totalorder %s15, 0
    %p42 = por %p40, %p41
    %s43 = ssub.s32 %s9, %s16
    %p44 = scmp.eq.s32.totalorder %s43, 0
    %s46 = sadd.s32 %s45, 1
    %s47 = scalar_select %p44, %s45, %s46
    %p50 = pneg %p44
    %p51 = scmp.eq.s32.totalorder %s9, 1
    %p52 = por %p50, %p51
    %p53 = scmp.ne.s32.totalorder %s45, %s48
    %p54 = scmp.eq.s32.totalorder %s9, 0
    %p55 = por %p53, %p54
    %p56 = scmp.ne.s32.totalorder %s45, %s48
    %p57 = scmp.eq.s32.totalorder %s14, 1
    %p58 = por %p56, %p57
    %p59 = scmp.ne.s32.totalorder %s48, %s49
    %p60 = scmp.eq.s32.totalorder %s14, 0
    %p61 = por %p59, %p60
    %p62 = scmp.ne.s32.totalorder %s48, %s49
    %p63 = scmp.eq.s32.totalorder %s15, 1
    %p64 = por %p62, %p63
    %p66 = scmp.ne.s32.totalorder %s49, %s65
    %p67 = scmp.eq.s32.totalorder %s15, 0
    %p68 = por %p66, %p67
    %s69 = ssub.s32 %s9, %s16
    %p70 = scmp.eq.s32.totalorder %s69, 0
    %s72 = sadd.s32 %s71, 1
    %s73 = scalar_select %p70, %s71, %s72
    %p76 = pneg %p70
    %p77 = scmp.eq.s32.totalorder %s9, 1
    %p78 = por %p76, %p77
    %p79 = scmp.ne.s32.totalorder %s71, %s74
    %p80 = scmp.eq.s32.totalorder %s9, 0
    %p81 = por %p79, %p80
    %p82 = scmp.ne.s32.totalorder %s71, %s74
    %p83 = scmp.eq.s32.totalorder %s14, 1
    %p84 = por %p82, %p83
    %p85 = scmp.ne.s32.totalorder %s74, %s75
    %p86 = scmp.eq.s32.totalorder %s14, 0
    %p87 = por %p85, %p86
    %p88 = scmp.ne.s32.totalorder %s74, %s75
    %p89 = scmp.eq.s32.totalorder %s15, 1
    %p90 = por %p88, %p89
    %p92 = scmp.ne.s32.totalorder %s75, %s91
    %p93 = scmp.eq.s32.totalorder %s15, 0
    %p94 = por %p92, %p93
    %s95 = ssub.s32 %s9, %s16
    %p96 = scmp.eq.s32.totalorder %s95, 0
    %s98 = sadd.s32 %s97, 1
    %s99 = scalar_select %p96, %s97, %s98
    %p102 = pneg %p96
    %p103 = scmp.eq.s32.totalorder %s9, 1
    %p104 = por %p102, %p103
    %p105 = scmp.ne.s32.totalorder %s97, %s100
    %p106 = scmp.eq.s32.totalorder %s9, 0
    %p107 = por %p105, %p106
    %p108 = scmp.ne.s32.totalorder %s97, %s100
    %p109 = scmp.eq.s32.totalorder %s14, 1
    %p110 = por %p108, %p109
    %p111 = scmp.ne.s32.totalorder %s100, %s101
    %p112 = scmp.eq.s32.totalorder %s14, 0
    %p113 = por %p111, %p112
    %p114 = scmp.ne.s32.totalorder %s100, %s101
    %p115 = scmp.eq.s32.totalorder %s15, 1
    %p116 = por %p114, %p115
    %p118 = scmp.ne.s32.totalorder %s101, %s117
    %p119 = scmp.eq.s32.totalorder %s15, 0
    %p120 = por %p118, %p119
    %p121 = scmp.le.s32.totalorder 1, %s9
    %p122 = scmp.lt.s32.totalorder %s9, 3
    %p123 = pnand %p121, %p122
    %p124 = pneg %p123
    // Predicated region
    $region9: #{audio_projection_forward.22} parent=5 // pred_check
      _
    $region10: #{audio_projection_forward.22} parent=5 // pred_check_branch
      %126 = sbr.rel (%p123) target = $region12
    $region11: #{audio_projection_forward.22} parent=5 // pred_region
      %s127 = ssub.s32 %s9, 1
    $region12: #{audio_projection_forward.22} parent=5 // pred_fallthru
      _
    %p128 = scmp.lt.s32.totalorder %s9, 2
    // Predicated region
    $region13: #{audio_projection_forward.22} parent=5 // pred_check
      %p129 = pneg %p128
    $region14: #{audio_projection_forward.22} parent=5 // pred_check_branch
      %131 = sbr.rel (%p129) target = $region16
    $region15: #{audio_projection_forward.22} parent=5 // pred_region
      // Predicated region
      $region17: #{audio_projection_forward.22} parent=15 // pred_check
        %p132 = pneg %p29
      $region18: #{audio_projection_forward.22} parent=15 // pred_check_branch
        %134 = sbr.rel (%p132) target = $region20
      $region19: #{audio_projection_forward.22} parent=15 // pred_region
        %p135 = scmp.lt.s32.totalorder %s9, 1
        %s136 = scalar_select %p135, %s9, 1
        %s137 = smul.addr %s136, 2
        %s138 = smul.addr %s137, 4
        %s139 = scalar_lea.vmem %s0, %s138
      $region20: #{audio_projection_forward.22} parent=15 // pred_fallthru
        _
      // Predicated region
      $region21: #{audio_projection_forward.22} parent=15 // pred_check
        %p140 = pneg %p55
      $region22: #{audio_projection_forward.22} parent=15 // pred_check_branch
        %142 = sbr.rel (%p140) target = $region24
      $region23: #{audio_projection_forward.22} parent=15 // pred_region
        %p143 = scmp.lt.s32.totalorder %s9, 1
        %s144 = scalar_select %p143, %s9, 1
        %s145 = smul.addr %s144, 4
        %s146 = scalar_lea.vmem %s1, %s145
      $region24: #{audio_projection_forward.22} parent=15 // pred_fallthru
        _
      // Predicated region
      $region25: #{audio_projection_forward.22} parent=15 // pred_check
        %p147 = pneg %p81
      $region26: #{audio_projection_forward.22} parent=15 // pred_check_branch
        %149 = sbr.rel (%p147) target = $region28
      $region27: #{audio_projection_forward.22} parent=15 // pred_region
        %p150 = scmp.lt.s32.totalorder %s9, 1
        %s151 = scalar_select %p150, %s9, 1
        %s152 = smul.addr %s151, 4
        %s153 = scalar_lea.vmem %s2, %s152
      $region28: #{audio_projection_forward.22} parent=15 // pred_fallthru
        _
    $region16: #{audio_projection_forward.22} parent=5 // pred_fallthru
      _
    %p154 = scmp.le.s32.totalorder 1, %s9
    %p155 = scmp.lt.s32.totalorder %s9, 3
    %p156 = pnand %p154, %p155
    %p157 = pneg %p156
    // Predicated region
    $region29: #{audio_projection_forward.22} parent=5 // pred_check
      _
    $region30: #{audio_projection_forward.22} parent=5 // pred_check_branch
      %159 = sbr.rel (%p156) target = $region32
    $region31: #{audio_projection_forward.22} parent=5 // pred_region
      %s160 = ssub.s32 %s9, 1
      %p161 = scmp.lt.s32.totalorder %s14, 1
      %s162 = scalar_select %p161, %s14, 1
      %s163 = smul.addr %s162, 2
      %s164 = smul.addr %s163, 4
      %s165 = scalar_lea.vmem %s0, %s164
      %p166 = pneg %p35
      %p167 = pneg %p32
      %p168 = scmp.lt.s32.totalorder %s14, 1
      %s169 = scalar_select %p168, %s14, 1
      %s170 = smul.addr %s169, 4
      %s171 = scalar_lea.vmem %s1, %s170
      %p172 = pneg %p61
      %p173 = pneg %p58
      %p174 = scmp.lt.s32.totalorder %s14, 1
      %s175 = scalar_select %p174, %s14, 1
      %s176 = smul.addr %s175, 4
      %s177 = scalar_lea.vmem %s2, %s176
      %p178 = pneg %p87
      %p179 = pneg %p84
      %p180 = pneg %p113
      %p181 = pneg %p110
      %p182 = scmp.lt.s32.totalorder %s14, 1
      %s183 = scalar_select %p182, %s14, 1
      %s184 = smul.addr %s183, 2
      %s185 = smul.addr %s184, 4
      %s186 = scalar_lea.vmem %s3, %s185
      %p187 = scmp.lt.s32.totalorder %s14, 1
      %s188 = scalar_select %p187, %s14, 1
      %s189 = smul.addr %s188, 2
      %s190 = smul.addr %s189, 4
      %s191 = scalar_lea.vmem %s0, %s190
      %p192 = scmp.lt.s32.totalorder %s14, 1
      %s193 = scalar_select %p192, %s14, 1
      %s194 = smul.addr %s193, 4
      %s195 = scalar_lea.vmem %s1, %s194
      %p196 = scmp.lt.s32.totalorder %s14, 1
      %s197 = scalar_select %p196, %s14, 1
      %s198 = smul.addr %s197, 4
      %s199 = scalar_lea.vmem %s2, %s198
      %p200 = scmp.lt.s32.totalorder %s14, 1
      %s201 = scalar_select %p200, %s14, 1
      %s202 = smul.addr %s201, 2
      %s203 = smul.addr %s202, 4
      %s204 = scalar_lea.vmem %s3, %s203
      %v206 = vld [vmem:[%s191] sm:$0xf]
      %v207 = vld [vmem:[%s191 + $0x4] sm:$0x1]
      %v208 = vld [vmem:[%s195] sm:$0xf]
      %v209 = vld [vmem:[%s199] sm:$0xf]
      %v212 = vunpack.c.l.b16 %v206
      %v213 = vunpack.c.l.b16 %v207
      %v214 = vpack.c.b16 %v213, %v212
      %vm215 = vcmask 523264
      %v217 = vsel %vm215, %v214, 0
      %v220 = vsel %vm215, %v208, 0
      %222 = vmatprep.subr.bf16.mxu0 0
      %223 = vmatpush1.bf16.xpose.msra.mxu0 0
      %224 = vmatprep.subr.bf16.mxu0 0
      %225 = vmatpush1.bf16.xpose.msra.mxu0 0
      %226 = vmatprep.subr.bf16.mxu0 0
      %227 = vmatpush1.bf16.xpose.msra.mxu0 0
      %228 = vmatprep.subr.bf16.mxu0 0
      %229 = vmatpush1.bf16.xpose.msra.mxu0 0
      %230 = vmatprep.subr.bf16.mxu0 0
      %231 = vmatpush1.bf16.xpose.msra.mxu0 0
      %232 = vmatprep.subr.bf16.mxu0 0
      %233 = vmatpush1.bf16.xpose.msra.mxu0 0
      %234 = vmatprep.subr.bf16.mxu0 0
      %235 = vmatpush1.bf16.xpose.msra.mxu0 0
      %236 = vmatprep.subr.bf16.mxu0 0
      %237 = vmatpush1.bf16.xpose.msra.mxu0 %v220
      %238 = vmatprep.subr.bf16.mxu0 0
      %239 = vmatpush2.bf16.xpose.msra.mxu0 0
      %240 = vmatprep.subr.bf16.mxu0 0
      %241 = vmatpush2.bf16.xpose.msra.mxu0 0
      %242 = vmatprep.subr.bf16.mxu0 0
      %243 = vmatpush2.bf16.xpose.msra.mxu0 0
      %244 = vmatprep.subr.bf16.mxu0 0
      %245 = vmatpush2.bf16.xpose.msra.mxu0 0
      %246 = vmatprep.subr.bf16.mxu0 0
      %247 = vmatpush2.bf16.xpose.msra.mxu0 0
      %248 = vmatprep.subr.bf16.mxu0 0
      %249 = vmatpush2.bf16.xpose.msra.mxu0 0
      %250 = vmatprep.subr.bf16.mxu0 0
      %251 = vmatpush2.bf16.xpose.msra.mxu0 0
      %252 = vmatprep.subr.bf16.mxu0 0
      %253 = vmatpush2.bf16.xpose.msra.mxu0 0
      %254 = vmatprep.mubr.bf16.mxu0 0
      %255 = vmatmul.mubr.bf16.gmra.mxu0 %v217
      %v256 = vpop.f32.mrf.mxu0
      %v257 = vadd.f32 0.0, %v256
      %v258 = vpop.f32.mrf.mxu0
      %v259 = vpop.f32.mrf.mxu0
      %v260 = vadd.f32 0.0, %v259
      %v261 = vpop.f32.mrf.mxu0
      %262 = vdwg.mxu0
      %v263 = vmul.f32 %v257, 0.125
      %v264 = vmul.f32 %v260, 0.125
      %vm265 = vcmask 64512
      %v266 = vsel %vm265, %v263, -inf
      %267 = vmax.xlane.f32.xlu0 %v266
      %v268 = vpop.xlane.xlu0 %267
      %vm269 = vcmask 57344
      %v270 = vsel %vm269, %v264, -inf
      %271 = vmax.xlane.f32.xlu0 %v270
      %v272 = vpop.xlane.xlu0 %271
      %v273 = vsub.f32 %v263, %v268
      %v274 = vsub.f32 %v264, %v272
      %v275 = vmul.f32 %v273, 1.442695
      %v276 = vpow.pop %v275
      %v277 = vmul.f32 %v274, 1.442695
      %v278 = vpow.pop %v277
      %v279 = vsel %vm265, %v276, 0.0
      %280 = vadd.xlane.f32.xlu0 %v279
      %v281 = vpop.xlane.xlu0 %280
      %v282 = vsel %vm269, %v278, 0.0
      %283 = vadd.xlane.f32.xlu0 %v282
      %v284 = vpop.xlane.xlu0 %283
      %v285 = vrcp.pop %v281
      %v286 = vrcp.pop %v284
      %v287 = vmul.f32 %v276, %v285
      %v288 = vmul.f32 %v278, %v286
      %v289 = vpack.c.bf16 %v288, %v287
      %v291 = vsel %vm265, %v289, 0
      %vm293 = vcmask 1043456
      %v295 = vsel %vm293, %v209, 0
      %297 = vmatprep.subr.bf16.mxu0 0
      %298 = vmatpush1.bf16.msra.mxu0 0
      %299 = vmatprep.subr.bf16.mxu0 0
      %300 = vmatpush1.bf16.msra.mxu0 0
      %301 = vmatprep.subr.bf16.mxu0 0
      %302 = vmatpush1.bf16.msra.mxu0 0
      %303 = vmatprep.subr.bf16.mxu0 0
      %304 = vmatpush1.bf16.msra.mxu0 0
      %305 = vmatprep.subr.bf16.mxu0 0
      %306 = vmatpush1.bf16.msra.mxu0 0
      %307 = vmatprep.subr.bf16.mxu0 0
      %308 = vmatpush1.bf16.msra.mxu0 0
      %309 = vmatprep.subr.bf16.mxu0 0
      %310 = vmatpush1.bf16.msra.mxu0 0
      %311 = vmatprep.subr.bf16.mxu0 0
      %312 = vmatpush1.bf16.msra.mxu0 %v295
      %313 = vmatprep.subr.bf16.mxu0 0
      %314 = vmatpush2.bf16.msra.mxu0 0
      %315 = vmatprep.subr.bf16.mxu0 0
      %316 = vmatpush2.bf16.msra.mxu0 0
      %317 = vmatprep.subr.bf16.mxu0 0
      %318 = vmatpush2.bf16.msra.mxu0 0
      %319 = vmatprep.subr.bf16.mxu0 0
      %320 = vmatpush2.bf16.msra.mxu0 0
      %321 = vmatprep.subr.bf16.mxu0 0
      %322 = vmatpush2.bf16.msra.mxu0 0
      %323 = vmatprep.subr.bf16.mxu0 0
      %324 = vmatpush2.bf16.msra.mxu0 0
      %325 = vmatprep.subr.bf16.mxu0 0
      %326 = vmatpush2.bf16.msra.mxu0 0
      %327 = vmatprep.subr.bf16.mxu0 0
      %328 = vmatpush2.bf16.msra.mxu0 0
      %329 = vmatprep.mubr.bf16.mxu0 0
      %330 = vmatmul.mubr.bf16.gmra.mxu0 %v291
      %v331 = vpop.f32.mrf.mxu0
      %v332 = vadd.f32 0.0, %v331
      %v333 = vpop.f32.mrf.mxu0
      %v334 = vpop.f32.mrf.mxu0
      %v335 = vadd.f32 0.0, %v334
      %v336 = vpop.f32.mrf.mxu0
      %337 = vdwg.mxu0
      %v338 = vpack.c.bf16 %v335, %v332
      %v340 = vunpack.c.l.b16 %v338
      %v341 = vunpack.c.h.b16 %v338
      %v342 = vpack.c.b16 %v340, %v340
      %v343 = vpack.c.b16 %v341, %v341
      %vm346 = vcmask 519168
      %347 = vst.msk [vmem:[%s204] sm:$0xf] %vm346, %v342
      %vm348 = vcmask 516096
      %vm349 = vsmask.f32 256
      %vm350 = vmand %vm348, %vm349
      %v351 = vld [vmem:[%s204 + $0x4] sm:$0x1]
      %v352 = vsel %vm350, %v343, %v351
      %353 = vst [vmem:[%s204 + $0x4] sm:$0x1] %v352
      %p354 = scmp.lt.s32.totalorder %s14, 1
      %s355 = scalar_select %p354, %s14, 1
      %s356 = smul.addr %s355, 2
      %s357 = smul.addr %s356, 4
      %s358 = scalar_lea.vmem %s3, %s357
      // Predicated region
      $region33: #{audio_projection_forward.22} parent=31 // pred_check
        %p359 = pneg %p110
      $region34: #{audio_projection_forward.22} parent=31 // pred_check_branch
        %361 = sbr.rel (%p359) target = $region36
      $region35: #{audio_projection_forward.22} parent=31 // pred_region
        _
      $region36: #{audio_projection_forward.22} parent=31 // pred_fallthru
        _
    $region32: #{audio_projection_forward.22} parent=5 // pred_fallthru
      _
    %p362 = scmp.le.s32.totalorder 2, %s9
    // Predicated region
    $region37: #{audio_projection_forward.22} parent=5 // pred_check
      %p363 = pneg %p362
    $region38: #{audio_projection_forward.22} parent=5 // pred_check_branch
      %365 = sbr.rel (%p363) target = $region40
    $region39: #{audio_projection_forward.22} parent=5 // pred_region
      %s366 = ssub.s32 %s9, 2
      // Predicated region
      $region41: #{audio_projection_forward.22} parent=39 // pred_check
        %p367 = pneg %p116
      $region42: #{audio_projection_forward.22} parent=39 // pred_check_branch
        %369 = sbr.rel (%p367) target = $region44
      $region43: #{audio_projection_forward.22} parent=39 // pred_region
        %p370 = scmp.lt.s32.totalorder %s15, 1
        %s371 = scalar_select %p370, %s15, 1
        %s372 = smul.addr %s371, 2
        %s373 = smul.addr %s372, 4
        %s374 = scalar_lea.vmem %s3, %s373
      $region44: #{audio_projection_forward.22} parent=39 // pred_fallthru
        _
    $region40: #{audio_projection_forward.22} parent=5 // pred_fallthru
      _
  $region6: #{audio_projection_forward.22} parent=0 // loop_footer
    %s13 = sadd.s32 1, %s9
  $region7: #{audio_projection_forward.22} parent=0 // loop_footer_branch
    %8 = sbr.rel target = $region3
  $region8: #{audio_projection_forward.22} parent=0 // loop_exit
    _

// kernel: audio_projection_forward.21
$region0: #{audio_projection_forward.21}
  #allocation0 [shape = 'u32[]', space=smem, size = 0x4, offset = 0x4, fixed_abs, tag = 'smem constant byte address 0x4 - core index']
  #allocation1 [shape = 'u32[144,128]{1,0:T(1,128)}', space=vmem, size = 0x12000, scoped, tag = 'internal scratch']
  %s0 = inlined_call_operand.vmem [shape: bf16[16,64], index: 0, kind: input, shape index: {}]
  %s1 = inlined_call_operand.vmem [shape: bf16[64,128], index: 1, kind: input, shape index: {}]
  %s2 = inlined_call_operand.vmem [shape: bf16[1,128], index: 2, kind: input, shape index: {}]
  %s3 = inlined_call_operand.vmem [shape: bf16[16,128], index: 3, kind: output, shape index: {}]
  %s4 = sld [smem:[#allocation0]]
  $region22: #{audio_projection_forward.21} parent=0
    _
  %s6 = ssub.s32 1, %s4
  %s7 = scalar_select 0, %s6, %s4
  // Predicated region
  $region2: #{audio_projection_forward.21} parent=0 // pred_check
    _
  $region3: #{audio_projection_forward.21} parent=0 // pred_check_branch
    %9 = sbr.rel (0) target = $region5
  $region4: #{audio_projection_forward.21} parent=0 // pred_region
    _
  $region5: #{audio_projection_forward.21} parent=0 // pred_fallthru
    _
  // Predicated region
  $region6: #{audio_projection_forward.21} parent=0 // pred_check
    _
  $region7: #{audio_projection_forward.21} parent=0 // pred_check_branch
    %11 = sbr.rel (0) target = $region9
  $region8: #{audio_projection_forward.21} parent=0 // pred_region
    _
  $region9: #{audio_projection_forward.21} parent=0 // pred_fallthru
    _
  // Predicated region
  $region10: #{audio_projection_forward.21} parent=0 // pred_check
    _
  $region11: #{audio_projection_forward.21} parent=0 // pred_check_branch
    %13 = sbr.rel (0) target = $region13
  $region12: #{audio_projection_forward.21} parent=0 // pred_region
    _
  $region13: #{audio_projection_forward.21} parent=0 // pred_fallthru
    _
  %v15 = vld [vmem:[%s0] sm:$0xf]
  %v16 = vld [vmem:[%s0 + $0x4] sm:$0xf]
  %v17 = vld [vmem:[%s1] sm:$0xf]
  %v18 = vld [vmem:[%s1 + $0x4] sm:$0xf]
  %v19 = vld [vmem:[%s1 + $0x8] sm:$0xf]
  %v20 = vld [vmem:[%s1 + $0xc] sm:$0xf]
  %v21 = vld [vmem:[%s1 + $0x10] sm:$0xf]
  %v22 = vld [vmem:[%s1 + $0x14] sm:$0xf]
  %v23 = vld [vmem:[%s1 + $0x18] sm:$0xf]
  %v24 = vld [vmem:[%s1 + $0x1c] sm:$0xf]
  %v25 = vld [vmem:[%s2] sm:$0x1]
  %v26 = vunpack.c.l.bf16 %v25
  %v27 = vlaneseq
  %v28 = vshrl.u32 %v27, 7
  %v29 = vsub.s32 0, %v28
  %v30 = vrot.slane %v26, %v29
  %v33 = vunpack.c.l.b16 %v15
  %v34 = vunpack.c.l.b16 %v16
  %v35 = vpack.c.b16 %v34, %v33
  %v44 = vunpack.c.l.b16 %v17
  %v45 = vunpack.c.l.b16 %v18
  %v46 = vunpack.c.l.b16 %v19
  %v47 = vunpack.c.l.b16 %v20
  %v48 = vunpack.c.l.b16 %v21
  %v49 = vunpack.c.l.b16 %v22
  %v50 = vunpack.c.l.b16 %v23
  %v51 = vunpack.c.l.b16 %v24
  %v52 = vpack.c.b16 %v45, %v44
  %v53 = vpack.c.b16 %v47, %v46
  %v54 = vpack.c.b16 %v49, %v48
  %v55 = vpack.c.b16 %v51, %v50
  %vm60 = vcmask 523264
  %v62 = vsel %vm60, %v35, 0
  %64 = vmatprep.subr.bf16.mxu0 0
  %65 = vmatpush1.bf16.msra.mxu0 0
  %66 = vmatprep.subr.bf16.mxu0 0
  %67 = vmatpush1.bf16.msra.mxu0 0
  %68 = vmatprep.subr.bf16.mxu0 0
  %69 = vmatpush1.bf16.msra.mxu0 0
  %70 = vmatprep.subr.bf16.mxu0 0
  %71 = vmatpush1.bf16.msra.mxu0 0
  %72 = vmatprep.subr.bf16.mxu0 0
  %73 = vmatpush1.bf16.msra.mxu0 %v55
  %74 = vmatprep.subr.bf16.mxu0 0
  %75 = vmatpush1.bf16.msra.mxu0 %v54
  %76 = vmatprep.subr.bf16.mxu0 0
  %77 = vmatpush1.bf16.msra.mxu0 %v53
  %78 = vmatprep.subr.bf16.mxu0 0
  %79 = vmatpush1.bf16.msra.mxu0 %v52
  %80 = vmatprep.subr.bf16.mxu0 0
  %81 = vmatpush2.bf16.msra.mxu0 0
  %82 = vmatprep.subr.bf16.mxu0 0
  %83 = vmatpush2.bf16.msra.mxu0 0
  %84 = vmatprep.subr.bf16.mxu0 0
  %85 = vmatpush2.bf16.msra.mxu0 0
  %86 = vmatprep.subr.bf16.mxu0 0
  %87 = vmatpush2.bf16.msra.mxu0 0
  %88 = vmatprep.subr.bf16.mxu0 0
  %89 = vmatpush2.bf16.msra.mxu0 0
  %90 = vmatprep.subr.bf16.mxu0 0
  %91 = vmatpush2.bf16.msra.mxu0 0
  %92 = vmatprep.subr.bf16.mxu0 0
  %93 = vmatpush2.bf16.msra.mxu0 0
  %94 = vmatprep.subr.bf16.mxu0 0
  %95 = vmatpush2.bf16.msra.mxu0 0
  %96 = vmatprep.mubr.bf16.mxu0 0
  %97 = vmatmul.mubr.bf16.gmra.mxu0 %v62
  %v98 = vpop.f32.mrf.mxu0
  %v99 = vadd.f32 %v30, %v98
  %v100 = vpop.f32.mrf.mxu0
  %v101 = vpop.f32.mrf.mxu0
  %v102 = vadd.f32 %v30, %v101
  %v103 = vpop.f32.mrf.mxu0
  %104 = vdwg.mxu0
  %v105 = vpack.c.bf16 %v102, %v99
  %v107 = vunpack.c.l.b16 %v105
  %v108 = vunpack.c.h.b16 %v105
  %v109 = vpack.c.b16 %v107, %v107
  %v110 = vpack.c.b16 %v108, %v108
  %113 = vst [vmem:[%s3] sm:$0xf] %v109
  %114 = vst [vmem:[%s3 + $0x4] sm:$0xf] %v110
  // Predicated region
  $region14: #{audio_projection_forward.21} parent=0 // pred_check
    _
  $region15: #{audio_projection_forward.21} parent=0 // pred_check_branch
    %116 = sbr.rel (0) target = $region17
  $region16: #{audio_projection_forward.21} parent=0 // pred_region
    _
  $region17: #{audio_projection_forward.21} parent=0 // pred_fallthru
    _
  // Predicated region
  $region18: #{audio_projection_forward.21} parent=0 // pred_check
    _
  $region19: #{audio_projection_forward.21} parent=0 // pred_check_branch
    %118 = sbr.rel (0) target = $region21
  $region20: #{audio_projection_forward.21} parent=0 // pred_region
    _
  $region21: #{audio_projection_forward.21} parent=0 // pred_fallthru
    _

// kernel: tile.13
$region0: #{tile.13}
  #allocation0 [shape = 's32[1]{0}', space=sflag, size = 0x4, scoped, tag = 'scoped memory for tile.13']
  %s0 = inlined_call_operand.vmem [shape: bf16[64], index: 0, kind: input, shape index: {}]
  %s1 = inlined_call_operand.vmem [shape: bf16[4,64], index: 1, kind: output, shape index: {}]
  // Predicated region
  $region2: #{tile.13} parent=0 // pred_check
    _
  $region3: #{tile.13} parent=0 // pred_check_branch
    %3 = sbr.rel (0) target = $region5
  $region4: #{tile.13} parent=0 // pred_region
    _
  $region5: #{tile.13} parent=0 // pred_fallthru
    _
  %v4 = vld [vmem:[%s0] ss:$0 sm:$0xff]
  %v5 = vunpack.i.l.bf16 %v4
  %v7 = vunpack.i.h.bf16 %v4
  %v9 = vpack.c.bf16 0.0, %v5
  %10 = vst [vmem:[%s1] sm:$0x3] %v9

// kernel: tile.14
$region0: #{tile.14}
  %s0 = inlined_call_operand.vmem [shape: bf16[4,64], index: 0, kind: input, shape index: {}]
  %s1 = inlined_call_operand.vmem [shape: bf16[1,256], index: 1, kind: output, shape index: {}]
  $region1: #{tile.14} parent=0
    #allocation0 [shape = 'u8[8192]{0}', space=vmem, size = 0x2000, scoped, tag = 'scoped mem for output reshape']
    #allocation1 [shape = 'u8[4096]{0}', space=vmem, size = 0x1000, scoped, tag = 'scoped mem for input reshape']
    %s3 = smul.u32 2, 2
    %s4 = sshll.u32 1, %s3
    %s5 = ssub.s32 %s4, 1
    %s6 = sshrl.u32 %s5, 1
    %s7 = sor.u32 %s5, %s6
    %s8 = sand.u32 %s7, 85
    %s9 = sshrl.u32 %s8, 1
    %s10 = sor.u32 %s8, %s9
    %s11 = sand.u32 51, %s10
    %s12 = sshrl.u32 %s11, 2
    %s13 = sor.u32 %s11, %s12
    %s14 = sand.u32 15, %s13
    %v15 = vld [vmem:[%s0] sm:%s14]
    %v16 = vunpack.c.l.bf16 %v15
    %v17 = vunpack.c.h.bf16 %v15
    %18 = vst [vmem:[#allocation1] sm:%s5] %v16
    %s19 = smov 3
    %v20 = vld [vmem:[#allocation1] ss:$2 sm:%s19]
    %vm21 = vcmask 523264
    %22 = vst.msk [vmem:[#allocation0] ss:$8 sm:$0x3] %vm21, %v20
    %s23 = scalar_lea.vmem [#allocation1], 1
    %s24 = smov 3
    %v25 = vld [vmem:[%s23] ss:$2 sm:%s24]
    %26 = vrot.lane.b32.xlu0 %v25, 64
    %v27 = vpop.permute.xlu0 %26
    %vm28 = vcmask 1048064
    %29 = vst.msk [vmem:[#allocation0] ss:$8 sm:$0x3] %vm28, %v27
    %s31 = smul.u32 1, 2
    %s32 = sshll.u32 1, %s31
    %s33 = ssub.s32 %s32, 1
    %s34 = sshrl.u32 %s31, 1
    %v35 = vld [vmem:[#allocation0] sm:%s33]
    %v36 = vpack.c.bf16 0.0, %v35
    %s37 = sshll.u32 1, %s34
    %s38 = ssub.s32 %s37, 1
    %39 = vst [vmem:[%s1] sm:%s38] %v36
    %s40 = scalar_lea.vmem [#allocation0], 8
    %v41 = vld [vmem:[%s40] sm:%s33]
    %v42 = vpack.c.bf16 0.0, %v41
    %s43 = sshll.u32 1, %s34
    %s44 = ssub.s32 %s43, 1
    %s45 = scalar_lea.vmem %s1, 1
    %46 = vst [vmem:[%s45] sm:%s44] %v42

// kernel: audio_projection_forward.24
$region0: #{audio_projection_forward.24}
  #allocation0 [shape = 'u32[]', space=smem, size = 0x4, offset = 0x4, fixed_abs, tag = 'smem constant byte address 0x4 - core index']
  #allocation1 [shape = 'u32[144,128]{1,0:T(1,128)}', space=vmem, size = 0x12000, scoped, tag = 'internal scratch']
  %s0 = inlined_call_operand.vmem [shape: bf16[18,64], index: 0, kind: input, shape index: {}]
  %s1 = inlined_call_operand.vmem [shape: bf16[64,256], index: 1, kind: input, shape index: {}]
  %s2 = inlined_call_operand.vmem [shape: bf16[1,256], index: 2, kind: input, shape index: {}]
  %s3 = inlined_call_operand.vmem [shape: bf16[256,64], index: 3, kind: input, shape index: {}]
  %s4 = inlined_call_operand.vmem [shape: bf16[1,64], index: 4, kind: input, shape index: {}]
  %s5 = inlined_call_operand.vmem [shape: bf16[1,64], index: 5, kind: input, shape index: {}]
  %s6 = inlined_call_operand.vmem [shape: bf16[1,64], index: 6, kind: input, shape index: {}]
  %s7 = inlined_call_operand.vmem [shape: bf16[18,64], index: 7, kind: output, shape index: {}]
  %s8 = sld [smem:[#allocation0]]
  $region38: #{audio_projection_forward.24} parent=0
    _
  %s10 = ssub.s32 1, %s8
  %s11 = scalar_select 0, %s10, %s8
  // Predicated region
  $region2: #{audio_projection_forward.24} parent=0 // pred_check
    _
  $region3: #{audio_projection_forward.24} parent=0 // pred_check_branch
    %13 = sbr.rel (0) target = $region5
  $region4: #{audio_projection_forward.24} parent=0 // pred_region
    _
  $region5: #{audio_projection_forward.24} parent=0 // pred_fallthru
    _
  // Predicated region
  $region6: #{audio_projection_forward.24} parent=0 // pred_check
    _
  $region7: #{audio_projection_forward.24} parent=0 // pred_check_branch
    %15 = sbr.rel (0) target = $region9
  $region8: #{audio_projection_forward.24} parent=0 // pred_region
    _
  $region9: #{audio_projection_forward.24} parent=0 // pred_fallthru
    _
  // Predicated region
  $region10: #{audio_projection_forward.24} parent=0 // pred_check
    _
  $region11: #{audio_projection_forward.24} parent=0 // pred_check_branch
    %17 = sbr.rel (0) target = $region13
  $region12: #{audio_projection_forward.24} parent=0 // pred_region
    _
  $region13: #{audio_projection_forward.24} parent=0 // pred_fallthru
    _
  // Predicated region
  $region14: #{audio_projection_forward.24} parent=0 // pred_check
    _
  $region15: #{audio_projection_forward.24} parent=0 // pred_check_branch
    %19 = sbr.rel (0) target = $region17
  $region16: #{audio_projection_forward.24} parent=0 // pred_region
    _
  $region17: #{audio_projection_forward.24} parent=0 // pred_fallthru
    _
  // Predicated region
  $region18: #{audio_projection_forward.24} parent=0 // pred_check
    _
  $region19: #{audio_projection_forward.24} parent=0 // pred_check_branch
    %21 = sbr.rel (0) target = $region21
  $region20: #{audio_projection_forward.24} parent=0 // pred_region
    _
  $region21: #{audio_projection_forward.24} parent=0 // pred_fallthru
    _
  // Predicated region
  $region22: #{audio_projection_forward.24} parent=0 // pred_check
    _
  $region23: #{audio_projection_forward.24} parent=0 // pred_check_branch
    %23 = sbr.rel (0) target = $region25
  $region24: #{audio_projection_forward.24} parent=0 // pred_region
    _
  $region25: #{audio_projection_forward.24} parent=0 // pred_fallthru
    _
  // Predicated region
  $region26: #{audio_projection_forward.24} parent=0 // pred_check
    _
  $region27: #{audio_projection_forward.24} parent=0 // pred_check_branch
    %25 = sbr.rel (0) target = $region29
  $region28: #{audio_projection_forward.24} parent=0 // pred_region
    _
  $region29: #{audio_projection_forward.24} parent=0 // pred_fallthru
    _
  %v27 = vld [vmem:[%s0] sm:$0xf]
  %v28 = vld [vmem:[%s0 + $0x4] sm:$0xf]
  %v29 = vld [vmem:[%s0 + $0x8] sm:$0x1]
  %v30 = vld [vmem:[%s1] sm:$0xff]
  %v31 = vld [vmem:[%s1 + $0x8] sm:$0xff]
  %v32 = vld [vmem:[%s1 + $0x10] sm:$0xff]
  %v33 = vld [vmem:[%s1 + $0x18] sm:$0xff]
  %v34 = vld [vmem:[%s1 + $0x20] sm:$0xff]
  %v35 = vld [vmem:[%s1 + $0x28] sm:$0xff]
  %v36 = vld [vmem:[%s1 + $0x30] sm:$0xff]
  %v37 = vld [vmem:[%s1 + $0x38] sm:$0xff]
  %v38 = vld [vmem:[%s2] sm:$0x3]
  %v39 = vunpack.c.l.bf16 %v38
  %v41 = vlaneseq
  %v42 = vshrl.u32 %v41, 7
  %v43 = vsub.s32 0, %v42
  %v44 = vrot.slane %v39, %v43
  %v45 = vlaneseq
  %v46 = vshrl.u32 %v45, 7
  %v47 = vsub.s32 2, %v46
  %v48 = vrot.slane %v39, %v47
  %v51 = vlaneseq
  %v52 = vshrl.u32 %v51, 7
  %v53 = vsub.s32 0, %v52
  %v54 = vrot.slane %v44, %v53
  %v55 = vlaneseq
  %v56 = vshrl.u32 %v55, 7
  %v57 = vsub.s32 0, %v56
  %v58 = vrot.slane %v48, %v57
  %v62 = vunpack.c.l.b16 %v27
  %v63 = vunpack.c.l.b16 %v28
  %v64 = vunpack.c.l.b16 %v29
  %v65 = vpack.c.b16 %v63, %v62
  %v66 = vpack.c.b16 %v64, %v64
  %v75 = vunpack.c.l.b16 %v30
  %v76 = vunpack.c.h.b16 %v30
  %v77 = vunpack.c.l.b16 %v31
  %v78 = vunpack.c.h.b16 %v31
  %v79 = vunpack.c.l.b16 %v32
  %v80 = vunpack.c.h.b16 %v32
  %v81 = vunpack.c.l.b16 %v33
  %v82 = vunpack.c.h.b16 %v33
  %v83 = vunpack.c.l.b16 %v34
  %v84 = vunpack.c.h.b16 %v34
  %v85 = vunpack.c.l.b16 %v35
  %v86 = vunpack.c.h.b16 %v35
  %v87 = vunpack.c.l.b16 %v36
  %v88 = vunpack.c.h.b16 %v36
  %v89 = vunpack.c.l.b16 %v37
  %v90 = vunpack.c.h.b16 %v37
  %v91 = vpack.c.b16 %v77, %v75
  %v92 = vpack.c.b16 %v78, %v76
  %v93 = vpack.c.b16 %v81, %v79
  %v94 = vpack.c.b16 %v82, %v80
  %v95 = vpack.c.b16 %v85, %v83
  %v96 = vpack.c.b16 %v86, %v84
  %v97 = vpack.c.b16 %v89, %v87
  %v98 = vpack.c.b16 %v90, %v88
  %vm107 = vcmask 523264
  %v109 = vsel %vm107, %v65, 0
  %v112 = vsel %vm107, %v66, 0
  %114 = vmatprep.subr.bf16.mxu0 0
  %115 = vmatpush1.bf16.msra.mxu0 0
  %116 = vmatprep.subr.bf16.mxu0 0
  %117 = vmatpush1.bf16.msra.mxu0 0
  %118 = vmatprep.subr.bf16.mxu0 0
  %119 = vmatpush1.bf16.msra.mxu0 0
  %120 = vmatprep.subr.bf16.mxu0 0
  %121 = vmatpush1.bf16.msra.mxu0 0
  %122 = vmatprep.subr.bf16.mxu0 %v98
  %123 = vmatpush1.bf16.msra.mxu0 %v97
  %124 = vmatprep.subr.bf16.mxu0 %v96
  %125 = vmatpush1.bf16.msra.mxu0 %v95
  %126 = vmatprep.subr.bf16.mxu0 %v94
  %127 = vmatpush1.bf16.msra.mxu0 %v93
  %128 = vmatprep.subr.bf16.mxu0 %v92
  %129 = vmatpush1.bf16.msra.mxu0 %v91
  %130 = vmatprep.subr.bf16.mxu0 0
  %131 = vmatpush2.bf16.msra.mxu0 0
  %132 = vmatprep.subr.bf16.mxu0 0
  %133 = vmatpush2.bf16.msra.mxu0 0
  %134 = vmatprep.subr.bf16.mxu0 0
  %135 = vmatpush2.bf16.msra.mxu0 0
  %136 = vmatprep.subr.bf16.mxu0 0
  %137 = vmatpush2.bf16.msra.mxu0 0
  %138 = vmatprep.subr.bf16.mxu0 0
  %139 = vmatpush2.bf16.msra.mxu0 0
  %140 = vmatprep.subr.bf16.mxu0 0
  %141 = vmatpush2.bf16.msra.mxu0 0
  %142 = vmatprep.subr.bf16.mxu0 0
  %143 = vmatpush2.bf16.msra.mxu0 0
  %144 = vmatprep.subr.bf16.mxu0 0
  %145 = vmatpush2.bf16.msra.mxu0 0
  %146 = vmatprep.mubr.bf16.mxu0 0
  %147 = vmatmul.mubr.bf16.gmra.mxu0 %v109
  %v148 = vpop.f32.mrf.mxu0
  %v149 = vadd.f32 %v54, %v148
  %v150 = vpop.f32.mrf.mxu0
  %v151 = vadd.f32 %v58, %v150
  %v152 = vpop.f32.mrf.mxu0
  %v153 = vadd.f32 %v54, %v152
  %v154 = vpop.f32.mrf.mxu0
  %v155 = vadd.f32 %v58, %v154
  %156 = vmatprep.mubr.bf16.mxu0 0
  %157 = vmatmul.mubr.bf16.gmra.mxu0 %v112
  %v158 = vpop.f32.mrf.mxu0
  %v159 = vadd.f32 %v54, %v158
  %v160 = vpop.f32.mrf.mxu0
  %v161 = vadd.f32 %v58, %v160
  %v162 = vpop.f32.mrf.mxu0
  %v163 = vpop.f32.mrf.mxu0
  %164 = vdwg.mxu0
  %v165 = vmax.f32 %v149, 0.0
  %v166 = vmax.f32 %v151, 0.0
  %v167 = vmax.f32 %v153, 0.0
  %v168 = vmax.f32 %v155, 0.0
  %v169 = vmax.f32 %v159, 0.0
  %v170 = vmax.f32 %v161, 0.0
  %v171 = vpack.c.bf16 %v167, %v165
  %v172 = vpack.c.bf16 %v168, %v166
  %v173 = vpack.c.bf16 %v169, %v169
  %v174 = vpack.c.bf16 %v170, %v170
  %v175 = vld [vmem:[%s3] sm:$0xf]
  %v176 = vld [vmem:[%s3 + $0x4] sm:$0xf]
  %v177 = vld [vmem:[%s3 + $0x8] sm:$0xf]
  %v178 = vld [vmem:[%s3 + $0xc] sm:$0xf]
  %v179 = vld [vmem:[%s3 + $0x10] sm:$0xf]
  %v180 = vld [vmem:[%s3 + $0x14] sm:$0xf]
  %v181 = vld [vmem:[%s3 + $0x18] sm:$0xf]
  %v182 = vld [vmem:[%s3 + $0x1c] sm:$0xf]
  %v183 = vld [vmem:[%s3 + $0x20] sm:$0xf]
  %v184 = vld [vmem:[%s3 + $0x24] sm:$0xf]
  %v185 = vld [vmem:[%s3 + $0x28] sm:$0xf]
  %v186 = vld [vmem:[%s3 + $0x2c] sm:$0xf]
  %v187 = vld [vmem:[%s3 + $0x30] sm:$0xf]
  %v188 = vld [vmem:[%s3 + $0x34] sm:$0xf]
  %v189 = vld [vmem:[%s3 + $0x38] sm:$0xf]
  %v190 = vld [vmem:[%s3 + $0x3c] sm:$0xf]
  %v191 = vld [vmem:[%s3 + $0x40] sm:$0xf]
  %v192 = vld [vmem:[%s3 + $0x44] sm:$0xf]
  %v193 = vld [vmem:[%s3 + $0x48] sm:$0xf]
  %v194 = vld [vmem:[%s3 + $0x4c] sm:$0xf]
  %v195 = vld [vmem:[%s3 + $0x50] sm:$0xf]
  %v196 = vld [vmem:[%s3 + $0x54] sm:$0xf]
  %v197 = vld [vmem:[%s3 + $0x58] sm:$0xf]
  %v198 = vld [vmem:[%s3 + $0x5c] sm:$0xf]
  %v199 = vld [vmem:[%s3 + $0x60] sm:$0xf]
  %v200 = vld [vmem:[%s3 + $0x64] sm:$0xf]
  %v201 = vld [vmem:[%s3 + $0x68] sm:$0xf]
  %v202 = vld [vmem:[%s3 + $0x6c] sm:$0xf]
  %v203 = vld [vmem:[%s3 + $0x70] sm:$0xf]
  %v204 = vld [vmem:[%s3 + $0x74] sm:$0xf]
  %v205 = vld [vmem:[%s3 + $0x78] sm:$0xf]
  %v206 = vld [vmem:[%s3 + $0x7c] sm:$0xf]
  %v207 = vld [vmem:[%s4] sm:$0x1]
  %v208 = vunpack.c.l.bf16 %v207
  %v209 = vlaneseq
  %v210 = vshrl.u32 %v209, 7
  %v211 = vsub.s32 0, %v210
  %v212 = vrot.slane %v208, %v211
  %v245 = vunpack.c.l.b16 %v175
  %v246 = vunpack.c.l.b16 %v176
  %v247 = vunpack.c.l.b16 %v177
  %v248 = vunpack.c.l.b16 %v178
  %v249 = vunpack.c.l.b16 %v179
  %v250 = vunpack.c.l.b16 %v180
  %v251 = vunpack.c.l.b16 %v181
  %v252 = vunpack.c.l.b16 %v182
  %v253 = vunpack.c.l.b16 %v183
  %v254 = vunpack.c.l.b16 %v184
  %v255 = vunpack.c.l.b16 %v185
  %v256 = vunpack.c.l.b16 %v186
  %v257 = vunpack.c.l.b16 %v187
  %v258 = vunpack.c.l.b16 %v188
  %v259 = vunpack.c.l.b16 %v189
  %v260 = vunpack.c.l.b16 %v190
  %v261 = vunpack.c.l.b16 %v191
  %v262 = vunpack.c.l.b16 %v192
  %v263 = vunpack.c.l.b16 %v193
  %v264 = vunpack.c.l.b16 %v194
  %v265 = vunpack.c.l.b16 %v195
  %v266 = vunpack.c.l.b16 %v196
  %v267 = vunpack.c.l.b16 %v197
  %v268 = vunpack.c.l.b16 %v198
  %v269 = vunpack.c.l.b16 %v199
  %v270 = vunpack.c.l.b16 %v200
  %v271 = vunpack.c.l.b16 %v201
  %v272 = vunpack.c.l.b16 %v202
  %v273 = vunpack.c.l.b16 %v203
  %v274 = vunpack.c.l.b16 %v204
  %v275 = vunpack.c.l.b16 %v205
  %v276 = vunpack.c.l.b16 %v206
  %v277 = vpack.c.b16 %v246, %v245
  %v278 = vpack.c.b16 %v248, %v247
  %v279 = vpack.c.b16 %v250, %v249
  %v280 = vpack.c.b16 %v252, %v251
  %v281 = vpack.c.b16 %v254, %v253
  %v282 = vpack.c.b16 %v256, %v255
  %v283 = vpack.c.b16 %v258, %v257
  %v284 = vpack.c.b16 %v260, %v259
  %v285 = vpack.c.b16 %v262, %v261
  %v286 = vpack.c.b16 %v264, %v263
  %v287 = vpack.c.b16 %v266, %v265
  %v288 = vpack.c.b16 %v268, %v267
  %v289 = vpack.c.b16 %v270, %v269
  %v290 = vpack.c.b16 %v272, %v271
  %v291 = vpack.c.b16 %v274, %v273
  %v292 = vpack.c.b16 %v276, %v275
  %309 = vmatprep.subr.bf16.mxu0 0
  %310 = vmatpush1.bf16.msra.mxu0 %v284
  %311 = vmatprep.subr.bf16.mxu0 0
  %312 = vmatpush1.bf16.msra.mxu0 %v283
  %313 = vmatprep.subr.bf16.mxu0 0
  %314 = vmatpush1.bf16.msra.mxu0 %v282
  %315 = vmatprep.subr.bf16.mxu0 0
  %316 = vmatpush1.bf16.msra.mxu0 %v281
  %317 = vmatprep.subr.bf16.mxu0 0
  %318 = vmatpush1.bf16.msra.mxu0 %v280
  %319 = vmatprep.subr.bf16.mxu0 0
  %320 = vmatpush1.bf16.msra.mxu0 %v279
  %321 = vmatprep.subr.bf16.mxu0 0
  %322 = vmatpush1.bf16.msra.mxu0 %v278
  %323 = vmatprep.subr.bf16.mxu0 0
  %324 = vmatpush1.bf16.msra.mxu0 %v277
  %325 = vmatprep.subr.bf16.mxu0 0
  %326 = vmatpush2.bf16.msra.mxu0 %v292
  %327 = vmatprep.subr.bf16.mxu0 0
  %328 = vmatpush2.bf16.msra.mxu0 %v291
  %329 = vmatprep.subr.bf16.mxu0 0
  %330 = vmatpush2.bf16.msra.mxu0 %v290
  %331 = vmatprep.subr.bf16.mxu0 0
  %332 = vmatpush2.bf16.msra.mxu0 %v289
  %333 = vmatprep.subr.bf16.mxu0 0
  %334 = vmatpush2.bf16.msra.mxu0 %v288
  %335 = vmatprep.subr.bf16.mxu0 0
  %336 = vmatpush2.bf16.msra.mxu0 %v287
  %337 = vmatprep.subr.bf16.mxu0 0
  %338 = vmatpush2.bf16.msra.mxu0 %v286
  %339 = vmatprep.subr.bf16.mxu0 0
  %340 = vmatpush2.bf16.msra.mxu0 %v285
  %341 = vmatprep.mubr.bf16.mxu0 %v172
  %342 = vmatmul.mubr.bf16.gmra.mxu0 %v171
  %v343 = vpop.f32.mrf.mxu0
  %v344 = vadd.f32 %v212, %v343
  %v345 = vpop.f32.mrf.mxu0
  %v346 = vpop.f32.mrf.mxu0
  %v347 = vadd.f32 %v212, %v346
  %v348 = vpop.f32.mrf.mxu0
  %349 = vmatprep.mubr.bf16.mxu0 %v174
  %350 = vmatmul.mubr.bf16.gmra.mxu0 %v173
  %v351 = vpop.f32.mrf.mxu0
  %v352 = vadd.f32 %v212, %v351
  %v353 = vpop.f32.mrf.mxu0
  %v354 = vpop.f32.mrf.mxu0
  %v355 = vpop.f32.mrf.mxu0
  %356 = vdwg.mxu0
  %v357 = vunpack.c.l.bf16 %v27
  %v358 = vunpack.c.l.bf16 %v28
  %v359 = vunpack.c.l.bf16 %v29
  %v360 = vadd.f32 %v344, %v357
  %v361 = vadd.f32 %v347, %v358
  %v362 = vadd.f32 %v352, %v359
  %v363 = vsel %vm107, %v360, 0.0
  %364 = vadd.xlane.f32.xlu0 %v363
  %v365 = vpop.xlane.xlu0 %364
  %v366 = vsel %vm107, %v361, 0.0
  %367 = vadd.xlane.f32.xlu0 %v366
  %v368 = vpop.xlane.xlu0 %367
  %vm369 = vcmask 517120
  %v370 = vsel %vm369, %v362, 0.0
  %371 = vadd.xlane.f32.xlu0 %v370
  %v372 = vpop.xlane.xlu0 %371
  %v373 = vrcp.pop 64.0
  %v374 = vmul.f32 %v365, %v373
  %v375 = vmul.f32 %v368, %v373
  %v376 = vmul.f32 %v372, %v373
  %v377 = vsub.f32 %v360, %v374
  %v378 = vsub.f32 %v361, %v375
  %v379 = vsub.f32 %v362, %v376
  %v380 = vmul.f32 %v377, %v377
  %v381 = vmul.f32 %v378, %v378
  %v382 = vmul.f32 %v379, %v379
  %v383 = vsel %vm107, %v380, 0.0
  %384 = vadd.xlane.f32.xlu0 %v383
  %v385 = vpop.xlane.xlu0 %384
  %v386 = vsel %vm107, %v381, 0.0
  %387 = vadd.xlane.f32.xlu0 %v386
  %v388 = vpop.xlane.xlu0 %387
  %v389 = vsel %vm369, %v382, 0.0
  %390 = vadd.xlane.f32.xlu0 %v389
  %v391 = vpop.xlane.xlu0 %390
  %v392 = vmul.f32 %v385, %v373
  %v393 = vmul.f32 %v388, %v373
  %v394 = vmul.f32 %v391, %v373
  %v395 = vadd.f32 %v392, 1e-05
  %v396 = vadd.f32 %v393, 1e-05
  %v397 = vadd.f32 %v394, 1e-05
  %v398 = vrsqrt.pop %v395
  %v399 = vrsqrt.pop %v396
  %v400 = vrsqrt.pop %v397
  %v401 = vmul.f32 %v377, %v398
  %v402 = vmul.f32 %v378, %v399
  %v403 = vmul.f32 %v379, %v400
  %v404 = vld [vmem:[%s5] sm:$0x1]
  %v405 = vunpack.c.l.bf16 %v404
  %v406 = vlaneseq
  %v407 = vshrl.u32 %v406, 7
  %v408 = vsub.s32 0, %v407
  %v409 = vrot.slane %v405, %v408
  %v410 = vmul.f32 %v401, %v409
  %v411 = vmul.f32 %v402, %v409
  %v412 = vmul.f32 %v403, %v409
  %v413 = vld [vmem:[%s6] sm:$0x1]
  %v414 = vunpack.c.l.bf16 %v413
  %v415 = vlaneseq
  %v416 = vshrl.u32 %v415, 7
  %v417 = vsub.s32 0, %v416
  %v418 = vrot.slane %v414, %v417
  %v419 = vadd.f32 %v410, %v418
  %v420 = vadd.f32 %v411, %v418
  %v421 = vadd.f32 %v412, %v418
  %v422 = vpack.c.bf16 %v420, %v419
  %v423 = vpack.c.bf16 %v421, %v421
  %v426 = vunpack.c.l.b16 %v422
  %v427 = vunpack.c.h.b16 %v422
  %v428 = vunpack.c.l.b16 %v423
  %v429 = vpack.c.b16 %v426, %v426
  %v430 = vpack.c.b16 %v427, %v427
  %v431 = vpack.c.b16 %v428, %v428
  %vm435 = vcmask 519168
  %436 = vst.msk [vmem:[%s7] sm:$0xf] %vm435, %v429
  %437 = vst.msk [vmem:[%s7 + $0x4] sm:$0xf] %vm435, %v430
  %vm438 = vcmask 516096
  %439 = vst.msk [vmem:[%s7 + $0x8] sm:$0x1] %vm438, %v431
  // Predicated region
  $region30: #{audio_projection_forward.24} parent=0 // pred_check
    _
  $region31: #{audio_projection_forward.24} parent=0 // pred_check_branch
    %441 = sbr.rel (0) target = $region33
  $region32: #{audio_projection_forward.24} parent=0 // pred_region
    _
  $region33: #{audio_projection_forward.24} parent=0 // pred_fallthru
    _
  // Predicated region
  $region34: #{audio_projection_forward.24} parent=0 // pred_check
    _
  $region35: #{audio_projection_forward.24} parent=0 // pred_check_branch
    %443 = sbr.rel (0) target = $region37
  $region36: #{audio_projection_forward.24} parent=0 // pred_region
    _
  $region37: #{audio_projection_forward.24} parent=0 // pred_fallthru
    _

// kernel: audio_projection_forward.33
$region0: #{audio_projection_forward.33}
  #allocation0 [shape = 'u32[]', space=smem, size = 0x4, offset = 0x4, fixed_abs, tag = 'smem constant byte address 0x4 - core index']
  #allocation1 [shape = 'u32[144,128]{1,0:T(1,128)}', space=vmem, size = 0x12000, scoped, tag = 'internal scratch']
  %s0 = inlined_call_operand.vmem [shape: bf16[18,320], index: 0, kind: input, shape index: {}]
  %s1 = inlined_call_operand.vmem [shape: bf16[320,128], index: 1, kind: input, shape index: {}]
  %s2 = inlined_call_operand.vmem [shape: bf16[1,128], index: 2, kind: input, shape index: {}]
  %s3 = inlined_call_operand.vmem [shape: bf16[128,128], index: 3, kind: input, shape index: {}]
  %s4 = inlined_call_operand.vmem [shape: bf16[1,128], index: 4, kind: input, shape index: {}]
  %s5 = inlined_call_operand.vmem [shape: bf16[128,256], index: 5, kind: input, shape index: {}]
  %s6 = inlined_call_operand.vmem [shape: bf16[1,256], index: 6, kind: input, shape index: {}]
  %s7 = inlined_call_operand.vmem [shape: f32[256,4], index: 7, kind: input, shape index: {}]
  %s8 = inlined_call_operand.vmem [shape: f32[4,256], index: 8, kind: input, shape index: {}]
  %s9 = inlined_call_operand.vmem [shape: bf16[1,256], index: 9, kind: input, shape index: {}]
  %s10 = inlined_call_operand.vmem [shape: bf16[1,256], index: 10, kind: input, shape index: {}]
  %s11 = inlined_call_operand.vmem [shape: bf16[18,256], index: 11, kind: output, shape index: {}]
  %s12 = sld [smem:[#allocation0]]
  $region54: #{audio_projection_forward.33} parent=0
    _
  %s14 = ssub.s32 1, %s12
  %s15 = scalar_select 0, %s14, %s12
  // Predicated region
  $region2: #{audio_projection_forward.33} parent=0 // pred_check
    _
  $region3: #{audio_projection_forward.33} parent=0 // pred_check_branch
    %17 = sbr.rel (0) target = $region5
  $region4: #{audio_projection_forward.33} parent=0 // pred_region
    _
  $region5: #{audio_projection_forward.33} parent=0 // pred_fallthru
    _
  // Predicated region
  $region6: #{audio_projection_forward.33} parent=0 // pred_check
    _
  $region7: #{audio_projection_forward.33} parent=0 // pred_check_branch
    %19 = sbr.rel (0) target = $region9
  $region8: #{audio_projection_forward.33} parent=0 // pred_region
    _
  $region9: #{audio_projection_forward.33} parent=0 // pred_fallthru
    _
  // Predicated region
  $region10: #{audio_projection_forward.33} parent=0 // pred_check
    _
  $region11: #{audio_projection_forward.33} parent=0 // pred_check_branch
    %21 = sbr.rel (0) target = $region13
  $region12: #{audio_projection_forward.33} parent=0 // pred_region
    _
  $region13: #{audio_projection_forward.33} parent=0 // pred_fallthru
    _
  // Predicated region
  $region14: #{audio_projection_forward.33} parent=0 // pred_check
    _
  $region15: #{audio_projection_forward.33} parent=0 // pred_check_branch
    %23 = sbr.rel (0) target = $region17
  $region16: #{audio_projection_forward.33} parent=0 // pred_region
    _
  $region17: #{audio_projection_forward.33} parent=0 // pred_fallthru
    _
  // Predicated region
  $region18: #{audio_projection_forward.33} parent=0 // pred_check
    _
  $region19: #{audio_projection_forward.33} parent=0 // pred_check_branch
    %25 = sbr.rel (0) target = $region21
  $region20: #{audio_projection_forward.33} parent=0 // pred_region
    _
  $region21: #{audio_projection_forward.33} parent=0 // pred_fallthru
    _
  // Predicated region
  $region22: #{audio_projection_forward.33} parent=0 // pred_check
    _
  $region23: #{audio_projection_forward.33} parent=0 // pred_check_branch
    %27 = sbr.rel (0) target = $region25
  $region24: #{audio_projection_forward.33} parent=0 // pred_region
    _
  $region25: #{audio_projection_forward.33} parent=0 // pred_fallthru
    _
  // Predicated region
  $region26: #{audio_projection_forward.33} parent=0 // pred_check
    _
  $region27: #{audio_projection_forward.33} parent=0 // pred_check_branch
    %29 = sbr.rel (0) target = $region29
  $region28: #{audio_projection_forward.33} parent=0 // pred_region
    _
  $region29: #{audio_projection_forward.33} parent=0 // pred_fallthru
    _
  // Predicated region
  $region30: #{audio_projection_forward.33} parent=0 // pred_check
    _
  $region31: #{audio_projection_forward.33} parent=0 // pred_check_branch
    %31 = sbr.rel (0) target = $region33
  $region32: #{audio_projection_forward.33} parent=0 // pred_region
    _
  $region33: #{audio_projection_forward.33} parent=0 // pred_fallthru
    _
  // Predicated region
  $region34: #{audio_projection_forward.33} parent=0 // pred_check
    _
  $region35: #{audio_projection_forward.33} parent=0 // pred_check_branch
    %33 = sbr.rel (0) target = $region37
  $region36: #{audio_projection_forward.33} parent=0 // pred_region
    _
  $region37: #{audio_projection_forward.33} parent=0 // pred_fallthru
    _
  // Predicated region
  $region38: #{audio_projection_forward.33} parent=0 // pred_check
    _
  $region39: #{audio_projection_forward.33} parent=0 // pred_check_branch
    %35 = sbr.rel (0) target = $region41
  $region40: #{audio_projection_forward.33} parent=0 // pred_region
    _
  $region41: #{audio_projection_forward.33} parent=0 // pred_fallthru
    _
  // Predicated region
  $region42: #{audio_projection_forward.33} parent=0 // pred_check
    _
  $region43: #{audio_projection_forward.33} parent=0 // pred_check_branch
    %37 = sbr.rel (0) target = $region45
  $region44: #{audio_projection_forward.33} parent=0 // pred_region
    _
  $region45: #{audio_projection_forward.33} parent=0 // pred_fallthru
    _
  %v39 = vld [vmem:[%s0] sm:$0xff]
  %v40 = vld [vmem:[%s0 + $0x8] sm:$0xf]
  %v41 = vld [vmem:[%s0 + $0xc] sm:$0xff]
  %v42 = vld [vmem:[%s0 + $0x14] sm:$0xf]
  %v43 = vld [vmem:[%s0 + $0x18] sm:$0x11]
  %v44 = vld [vmem:[%s0 + $0x20] sm:$0x1]
  %v45 = vld [vmem:[%s1] sm:$0xf]
  %v46 = vld [vmem:[%s1 + $0x4] sm:$0xf]
  %v47 = vld [vmem:[%s1 + $0x8] sm:$0xf]
  %v48 = vld [vmem:[%s1 + $0xc] sm:$0xf]
  %v49 = vld [vmem:[%s1 + $0x10] sm:$0xf]
  %v50 = vld [vmem:[%s1 + $0x14] sm:$0xf]
  %v51 = vld [vmem:[%s1 + $0x18] sm:$0xf]
  %v52 = vld [vmem:[%s1 + $0x1c] sm:$0xf]
  %v53 = vld [vmem:[%s1 + $0x20] sm:$0xf]
  %v54 = vld [vmem:[%s1 + $0x24] sm:$0xf]
  %v55 = vld [vmem:[%s1 + $0x28] sm:$0xf]
  %v56 = vld [vmem:[%s1 + $0x2c] sm:$0xf]
  %v57 = vld [vmem:[%s1 + $0x30] sm:$0xf]
  %v58 = vld [vmem:[%s1 + $0x34] sm:$0xf]
  %v59 = vld [vmem:[%s1 + $0x38] sm:$0xf]
  %v60 = vld [vmem:[%s1 + $0x3c] sm:$0xf]
  %v61 = vld [vmem:[%s1 + $0x40] sm:$0xf]
  %v62 = vld [vmem:[%s1 + $0x44] sm:$0xf]
  %v63 = vld [vmem:[%s1 + $0x48] sm:$0xf]
  %v64 = vld [vmem:[%s1 + $0x4c] sm:$0xf]
  %v65 = vld [vmem:[%s1 + $0x50] sm:$0xf]
  %v66 = vld [vmem:[%s1 + $0x54] sm:$0xf]
  %v67 = vld [vmem:[%s1 + $0x58] sm:$0xf]
  %v68 = vld [vmem:[%s1 + $0x5c] sm:$0xf]
  %v69 = vld [vmem:[%s1 + $0x60] sm:$0xf]
  %v70 = vld [vmem:[%s1 + $0x64] sm:$0xf]
  %v71 = vld [vmem:[%s1 + $0x68] sm:$0xf]
  %v72 = vld [vmem:[%s1 + $0x6c] sm:$0xf]
  %v73 = vld [vmem:[%s1 + $0x70] sm:$0xf]
  %v74 = vld [vmem:[%s1 + $0x74] sm:$0xf]
  %v75 = vld [vmem:[%s1 + $0x78] sm:$0xf]
  %v76 = vld [vmem:[%s1 + $0x7c] sm:$0xf]
  %v77 = vld [vmem:[%s1 + $0x80] sm:$0xf]
  %v78 = vld [vmem:[%s1 + $0x84] sm:$0xf]
  %v79 = vld [vmem:[%s1 + $0x88] sm:$0xf]
  %v80 = vld [vmem:[%s1 + $0x8c] sm:$0xf]
  %v81 = vld [vmem:[%s1 + $0x90] sm:$0xf]
  %v82 = vld [vmem:[%s1 + $0x94] sm:$0xf]
  %v83 = vld [vmem:[%s1 + $0x98] sm:$0xf]
  %v84 = vld [vmem:[%s1 + $0x9c] sm:$0xf]
  %v85 = vld [vmem:[%s2] sm:$0x1]
  %v86 = vunpack.c.l.bf16 %v85
  %v87 = vlaneseq
  %v88 = vshrl.u32 %v87, 7
  %v89 = vsub.s32 0, %v88
  %v90 = vrot.slane %v86, %v89
  %v97 = vunpack.c.l.b16 %v39
  %v98 = vunpack.c.h.b16 %v39
  %v99 = vunpack.c.l.b16 %v40
  %v100 = vunpack.c.l.b16 %v41
  %v101 = vunpack.c.h.b16 %v41
  %v102 = vunpack.c.l.b16 %v42
  %v103 = vunpack.c.l.b16 %v43
  %v104 = vunpack.c.h.b16 %v43
  %v105 = vunpack.c.l.b16 %v44
  %v106 = vpack.c.b16 %v100, %v97
  %v107 = vpack.c.b16 %v101, %v98
  %v108 = vpack.c.b16 %v102, %v99
  %v109 = vpack.c.b16 %v103, %v103
  %v110 = vpack.c.b16 %v104, %v104
  %v111 = vpack.c.b16 %v105, %v105
  %v156 = vunpack.c.l.b16 %v45
  %v157 = vunpack.c.l.b16 %v46
  %v158 = vunpack.c.l.b16 %v47
  %v159 = vunpack.c.l.b16 %v48
  %v160 = vunpack.c.l.b16 %v49
  %v161 = vunpack.c.l.b16 %v50
  %v162 = vunpack.c.l.b16 %v51
  %v163 = vunpack.c.l.b16 %v52
  %v164 = vunpack.c.l.b16 %v53
  %v165 = vunpack.c.l.b16 %v54
  %v166 = vunpack.c.l.b16 %v55
  %v167 = vunpack.c.l.b16 %v56
  %v168 = vunpack.c.l.b16 %v57
  %v169 = vunpack.c.l.b16 %v58
  %v170 = vunpack.c.l.b16 %v59
  %v171 = vunpack.c.l.b16 %v60
  %v172 = vunpack.c.l.b16 %v61
  %v173 = vunpack.c.l.b16 %v62
  %v174 = vunpack.c.l.b16 %v63
  %v175 = vunpack.c.l.b16 %v64
  %v176 = vunpack.c.l.b16 %v65
  %v177 = vunpack.c.l.b16 %v66
  %v178 = vunpack.c.l.b16 %v67
  %v179 = vunpack.c.l.b16 %v68
  %v180 = vunpack.c.l.b16 %v69
  %v181 = vunpack.c.l.b16 %v70
  %v182 = vunpack.c.l.b16 %v71
  %v183 = vunpack.c.l.b16 %v72
  %v184 = vunpack.c.l.b16 %v73
  %v185 = vunpack.c.l.b16 %v74
  %v186 = vunpack.c.l.b16 %v75
  %v187 = vunpack.c.l.b16 %v76
  %v188 = vunpack.c.l.b16 %v77
  %v189 = vunpack.c.l.b16 %v78
  %v190 = vunpack.c.l.b16 %v79
  %v191 = vunpack.c.l.b16 %v80
  %v192 = vunpack.c.l.b16 %v81
  %v193 = vunpack.c.l.b16 %v82
  %v194 = vunpack.c.l.b16 %v83
  %v195 = vunpack.c.l.b16 %v84
  %v196 = vpack.c.b16 %v157, %v156
  %v197 = vpack.c.b16 %v159, %v158
  %v198 = vpack.c.b16 %v161, %v160
  %v199 = vpack.c.b16 %v163, %v162
  %v200 = vpack.c.b16 %v165, %v164
  %v201 = vpack.c.b16 %v167, %v166
  %v202 = vpack.c.b16 %v169, %v168
  %v203 = vpack.c.b16 %v171, %v170
  %v204 = vpack.c.b16 %v173, %v172
  %v205 = vpack.c.b16 %v175, %v174
  %v206 = vpack.c.b16 %v177, %v176
  %v207 = vpack.c.b16 %v179, %v178
  %v208 = vpack.c.b16 %v181, %v180
  %v209 = vpack.c.b16 %v183, %v182
  %v210 = vpack.c.b16 %v185, %v184
  %v211 = vpack.c.b16 %v187, %v186
  %v212 = vpack.c.b16 %v189, %v188
  %v213 = vpack.c.b16 %v191, %v190
  %v214 = vpack.c.b16 %v193, %v192
  %v215 = vpack.c.b16 %v195, %v194
  %vm236 = vcmask 523264
  %v238 = vsel %vm236, %v108, 0
  %v241 = vsel %vm236, %v111, 0
  %243 = vmatprep.subr.bf16.mxu0 0
  %244 = vmatpush1.bf16.msra.mxu0 %v203
  %245 = vmatprep.subr.bf16.mxu0 0
  %246 = vmatpush1.bf16.msra.mxu0 %v202
  %247 = vmatprep.subr.bf16.mxu0 0
  %248 = vmatpush1.bf16.msra.mxu0 %v201
  %249 = vmatprep.subr.bf16.mxu0 0
  %250 = vmatpush1.bf16.msra.mxu0 %v200
  %251 = vmatprep.subr.bf16.mxu0 0
  %252 = vmatpush1.bf16.msra.mxu0 %v199
  %253 = vmatprep.subr.bf16.mxu0 0
  %254 = vmatpush1.bf16.msra.mxu0 %v198
  %255 = vmatprep.subr.bf16.mxu0 0
  %256 = vmatpush1.bf16.msra.mxu0 %v197
  %257 = vmatprep.subr.bf16.mxu0 0
  %258 = vmatpush1.bf16.msra.mxu0 %v196
  %259 = vmatprep.subr.bf16.mxu0 0
  %260 = vmatpush2.bf16.msra.mxu0 %v211
  %261 = vmatprep.subr.bf16.mxu0 0
  %262 = vmatpush2.bf16.msra.mxu0 %v210
  %263 = vmatprep.subr.bf16.mxu0 0
  %264 = vmatpush2.bf16.msra.mxu0 %v209
  %265 = vmatprep.subr.bf16.mxu0 0
  %266 = vmatpush2.bf16.msra.mxu0 %v208
  %267 = vmatprep.subr.bf16.mxu0 0
  %268 = vmatpush2.bf16.msra.mxu0 %v207
  %269 = vmatprep.subr.bf16.mxu0 0
  %270 = vmatpush2.bf16.msra.mxu0 %v206
  %271 = vmatprep.subr.bf16.mxu0 0
  %272 = vmatpush2.bf16.msra.mxu0 %v205
  %273 = vmatprep.subr.bf16.mxu0 0
  %274 = vmatpush2.bf16.msra.mxu0 %v204
  %275 = vmatprep.mubr.bf16.mxu0 %v107
  %276 = vmatmul.mubr.bf16.gmra.mxu0 %v106
  %v277 = vpop.f32.mrf.mxu0
  %v278 = vadd.f32 %v90, %v277
  %v279 = vpop.f32.mrf.mxu0
  %v280 = vpop.f32.mrf.mxu0
  %v281 = vadd.f32 %v90, %v280
  %v282 = vpop.f32.mrf.mxu0
  %283 = vmatprep.mubr.bf16.mxu0 %v110
  %284 = vmatmul.mubr.bf16.gmra.mxu0 %v109
  %v285 = vpop.f32.mrf.mxu0
  %v286 = vadd.f32 %v90, %v285
  %v287 = vpop.f32.mrf.mxu0
  %v288 = vpop.f32.mrf.mxu0
  %v289 = vpop.f32.mrf.mxu0
  %290 = vdwg.mxu0
  %291 = vmatprep.subr.bf16.mxu0 0
  %292 = vmatpush1.bf16.msra.mxu0 0
  %293 = vmatprep.subr.bf16.mxu0 0
  %294 = vmatpush1.bf16.msra.mxu0 0
  %295 = vmatprep.subr.bf16.mxu0 0
  %296 = vmatpush1.bf16.msra.mxu0 0
  %297 = vmatprep.subr.bf16.mxu0 0
  %298 = vmatpush1.bf16.msra.mxu0 0
  %299 = vmatprep.subr.bf16.mxu0 0
  %300 = vmatpush1.bf16.msra.mxu0 %v215
  %301 = vmatprep.subr.bf16.mxu0 0
  %302 = vmatpush1.bf16.msra.mxu0 %v214
  %303 = vmatprep.subr.bf16.mxu0 0
  %304 = vmatpush1.bf16.msra.mxu0 %v213
  %305 = vmatprep.subr.bf16.mxu0 0
  %306 = vmatpush1.bf16.msra.mxu0 %v212
  %307 = vmatprep.subr.bf16.mxu0 0
  %308 = vmatpush2.bf16.msra.mxu0 0
  %309 = vmatprep.subr.bf16.mxu0 0
  %310 = vmatpush2.bf16.msra.mxu0 0
  %311 = vmatprep.subr.bf16.mxu0 0
  %312 = vmatpush2.bf16.msra.mxu0 0
  %313 = vmatprep.subr.bf16.mxu0 0
  %314 = vmatpush2.bf16.msra.mxu0 0
  %315 = vmatprep.subr.bf16.mxu0 0
  %316 = vmatpush2.bf16.msra.mxu0 0
  %317 = vmatprep.subr.bf16.mxu0 0
  %318 = vmatpush2.bf16.msra.mxu0 0
  %319 = vmatprep.subr.bf16.mxu0 0
  %320 = vmatpush2.bf16.msra.mxu0 0
  %321 = vmatprep.subr.bf16.mxu0 0
  %322 = vmatpush2.bf16.msra.mxu0 0
  %323 = vmatprep.mubr.bf16.mxu0 0
  %324 = vmatmul.mubr.bf16.gmra.mxu0 %v238
  %v325 = vpop.f32.mrf.mxu0
  %v326 = vadd.f32 %v278, %v325
  %v327 = vpop.f32.mrf.mxu0
  %v328 = vpop.f32.mrf.mxu0
  %v329 = vadd.f32 %v281, %v328
  %v330 = vpop.f32.mrf.mxu0
  %331 = vmatprep.mubr.bf16.mxu0 0
  %332 = vmatmul.mubr.bf16.gmra.mxu0 %v241
  %v333 = vpop.f32.mrf.mxu0
  %v334 = vadd.f32 %v286, %v333
  %v335 = vpop.f32.mrf.mxu0
  %v336 = vpop.f32.mrf.mxu0
  %v337 = vpop.f32.mrf.mxu0
  %338 = vdwg.mxu0
  %v339 = vmax.f32 %v326, 0.0
  %v340 = vmax.f32 %v329, 0.0
  %v341 = vmax.f32 %v334, 0.0
  %v342 = vpack.c.bf16 %v340, %v339
  %v343 = vpack.c.bf16 %v341, %v341
  %v344 = vld [vmem:[%s3] sm:$0xf]
  %v345 = vld [vmem:[%s3 + $0x4] sm:$0xf]
  %v346 = vld [vmem:[%s3 + $0x8] sm:$0xf]
  %v347 = vld [vmem:[%s3 + $0xc] sm:$0xf]
  %v348 = vld [vmem:[%s3 + $0x10] sm:$0xf]
  %v349 = vld [vmem:[%s3 + $0x14] sm:$0xf]
  %v350 = vld [vmem:[%s3 + $0x18] sm:$0xf]
  %v351 = vld [vmem:[%s3 + $0x1c] sm:$0xf]
  %v352 = vld [vmem:[%s3 + $0x20] sm:$0xf]
  %v353 = vld [vmem:[%s3 + $0x24] sm:$0xf]
  %v354 = vld [vmem:[%s3 + $0x28] sm:$0xf]
  %v355 = vld [vmem:[%s3 + $0x2c] sm:$0xf]
  %v356 = vld [vmem:[%s3 + $0x30] sm:$0xf]
  %v357 = vld [vmem:[%s3 + $0x34] sm:$0xf]
  %v358 = vld [vmem:[%s3 + $0x38] sm:$0xf]
  %v359 = vld [vmem:[%s3 + $0x3c] sm:$0xf]
  %v360 = vld [vmem:[%s4] sm:$0x1]
  %v361 = vunpack.c.l.bf16 %v360
  %v362 = vlaneseq
  %v363 = vshrl.u32 %v362, 7
  %v364 = vsub.s32 0, %v363
  %v365 = vrot.slane %v361, %v364
  %v382 = vunpack.c.l.b16 %v344
  %v383 = vunpack.c.l.b16 %v345
  %v384 = vunpack.c.l.b16 %v346
  %v385 = vunpack.c.l.b16 %v347
  %v386 = vunpack.c.l.b16 %v348
  %v387 = vunpack.c.l.b16 %v349
  %v388 = vunpack.c.l.b16 %v350
  %v389 = vunpack.c.l.b16 %v351
  %v390 = vunpack.c.l.b16 %v352
  %v391 = vunpack.c.l.b16 %v353
  %v392 = vunpack.c.l.b16 %v354
  %v393 = vunpack.c.l.b16 %v355
  %v394 = vunpack.c.l.b16 %v356
  %v395 = vunpack.c.l.b16 %v357
  %v396 = vunpack.c.l.b16 %v358
  %v397 = vunpack.c.l.b16 %v359
  %v398 = vpack.c.b16 %v383, %v382
  %v399 = vpack.c.b16 %v385, %v384
  %v400 = vpack.c.b16 %v387, %v386
  %v401 = vpack.c.b16 %v389, %v388
  %v402 = vpack.c.b16 %v391, %v390
  %v403 = vpack.c.b16 %v393, %v392
  %v404 = vpack.c.b16 %v395, %v394
  %v405 = vpack.c.b16 %v397, %v396
  %414 = vmatprep.subr.bf16.mxu0 0
  %415 = vmatpush1.bf16.msra.mxu0 %v405
  %416 = vmatprep.subr.bf16.mxu0 0
  %417 = vmatpush1.bf16.msra.mxu0 %v404
  %418 = vmatprep.subr.bf16.mxu0 0
  %419 = vmatpush1.bf16.msra.mxu0 %v403
  %420 = vmatprep.subr.bf16.mxu0 0
  %421 = vmatpush1.bf16.msra.mxu0 %v402
  %422 = vmatprep.subr.bf16.mxu0 0
  %423 = vmatpush1.bf16.msra.mxu0 %v401
  %424 = vmatprep.subr.bf16.mxu0 0
  %425 = vmatpush1.bf16.msra.mxu0 %v400
  %426 = vmatprep.subr.bf16.mxu0 0
  %427 = vmatpush1.bf16.msra.mxu0 %v399
  %428 = vmatprep.subr.bf16.mxu0 0
  %429 = vmatpush1.bf16.msra.mxu0 %v398
  %430 = vmatprep.subr.bf16.mxu0 0
  %431 = vmatpush2.bf16.msra.mxu0 0
  %432 = vmatprep.subr.bf16.mxu0 0
  %433 = vmatpush2.bf16.msra.mxu0 0
  %434 = vmatprep.subr.bf16.mxu0 0
  %435 = vmatpush2.bf16.msra.mxu0 0
  %436 = vmatprep.subr.bf16.mxu0 0
  %437 = vmatpush2.bf16.msra.mxu0 0
  %438 = vmatprep.subr.bf16.mxu0 0
  %439 = vmatpush2.bf16.msra.mxu0 0
  %440 = vmatprep.subr.bf16.mxu0 0
  %441 = vmatpush2.bf16.msra.mxu0 0
  %442 = vmatprep.subr.bf16.mxu0 0
  %443 = vmatpush2.bf16.msra.mxu0 0
  %444 = vmatprep.subr.bf16.mxu0 0
  %445 = vmatpush2.bf16.msra.mxu0 0
  %446 = vmatprep.mubr.bf16.mxu0 0
  %447 = vmatmul.mubr.bf16.gmra.mxu0 %v342
  %v448 = vpop.f32.mrf.mxu0
  %v449 = vadd.f32 %v365, %v448
  %v450 = vpop.f32.mrf.mxu0
  %v451 = vpop.f32.mrf.mxu0
  %v452 = vadd.f32 %v365, %v451
  %v453 = vpop.f32.mrf.mxu0
  %454 = vmatprep.mubr.bf16.mxu0 0
  %455 = vmatmul.mubr.bf16.gmra.mxu0 %v343
  %v456 = vpop.f32.mrf.mxu0
  %v457 = vadd.f32 %v365, %v456
  %v458 = vpop.f32.mrf.mxu0
  %v459 = vpop.f32.mrf.mxu0
  %v460 = vpop.f32.mrf.mxu0
  %461 = vdwg.mxu0
  %v462 = vmax.f32 %v449, 0.0
  %v463 = vmax.f32 %v452, 0.0
  %v464 = vmax.f32 %v457, 0.0
  %v465 = vpack.c.bf16 %v463, %v462
  %v466 = vpack.c.bf16 %v464, %v464
  %v467 = vld [vmem:[%s5] sm:$0xff]
  %v468 = vld [vmem:[%s5 + $0x8] sm:$0xff]
  %v469 = vld [vmem:[%s5 + $0x10] sm:$0xff]
  %v470 = vld [vmem:[%s5 + $0x18] sm:$0xff]
  %v471 = vld [vmem:[%s5 + $0x20] sm:$0xff]
  %v472 = vld [vmem:[%s5 + $0x28] sm:$0xff]
  %v473 = vld [vmem:[%s5 + $0x30] sm:$0xff]
  %v474 = vld [vmem:[%s5 + $0x38] sm:$0xff]
  %v475 = vld [vmem:[%s5 + $0x40] sm:$0xff]
  %v476 = vld [vmem:[%s5 + $0x48] sm:$0xff]
  %v477 = vld [vmem:[%s5 + $0x50] sm:$0xff]
  %v478 = vld [vmem:[%s5 + $0x58] sm:$0xff]
  %v479 = vld [vmem:[%s5 + $0x60] sm:$0xff]
  %v480 = vld [vmem:[%s5 + $0x68] sm:$0xff]
  %v481 = vld [vmem:[%s5 + $0x70] sm:$0xff]
  %v482 = vld [vmem:[%s5 + $0x78] sm:$0xff]
  %v483 = vld [vmem:[%s6] sm:$0x3]
  %v484 = vunpack.c.l.bf16 %v483
  %v486 = vlaneseq
  %v487 = vshrl.u32 %v486, 7
  %v488 = vsub.s32 0, %v487
  %v489 = vrot.slane %v484, %v488
  %v490 = vlaneseq
  %v491 = vshrl.u32 %v490, 7
  %v492 = vsub.s32 2, %v491
  %v493 = vrot.slane %v484, %v492
  %v496 = vlaneseq
  %v497 = vshrl.u32 %v496, 7
  %v498 = vsub.s32 0, %v497
  %v499 = vrot.slane %v489, %v498
  %v500 = vlaneseq
  %v501 = vshrl.u32 %v500, 7
  %v502 = vsub.s32 0, %v501
  %v503 = vrot.slane %v493, %v502
  %v520 = vunpack.c.l.b16 %v467
  %v521 = vunpack.c.h.b16 %v467
  %v522 = vunpack.c.l.b16 %v468
  %v523 = vunpack.c.h.b16 %v468
  %v524 = vunpack.c.l.b16 %v469
  %v525 = vunpack.c.h.b16 %v469
  %v526 = vunpack.c.l.b16 %v470
  %v527 = vunpack.c.h.b16 %v470
  %v528 = vunpack.c.l.b16 %v471
  %v529 = vunpack.c.h.b16 %v471
  %v530 = vunpack.c.l.b16 %v472
  %v531 = vunpack.c.h.b16 %v472
  %v532 = vunpack.c.l.b16 %v473
  %v533 = vunpack.c.h.b16 %v473
  %v534 = vunpack.c.l.b16 %v474
  %v535 = vunpack.c.h.b16 %v474
  %v536 = vunpack.c.l.b16 %v475
  %v537 = vunpack.c.h.b16 %v475
  %v538 = vunpack.c.l.b16 %v476
  %v539 = vunpack.c.h.b16 %v476
  %v540 = vunpack.c.l.b16 %v477
  %v541 = vunpack.c.h.b16 %v477
  %v542 = vunpack.c.l.b16 %v478
  %v543 = vunpack.c.h.b16 %v478
  %v544 = vunpack.c.l.b16 %v479
  %v545 = vunpack.c.h.b16 %v479
  %v546 = vunpack.c.l.b16 %v480
  %v547 = vunpack.c.h.b16 %v480
  %v548 = vunpack.c.l.b16 %v481
  %v549 = vunpack.c.h.b16 %v481
  %v550 = vunpack.c.l.b16 %v482
  %v551 = vunpack.c.h.b16 %v482
  %v552 = vpack.c.b16 %v522, %v520
  %v553 = vpack.c.b16 %v523, %v521
  %v554 = vpack.c.b16 %v526, %v524
  %v555 = vpack.c.b16 %v527, %v525
  %v556 = vpack.c.b16 %v530, %v528
  %v557 = vpack.c.b16 %v531, %v529
  %v558 = vpack.c.b16 %v534, %v532
  %v559 = vpack.c.b16 %v535, %v533
  %v560 = vpack.c.b16 %v538, %v536
  %v561 = vpack.c.b16 %v539, %v537
  %v562 = vpack.c.b16 %v542, %v540
  %v563 = vpack.c.b16 %v543, %v541
  %v564 = vpack.c.b16 %v546, %v544
  %v565 = vpack.c.b16 %v547, %v545
  %v566 = vpack.c.b16 %v550, %v548
  %v567 = vpack.c.b16 %v551, %v549
  %584 = vmatprep.subr.bf16.mxu0 %v567
  %585 = vmatpush1.bf16.msra.mxu0 %v566
  %586 = vmatprep.subr.bf16.mxu0 %v565
  %587 = vmatpush1.bf16.msra.mxu0 %v564
  %588 = vmatprep.subr.bf16.mxu0 %v563
  %589 = vmatpush1.bf16.msra.mxu0 %v562
  %590 = vmatprep.subr.bf16.mxu0 %v561
  %591 = vmatpush1.bf16.msra.mxu0 %v560
  %592 = vmatprep.subr.bf16.mxu0 %v559
  %593 = vmatpush1.bf16.msra.mxu0 %v558
  %594 = vmatprep.subr.bf16.mxu0 %v557
  %595 = vmatpush1.bf16.msra.mxu0 %v556
  %596 = vmatprep.subr.bf16.mxu0 %v555
  %597 = vmatpush1.bf16.msra.mxu0 %v554
  %598 = vmatprep.subr.bf16.mxu0 %v553
  %599 = vmatpush1.bf16.msra.mxu0 %v552
  %600 = vmatprep.subr.bf16.mxu0 0
  %601 = vmatpush2.bf16.msra.mxu0 0
  %602 = vmatprep.subr.bf16.mxu0 0
  %603 = vmatpush2.bf16.msra.mxu0 0
  %604 = vmatprep.subr.bf16.mxu0 0
  %605 = vmatpush2.bf16.msra.mxu0 0
  %606 = vmatprep.subr.bf16.mxu0 0
  %607 = vmatpush2.bf16.msra.mxu0 0
  %608 = vmatprep.subr.bf16.mxu0 0
  %609 = vmatpush2.bf16.msra.mxu0 0
  %610 = vmatprep.subr.bf16.mxu0 0
  %611 = vmatpush2.bf16.msra.mxu0 0
  %612 = vmatprep.subr.bf16.mxu0 0
  %613 = vmatpush2.bf16.msra.mxu0 0
  %614 = vmatprep.subr.bf16.mxu0 0
  %615 = vmatpush2.bf16.msra.mxu0 0
  %616 = vmatprep.mubr.bf16.mxu0 0
  %617 = vmatmul.mubr.bf16.gmra.mxu0 %v465
  %v618 = vpop.f32.mrf.mxu0
  %v619 = vadd.f32 %v499, %v618
  %v620 = vpop.f32.mrf.mxu0
  %v621 = vadd.f32 %v503, %v620
  %v622 = vpop.f32.mrf.mxu0
  %v623 = vadd.f32 %v499, %v622
  %v624 = vpop.f32.mrf.mxu0
  %v625 = vadd.f32 %v503, %v624
  %626 = vmatprep.mubr.bf16.mxu0 0
  %627 = vmatmul.mubr.bf16.gmra.mxu0 %v466
  %v628 = vpop.f32.mrf.mxu0
  %v629 = vadd.f32 %v499, %v628
  %v630 = vpop.f32.mrf.mxu0
  %v631 = vadd.f32 %v503, %v630
  %v632 = vpop.f32.mrf.mxu0
  %v633 = vpop.f32.mrf.mxu0
  %634 = vdwg.mxu0
  %v635 = vld [vmem:[%s7] sm:$0xff]
  %v636 = vld [vmem:[%s7 + $0x8] sm:$0xff]
  %v637 = vld [vmem:[%s7 + $0x10] sm:$0xff]
  %v638 = vld [vmem:[%s7 + $0x18] sm:$0xff]
  %v639 = vld [vmem:[%s7 + $0x20] sm:$0xff]
  %v640 = vld [vmem:[%s7 + $0x28] sm:$0xff]
  %v641 = vld [vmem:[%s7 + $0x30] sm:$0xff]
  %v642 = vld [vmem:[%s7 + $0x38] sm:$0xff]
  %v643 = vld [vmem:[%s7 + $0x40] sm:$0xff]
  %v644 = vld [vmem:[%s7 + $0x48] sm:$0xff]
  %v645 = vld [vmem:[%s7 + $0x50] sm:$0xff]
  %v646 = vld [vmem:[%s7 + $0x58] sm:$0xff]
  %v647 = vld [vmem:[%s7 + $0x60] sm:$0xff]
  %v648 = vld [vmem:[%s7 + $0x68] sm:$0xff]
  %v649 = vld [vmem:[%s7 + $0x70] sm:$0xff]
  %v650 = vld [vmem:[%s7 + $0x78] sm:$0xff]
  %v651 = vld [vmem:[%s7 + $0x80] sm:$0xff]
  %v652 = vld [vmem:[%s7 + $0x88] sm:$0xff]
  %v653 = vld [vmem:[%s7 + $0x90] sm:$0xff]
  %v654 = vld [vmem:[%s7 + $0x98] sm:$0xff]
  %v655 = vld [vmem:[%s7 + $0xa0] sm:$0xff]
  %v656 = vld [vmem:[%s7 + $0xa8] sm:$0xff]
  %v657 = vld [vmem:[%s7 + $0xb0] sm:$0xff]
  %v658 = vld [vmem:[%s7 + $0xb8] sm:$0xff]
  %v659 = vld [vmem:[%s7 + $0xc0] sm:$0xff]
  %v660 = vld [vmem:[%s7 + $0xc8] sm:$0xff]
  %v661 = vld [vmem:[%s7 + $0xd0] sm:$0xff]
  %v662 = vld [vmem:[%s7 + $0xd8] sm:$0xff]
  %v663 = vld [vmem:[%s7 + $0xe0] sm:$0xff]
  %v664 = vld [vmem:[%s7 + $0xe8] sm:$0xff]
  %v665 = vld [vmem:[%s7 + $0xf0] sm:$0xff]
  %v666 = vld [vmem:[%s7 + $0xf8] sm:$0xff]
  %v667 = vld [vmem:[%s8] sm:$0xff]
  %668 = vmatprep.subr.mxu0 0.0
  %669 = vmatpush1.msra.mxu0 %v650
  %670 = vmatprep.subr.mxu0 0.0
  %671 = vmatpush1.msra.mxu0 %v649
  %672 = vmatprep.subr.mxu0 0.0
  %673 = vmatpush1.msra.mxu0 %v648
  %674 = vmatprep.subr.mxu0 0.0
  %675 = vmatpush1.msra.mxu0 %v647
  %676 = vmatprep.subr.mxu0 0.0
  %677 = vmatpush1.msra.mxu0 %v646
  %678 = vmatprep.subr.mxu0 0.0
  %679 = vmatpush1.msra.mxu0 %v645
  %680 = vmatprep.subr.mxu0 0.0
  %681 = vmatpush1.msra.mxu0 %v644
  %682 = vmatprep.subr.mxu0 0.0
  %683 = vmatpush1.msra.mxu0 %v643
  %684 = vmatprep.subr.mxu0 0.0
  %685 = vmatpush1.msra.mxu0 %v642
  %686 = vmatprep.subr.mxu0 0.0
  %687 = vmatpush1.msra.mxu0 %v641
  %688 = vmatprep.subr.mxu0 0.0
  %689 = vmatpush1.msra.mxu0 %v640
  %690 = vmatprep.subr.mxu0 0.0
  %691 = vmatpush1.msra.mxu0 %v639
  %692 = vmatprep.subr.mxu0 0.0
  %693 = vmatpush1.msra.mxu0 %v638
  %694 = vmatprep.subr.mxu0 0.0
  %695 = vmatpush1.msra.mxu0 %v637
  %696 = vmatprep.subr.mxu0 0.0
  %697 = vmatpush1.msra.mxu0 %v636
  %698 = vmatprep.subr.mxu0 0.0
  %699 = vmatpush1.msra.mxu0 %v635
  %700 = vmatprep.subr.mxu0 0.0
  %701 = vmatpush2.msra.mxu0 %v666
  %702 = vmatprep.subr.mxu0 0.0
  %703 = vmatpush2.msra.mxu0 %v665
  %704 = vmatprep.subr.mxu0 0.0
  %705 = vmatpush2.msra.mxu0 %v664
  %706 = vmatprep.subr.mxu0 0.0
  %707 = vmatpush2.msra.mxu0 %v663
  %708 = vmatprep.subr.mxu0 0.0
  %709 = vmatpush2.msra.mxu0 %v662
  %710 = vmatprep.subr.mxu0 0.0
  %711 = vmatpush2.msra.mxu0 %v661
  %712 = vmatprep.subr.mxu0 0.0
  %713 = vmatpush2.msra.mxu0 %v660
  %714 = vmatprep.subr.mxu0 0.0
  %715 = vmatpush2.msra.mxu0 %v659
  %716 = vmatprep.subr.mxu0 0.0
  %717 = vmatpush2.msra.mxu0 %v658
  %718 = vmatprep.subr.mxu0 0.0
  %719 = vmatpush2.msra.mxu0 %v657
  %720 = vmatprep.subr.mxu0 0.0
  %721 = vmatpush2.msra.mxu0 %v656
  %722 = vmatprep.subr.mxu0 0.0
  %723 = vmatpush2.msra.mxu0 %v655
  %724 = vmatprep.subr.mxu0 0.0
  %725 = vmatpush2.msra.mxu0 %v654
  %726 = vmatprep.subr.mxu0 0.0
  %727 = vmatpush2.msra.mxu0 %v653
  %728 = vmatprep.subr.mxu0 0.0
  %729 = vmatpush2.msra.mxu0 %v652
  %730 = vmatprep.subr.mxu0 0.0
  %731 = vmatpush2.msra.mxu0 %v651
  %732 = vmatprep.mubr.f32.mxu0 %v621
  %733 = vmatmul.mubr.f32.gmra.mxu0 %v619
  %v734 = vpop.f32.mrf.mxu0
  %v735 = vadd.f32 0.0, %v734
  %v736 = vpop.f32.mrf.mxu0
  %737 = vmatprep.mubr.f32.mxu0 %v625
  %738 = vmatmul.mubr.f32.gmra.mxu0 %v623
  %v739 = vpop.f32.mrf.mxu0
  %v740 = vadd.f32 0.0, %v739
  %v741 = vpop.f32.mrf.mxu0
  %742 = vmatprep.mubr.f32.mxu0 %v631
  %743 = vmatmul.mubr.f32.gmra.mxu0 %v629
  %v744 = vpop.f32.mrf.mxu0
  %v745 = vadd.f32 0.0, %v744
  %v746 = vpop.f32.mrf.mxu0
  %747 = vdwg.mxu0
  %v748 = vmul.f32 %v735, 0.015625
  %v749 = vmul.f32 %v740, 0.015625
  %v750 = vmul.f32 %v745, 0.015625
  %v752 = vcombine.high %v667, %v667
  %vm753 = vcmask 31744
  %v755 = vsel %vm753, %v748, 0
  %v758 = vsel %vm753, %v749, 0
  %v761 = vsel %vm753, %v750, 0
  %vm763 = vcmask 1043456
  %v764 = vsel %vm763, %v667, 0
  %v766 = vsel %vm763, %v752, 0
  %768 = vmatprep.subr.mxu0 0.0
  %769 = vmatpush1.msra.mxu0 0.0
  %770 = vmatprep.subr.mxu0 0.0
  %771 = vmatpush1.msra.mxu0 0.0
  %772 = vmatprep.subr.mxu0 0.0
  %773 = vmatpush1.msra.mxu0 0.0
  %774 = vmatprep.subr.mxu0 0.0
  %775 = vmatpush1.msra.mxu0 0.0
  %776 = vmatprep.subr.mxu0 0.0
  %777 = vmatpush1.msra.mxu0 0.0
  %778 = vmatprep.subr.mxu0 0.0
  %779 = vmatpush1.msra.mxu0 0.0
  %780 = vmatprep.subr.mxu0 0.0
  %781 = vmatpush1.msra.mxu0 0.0
  %782 = vmatprep.subr.mxu0 0.0
  %783 = vmatpush1.msra.mxu0 0.0
  %784 = vmatprep.subr.mxu0 0.0
  %785 = vmatpush1.msra.mxu0 0.0
  %786 = vmatprep.subr.mxu0 0.0
  %787 = vmatpush1.msra.mxu0 0.0
  %788 = vmatprep.subr.mxu0 0.0
  %789 = vmatpush1.msra.mxu0 0.0
  %790 = vmatprep.subr.mxu0 0.0
  %791 = vmatpush1.msra.mxu0 0.0
  %792 = vmatprep.subr.mxu0 0.0
  %793 = vmatpush1.msra.mxu0 0.0
  %794 = vmatprep.subr.mxu0 0.0
  %795 = vmatpush1.msra.mxu0 0.0
  %796 = vmatprep.subr.mxu0 0.0
  %797 = vmatpush1.msra.mxu0 0.0
  %798 = vmatprep.subr.mxu0 %v766
  %799 = vmatpush1.msra.mxu0 %v764
  %800 = vmatprep.subr.mxu0 0.0
  %801 = vmatpush2.msra.mxu0 0.0
  %802 = vmatprep.subr.mxu0 0.0
  %803 = vmatpush2.msra.mxu0 0.0
  %804 = vmatprep.subr.mxu0 0.0
  %805 = vmatpush2.msra.mxu0 0.0
  %806 = vmatprep.subr.mxu0 0.0
  %807 = vmatpush2.msra.mxu0 0.0
  %808 = vmatprep.subr.mxu0 0.0
  %809 = vmatpush2.msra.mxu0 0.0
  %810 = vmatprep.subr.mxu0 0.0
  %811 = vmatpush2.msra.mxu0 0.0
  %812 = vmatprep.subr.mxu0 0.0
  %813 = vmatpush2.msra.mxu0 0.0
  %814 = vmatprep.subr.mxu0 0.0
  %815 = vmatpush2.msra.mxu0 0.0
  %816 = vmatprep.subr.mxu0 0.0
  %817 = vmatpush2.msra.mxu0 0.0
  %818 = vmatprep.subr.mxu0 0.0
  %819 = vmatpush2.msra.mxu0 0.0
  %820 = vmatprep.subr.mxu0 0.0
  %821 = vmatpush2.msra.mxu0 0.0
  %822 = vmatprep.subr.mxu0 0.0
  %823 = vmatpush2.msra.mxu0 0.0
  %824 = vmatprep.subr.mxu0 0.0
  %825 = vmatpush2.msra.mxu0 0.0
  %826 = vmatprep.subr.mxu0 0.0
  %827 = vmatpush2.msra.mxu0 0.0
  %828 = vmatprep.subr.mxu0 0.0
  %829 = vmatpush2.msra.mxu0 0.0
  %830 = vmatprep.subr.mxu0 0.0
  %831 = vmatpush2.msra.mxu0 0.0
  %832 = vmatprep.mubr.f32.mxu0 0.0
  %833 = vmatmul.mubr.f32.gmra.mxu0 %v755
  %v834 = vpop.f32.mrf.mxu0
  %v835 = vadd.f32 0.0, %v834
  %v836 = vpop.f32.mrf.mxu0
  %v837 = vadd.f32 0.0, %v836
  %838 = vmatprep.mubr.f32.mxu0 0.0
  %839 = vmatmul.mubr.f32.gmra.mxu0 %v758
  %v840 = vpop.f32.mrf.mxu0
  %v841 = vadd.f32 0.0, %v840
  %v842 = vpop.f32.mrf.mxu0
  %v843 = vadd.f32 0.0, %v842
  %844 = vmatprep.mubr.f32.mxu0 0.0
  %845 = vmatmul.mubr.f32.gmra.mxu0 %v761
  %v846 = vpop.f32.mrf.mxu0
  %v847 = vadd.f32 0.0, %v846
  %v848 = vpop.f32.mrf.mxu0
  %v849 = vadd.f32 0.0, %v848
  %850 = vdwg.mxu0
  %v851 = vsub.f32 %v619, %v835
  %v852 = vsub.f32 %v621, %v837
  %v853 = vsub.f32 %v623, %v841
  %v854 = vsub.f32 %v625, %v843
  %v855 = vsub.f32 %v629, %v847
  %v856 = vsub.f32 %v631, %v849
  %v857 = vmul.f32 %v851, %v851
  %v858 = vmul.f32 %v852, %v852
  %v859 = vmul.f32 %v853, %v853
  %v860 = vmul.f32 %v854, %v854
  %v861 = vmul.f32 %v855, %v855
  %v862 = vmul.f32 %v856, %v856
  %863 = vmatprep.subr.mxu0 0.0
  %864 = vmatpush1.msra.mxu0 %v650
  %865 = vmatprep.subr.mxu0 0.0
  %866 = vmatpush1.msra.mxu0 %v649
  %867 = vmatprep.subr.mxu0 0.0
  %868 = vmatpush1.msra.mxu0 %v648
  %869 = vmatprep.subr.mxu0 0.0
  %870 = vmatpush1.msra.mxu0 %v647
  %871 = vmatprep.subr.mxu0 0.0
  %872 = vmatpush1.msra.mxu0 %v646
  %873 = vmatprep.subr.mxu0 0.0
  %874 = vmatpush1.msra.mxu0 %v645
  %875 = vmatprep.subr.mxu0 0.0
  %876 = vmatpush1.msra.mxu0 %v644
  %877 = vmatprep.subr.mxu0 0.0
  %878 = vmatpush1.msra.mxu0 %v643
  %879 = vmatprep.subr.mxu0 0.0
  %880 = vmatpush1.msra.mxu0 %v642
  %881 = vmatprep.subr.mxu0 0.0
  %882 = vmatpush1.msra.mxu0 %v641
  %883 = vmatprep.subr.mxu0 0.0
  %884 = vmatpush1.msra.mxu0 %v640
  %885 = vmatprep.subr.mxu0 0.0
  %886 = vmatpush1.msra.mxu0 %v639
  %887 = vmatprep.subr.mxu0 0.0
  %888 = vmatpush1.msra.mxu0 %v638
  %889 = vmatprep.subr.mxu0 0.0
  %890 = vmatpush1.msra.mxu0 %v637
  %891 = vmatprep.subr.mxu0 0.0
  %892 = vmatpush1.msra.mxu0 %v636
  %893 = vmatprep.subr.mxu0 0.0
  %894 = vmatpush1.msra.mxu0 %v635
  %895 = vmatprep.subr.mxu0 0.0
  %896 = vmatpush2.msra.mxu0 %v666
  %897 = vmatprep.subr.mxu0 0.0
  %898 = vmatpush2.msra.mxu0 %v665
  %899 = vmatprep.subr.mxu0 0.0
  %900 = vmatpush2.msra.mxu0 %v664
  %901 = vmatprep.subr.mxu0 0.0
  %902 = vmatpush2.msra.mxu0 %v663
  %903 = vmatprep.subr.mxu0 0.0
  %904 = vmatpush2.msra.mxu0 %v662
  %905 = vmatprep.subr.mxu0 0.0
  %906 = vmatpush2.msra.mxu0 %v661
  %907 = vmatprep.subr.mxu0 0.0
  %908 = vmatpush2.msra.mxu0 %v660
  %909 = vmatprep.subr.mxu0 0.0
  %910 = vmatpush2.msra.mxu0 %v659
  %911 = vmatprep.subr.mxu0 0.0
  %912 = vmatpush2.msra.mxu0 %v658
  %913 = vmatprep.subr.mxu0 0.0
  %914 = vmatpush2.msra.mxu0 %v657
  %915 = vmatprep.subr.mxu0 0.0
  %916 = vmatpush2.msra.mxu0 %v656
  %917 = vmatprep.subr.mxu0 0.0
  %918 = vmatpush2.msra.mxu0 %v655
  %919 = vmatprep.subr.mxu0 0.0
  %920 = vmatpush2.msra.mxu0 %v654
  %921 = vmatprep.subr.mxu0 0.0
  %922 = vmatpush2.msra.mxu0 %v653
  %923 = vmatprep.subr.mxu0 0.0
  %924 = vmatpush2.msra.mxu0 %v652
  %925 = vmatprep.subr.mxu0 0.0
  %926 = vmatpush2.msra.mxu0 %v651
  %927 = vmatprep.mubr.f32.mxu0 %v858
  %928 = vmatmul.mubr.f32.gmra.mxu0 %v857
  %v929 = vpop.f32.mrf.mxu0
  %v930 = vadd.f32 0.0, %v929
  %v931 = vpop.f32.mrf.mxu0
  %932 = vmatprep.mubr.f32.mxu0 %v860
  %933 = vmatmul.mubr.f32.gmra.mxu0 %v859
  %v934 = vpop.f32.mrf.mxu0
  %v935 = vadd.f32 0.0, %v934
  %v936 = vpop.f32.mrf.mxu0
  %937 = vmatprep.mubr.f32.mxu0 %v862
  %938 = vmatmul.mubr.f32.gmra.mxu0 %v861
  %v939 = vpop.f32.mrf.mxu0
  %v940 = vadd.f32 0.0, %v939
  %v941 = vpop.f32.mrf.mxu0
  %942 = vdwg.mxu0
  %v943 = vmul.f32 %v930, 0.015625
  %v944 = vmul.f32 %v935, 0.015625
  %v945 = vmul.f32 %v940, 0.015625
  %v947 = vsel %vm753, %v943, 0
  %v950 = vsel %vm753, %v944, 0
  %v953 = vsel %vm753, %v945, 0
  %955 = vmatprep.subr.mxu0 0.0
  %956 = vmatpush1.msra.mxu0 0.0
  %957 = vmatprep.subr.mxu0 0.0
  %958 = vmatpush1.msra.mxu0 0.0
  %959 = vmatprep.subr.mxu0 0.0
  %960 = vmatpush1.msra.mxu0 0.0
  %961 = vmatprep.subr.mxu0 0.0
  %962 = vmatpush1.msra.mxu0 0.0
  %963 = vmatprep.subr.mxu0 0.0
  %964 = vmatpush1.msra.mxu0 0.0
  %965 = vmatprep.subr.mxu0 0.0
  %966 = vmatpush1.msra.mxu0 0.0
  %967 = vmatprep.subr.mxu0 0.0
  %968 = vmatpush1.msra.mxu0 0.0
  %969 = vmatprep.subr.mxu0 0.0
  %970 = vmatpush1.msra.mxu0 0.0
  %971 = vmatprep.subr.mxu0 0.0
  %972 = vmatpush1.msra.mxu0 0.0
  %973 = vmatprep.subr.mxu0 0.0
  %974 = vmatpush1.msra.mxu0 0.0
  %975 = vmatprep.subr.mxu0 0.0
  %976 = vmatpush1.msra.mxu0 0.0
  %977 = vmatprep.subr.mxu0 0.0
  %978 = vmatpush1.msra.mxu0 0.0
  %979 = vmatprep.subr.mxu0 0.0
  %980 = vmatpush1.msra.mxu0 0.0
  %981 = vmatprep.subr.mxu0 0.0
  %982 = vmatpush1.msra.mxu0 0.0
  %983 = vmatprep.subr.mxu0 0.0
  %984 = vmatpush1.msra.mxu0 0.0
  %985 = vmatprep.subr.mxu0 %v766
  %986 = vmatpush1.msra.mxu0 %v764
  %987 = vmatprep.subr.mxu0 0.0
  %988 = vmatpush2.msra.mxu0 0.0
  %989 = vmatprep.subr.mxu0 0.0
  %990 = vmatpush2.msra.mxu0 0.0
  %991 = vmatprep.subr.mxu0 0.0
  %992 = vmatpush2.msra.mxu0 0.0
  %993 = vmatprep.subr.mxu0 0.0
  %994 = vmatpush2.msra.mxu0 0.0
  %995 = vmatprep.subr.mxu0 0.0
  %996 = vmatpush2.msra.mxu0 0.0
  %997 = vmatprep.subr.mxu0 0.0
  %998 = vmatpush2.msra.mxu0 0.0
  %999 = vmatprep.subr.mxu0 0.0
  %1000 = vmatpush2.msra.mxu0 0.0
  %1001 = vmatprep.subr.mxu0 0.0
  %1002 = vmatpush2.msra.mxu0 0.0
  %1003 = vmatprep.subr.mxu0 0.0
  %1004 = vmatpush2.msra.mxu0 0.0
  %1005 = vmatprep.subr.mxu0 0.0
  %1006 = vmatpush2.msra.mxu0 0.0
  %1007 = vmatprep.subr.mxu0 0.0
  %1008 = vmatpush2.msra.mxu0 0.0
  %1009 = vmatprep.subr.mxu0 0.0
  %1010 = vmatpush2.msra.mxu0 0.0
  %1011 = vmatprep.subr.mxu0 0.0
  %1012 = vmatpush2.msra.mxu0 0.0
  %1013 = vmatprep.subr.mxu0 0.0
  %1014 = vmatpush2.msra.mxu0 0.0
  %1015 = vmatprep.subr.mxu0 0.0
  %1016 = vmatpush2.msra.mxu0 0.0
  %1017 = vmatprep.subr.mxu0 0.0
  %1018 = vmatpush2.msra.mxu0 0.0
  %1019 = vmatprep.mubr.f32.mxu0 0.0
  %1020 = vmatmul.mubr.f32.gmra.mxu0 %v947
  %v1021 = vpop.f32.mrf.mxu0
  %v1022 = vadd.f32 1e-05, %v1021
  %v1023 = vpop.f32.mrf.mxu0
  %v1024 = vadd.f32 1e-05, %v1023
  %1025 = vmatprep.mubr.f32.mxu0 0.0
  %1026 = vmatmul.mubr.f32.gmra.mxu0 %v950
  %v1027 = vpop.f32.mrf.mxu0
  %v1028 = vadd.f32 1e-05, %v1027
  %v1029 = vpop.f32.mrf.mxu0
  %v1030 = vadd.f32 1e-05, %v1029
  %1031 = vmatprep.mubr.f32.mxu0 0.0
  %1032 = vmatmul.mubr.f32.gmra.mxu0 %v953
  %v1033 = vpop.f32.mrf.mxu0
  %v1034 = vadd.f32 1e-05, %v1033
  %v1035 = vpop.f32.mrf.mxu0
  %v1036 = vadd.f32 1e-05, %v1035
  %1037 = vdwg.mxu0
  %v1038 = vrsqrt.pop %v1022
  %v1039 = vrsqrt.pop %v1024
  %v1040 = vrsqrt.pop %v1028
  %v1041 = vrsqrt.pop %v1030
  %v1042 = vrsqrt.pop %v1034
  %v1043 = vrsqrt.pop %v1036
  %v1044 = vmul.f32 %v851, %v1038
  %v1045 = vmul.f32 %v852, %v1039
  %v1046 = vmul.f32 %v853, %v1040
  %v1047 = vmul.f32 %v854, %v1041
  %v1048 = vmul.f32 %v855, %v1042
  %v1049 = vmul.f32 %v856, %v1043
  %v1050 = vld [vmem:[%s9] sm:$0x3]
  %v1051 = vunpack.c.l.bf16 %v1050
  %v1053 = vlaneseq
  %v1054 = vshrl.u32 %v1053, 7
  %v1055 = vsub.s32 0, %v1054
  %v1056 = vrot.slane %v1051, %v1055
  %v1057 = vlaneseq
  %v1058 = vshrl.u32 %v1057, 7
  %v1059 = vsub.s32 2, %v1058
  %v1060 = vrot.slane %v1051, %v1059
  %v1063 = vlaneseq
  %v1064 = vshrl.u32 %v1063, 7
  %v1065 = vsub.s32 0, %v1064
  %v1066 = vrot.slane %v1056, %v1065
  %v1067 = vlaneseq
  %v1068 = vshrl.u32 %v1067, 7
  %v1069 = vsub.s32 0, %v1068
  %v1070 = vrot.slane %v1060, %v1069
  %v1071 = vmul.f32 %v1044, %v1066
  %v1072 = vmul.f32 %v1045, %v1070
  %v1073 = vmul.f32 %v1046, %v1066
  %v1074 = vmul.f32 %v1047, %v1070
  %v1075 = vmul.f32 %v1048, %v1066
  %v1076 = vmul.f32 %v1049, %v1070
  %v1077 = vld [vmem:[%s10] sm:$0x3]
  %v1078 = vunpack.c.l.bf16 %v1077
  %v1080 = vlaneseq
  %v1081 = vshrl.u32 %v1080, 7
  %v1082 = vsub.s32 0, %v1081
  %v1083 = vrot.slane %v1078, %v1082
  %v1084 = vlaneseq
  %v1085 = vshrl.u32 %v1084, 7
  %v1086 = vsub.s32 2, %v1085
  %v1087 = vrot.slane %v1078, %v1086
  %v1090 = vlaneseq
  %v1091 = vshrl.u32 %v1090, 7
  %v1092 = vsub.s32 0, %v1091
  %v1093 = vrot.slane %v1083, %v1092
  %v1094 = vlaneseq
  %v1095 = vshrl.u32 %v1094, 7
  %v1096 = vsub.s32 0, %v1095
  %v1097 = vrot.slane %v1087, %v1096
  %v1098 = vadd.f32 %v1071, %v1093
  %v1099 = vadd.f32 %v1072, %v1097
  %v1100 = vadd.f32 %v1073, %v1093
  %v1101 = vadd.f32 %v1074, %v1097
  %v1102 = vadd.f32 %v1075, %v1093
  %v1103 = vadd.f32 %v1076, %v1097
  %v1104 = vpack.c.bf16 %v1100, %v1098
  %v1105 = vpack.c.bf16 %v1101, %v1099
  %v1106 = vpack.c.bf16 %v1102, %v1102
  %v1107 = vpack.c.bf16 %v1103, %v1103
  %v1112 = vunpack.c.l.b16 %v1104
  %v1113 = vunpack.c.l.b16 %v1105
  %v1114 = vunpack.c.h.b16 %v1104
  %v1115 = vunpack.c.h.b16 %v1105
  %v1116 = vunpack.c.l.b16 %v1106
  %v1117 = vunpack.c.l.b16 %v1107
  %v1118 = vpack.c.b16 %v1113, %v1112
  %v1119 = vpack.c.b16 %v1115, %v1114
  %v1120 = vpack.c.b16 %v1117, %v1116
  %1124 = vst [vmem:[%s11] sm:$0xff] %v1118
  %1125 = vst [vmem:[%s11 + $0x8] sm:$0xff] %v1119
  %1126 = vst [vmem:[%s11 + $0x10] sm:$0x11] %v1120
  // Predicated region
  $region46: #{audio_projection_forward.33} parent=0 // pred_check
    _
  $region47: #{audio_projection_forward.33} parent=0 // pred_check_branch
    %1128 = sbr.rel (0) target = $region49
  $region48: #{audio_projection_forward.33} parent=0 // pred_region
    _
  $region49: #{audio_projection_forward.33} parent=0 // pred_fallthru
    _
  // Predicated region
  $region50: #{audio_projection_forward.33} parent=0 // pred_check
    _
  $region51: #{audio_projection_forward.33} parent=0 // pred_check_branch
    %1130 = sbr.rel (0) target = $region53
  $region52: #{audio_projection_forward.33} parent=0 // pred_region
    _
  $region53: #{audio_projection_forward.33} parent=0 // pred_fallthru
    _

</llo_original>
